<compile_context>
chip_gen: v5e
topology: v5e:2x2
jax: 0.10.0
libtpu: 0.0.40
codegen_flags: <defaults>
</compile_context>

<pallas_src>
import functools
import math

import numpy as np
import jax
import jax.numpy as jnp
from jax.experimental import pallas as pl
from jax.experimental.pallas import tpu as pltpu


# --------------------------------------------------------------------------- #
# Pass 1 kernel: KPConv (linear influence, "sum" aggregation)
# --------------------------------------------------------------------------- #
def _kpconv_kernel(kp_ref, w_ref, pos_ref, q_ref, feat_ref, conv_ref, wf_ref, *,
                   inv_influence, n_kp, c_in, kc_pad):
    # kp_ref  : SMEM [4, Kp]        rows = (-2*kp_x, -2*kp_y, -2*kp_z, |kp|^2)
    # w_ref   : VMEM [Cout, KCpad]  bf16 flattened weights (row = k*Cin + c)
    # pos_ref : VMEM [3, M, TN]     neighbour positions (f32)
    # q_ref   : VMEM [3, 1, TN]     query positions (f32)
    # feat_ref: VMEM [Cin, M, TN]   neighbour features (bf16)
    # conv_ref: VMEM [Cout, TN]     KPConv output (f32)
    # wf_ref  : VMEM [KCpad, TN]    f32 scratch: influence-weighted feature sums
    f32 = jnp.float32

    # Centering folded into the kernel (saves an HBM round trip of geometry).
    cx = pos_ref[0] - q_ref[0]                       # [M, TN]
    cy = pos_ref[1] - q_ref[1]
    cz = pos_ref[2] - q_ref[2]
    c2 = cx * cx + cy * cy + cz * cz                 # [M, TN]

    # bf16 HBM stream, f32 compute (sentinel + cancellation-prone d^2 path).
    feats = feat_ref[...].astype(f32)                # [Cin, M, TN]

    kc = n_kp * c_in
    if kc_pad > kc:
        # Padded tail rows: weights there are zero, but uninitialised VMEM
        # could hold NaN/Inf and 0*NaN = NaN on the MXU -> zero them.
        wf_ref[pl.ds(kc, kc_pad - kc), :] = jnp.zeros(
            (kc_pad - kc, wf_ref.shape[1]), dtype=wf_ref.dtype)

    # Static (fully unrolled) loop over kernel points.  Nothing 4-D is ever
    # materialised: the largest live temporaries are [M, TN]; each wf row is
    # produced once and written straight to the VMEM scratch (no accumulator
    # carried, no vreg spill).
    for k in range(n_kp):
        a = kp_ref[0, k]          # -2 * kp_x   (SMEM scalars)
        b = kp_ref[1, k]          # -2 * kp_y
        c_ = kp_ref[2, k]         # -2 * kp_z
        k2 = kp_ref[3, k]         # |kp|^2
        # |c - kp|^2 = |c|^2 + |kp|^2 - 2 c.kp   (-2 folded into a, b, c_).
        d2 = c2 + (cx * a + cy * b + cz * c_) + k2
        d2 = jnp.maximum(d2, 0.0)                    # guards cancellation
        infl = jnp.maximum(1.0 - jnp.sqrt(d2) * inv_influence, 0.0)   # [M, TN]
        for ci in range(c_in):
            wf_ref[pl.ds(k * c_in + ci, 1), :] = jnp.sum(
                feats[ci] * infl, axis=0, keepdims=True)

    # ONE fused MXU matmul per tile; bf16 operands (native single-pass MXU
    # path), f32 accumulation.
    conv_ref[...] = jnp.dot(w_ref[...], wf_ref[...].astype(jnp.bfloat16),
                            preferred_element_type=f32)


# --------------------------------------------------------------------------- #
# Pass 2 kernel: apply global BatchNorm affine + LeakyReLU (wide, lane-dense)
# --------------------------------------------------------------------------- #
def _bn_act_kernel(x_ref, scale_ref, shift_ref, out_ref, *, negative_slope):
    y = x_ref[...] * scale_ref[...] + shift_ref[...]   # [Cout, TN2]
    out_ref[...] = jnp.where(y >= 0.0, y, negative_slope * y)


# --------------------------------------------------------------------------- #
# Wrapper: layout plumbing + two tiled pallas_calls + global BN statistics
# --------------------------------------------------------------------------- #
def simple_block_pallas(q_pos, neigh_pos, neigh_feat, kp, weights, gamma, beta,
                        *, point_influence, negative_slope=0.2, eps=1e-5,
                        tile_n=512, vmem_limit_bytes=32 * 1024 * 1024):
    """KPConv -> BatchNorm1d (training-mode batch stats) -> LeakyReLU.

    tile_n: points per grid step (multiple of 128).  512-2048 is the sweet spot
    on v5e/v6e; on v7x keep n_tiles >= ~8 so the 'parallel' grid axis feeds both
    TensorCores, and the 32 MiB VMEM limit stays well inside 64 MiB/TC.
    """
    n, m, _ = neigh_pos.shape
    c_in = neigh_feat.shape[-1]
    k_pts = kp.shape[0]
    c_out = weights.shape[-1]
    assert tile_n % 128 == 0
    f32 = jnp.float32

    compiler_params = pltpu.CompilerParams(
        dimension_semantics=("parallel",),
        vmem_limit_bytes=int(vmem_limit_bytes))

    n_pad = int(tile_n * pl.cdiv(n, tile_n))
    pad_n = n_pad - n
    n_tiles = n_pad // tile_n

    # ---- plain-JAX layout plumbing: point axis minor everywhere -------------
    # TODO(synk): the neighbour gather (pos_pad[idx] / x_pad[idx]) still happens
    # in XLA before this call; moving it in-kernel (VMEM-resident cloud or
    # scalar-prefetched idx + manual DMA gather) would remove the M-fold HBM
    # blow-up of the feature stream entirely.
    pos_t = jnp.transpose(
        jnp.pad(neigh_pos.astype(f32), ((0, pad_n), (0, 0), (0, 0))),
        (2, 1, 0))                                                 # [3,   M, Np]
    q_t = jnp.pad(q_pos.astype(f32), ((0, pad_n), (0, 0))).T[:, None, :]  # [3,1,Np]
    feats_t = jnp.transpose(
        jnp.pad(neigh_feat.astype(jnp.bfloat16), ((0, pad_n), (0, 0), (0, 0))),
        (2, 1, 0))                                                 # [Cin, M, Np]

    # Kernel points as SMEM scalars, -2 factor folded in.
    kp_f = kp.astype(f32)
    kp_smem = jnp.concatenate(
        [(-2.0 * kp_f).T, jnp.sum(kp_f * kp_f, axis=-1)[None, :]], axis=0)  # [4,Kp]

    # Flattened weights, rows ordered (k, c_in) to match the wf scratch rows;
    # contraction dim padded to a multiple of 8 with zero rows.
    kc = k_pts * c_in
    kc_pad = 8 * int(pl.cdiv(kc, 8))
    wmat = weights.astype(f32).reshape(kc, c_out).T                # [Cout, KC]
    wmat = jnp.pad(wmat, ((0, 0), (0, kc_pad - kc))).astype(jnp.bfloat16)

    # ---- Pass 1: KPConv (tiled over points, 'parallel', pipelined) ----------
    conv_t = pl.pallas_call(
        functools.partial(_kpconv_kernel,
                          inv_influence=1.0 / float(point_influence),
                          n_kp=k_pts, c_in=c_in, kc_pad=kc_pad),
        grid=(n_tiles,),
        in_specs=[
            pl.BlockSpec(memory_space=pltpu.MemorySpace.SMEM),       # kp scalars
            pl.BlockSpec((c_out, kc_pad), lambda i: (0, 0)),         # weights
            pl.BlockSpec((3, m, tile_n), lambda i: (0, 0, i)),       # neighbour pos
            pl.BlockSpec((3, 1, tile_n), lambda i: (0, 0, i)),       # query pos
            pl.BlockSpec((c_in, m, tile_n), lambda i: (0, 0, i)),    # neighbour feats
        ],
        out_specs=pl.BlockSpec((c_out, tile_n), lambda i: (0, i)),
        out_shape=jax.ShapeDtypeStruct((c_out, n_pad), f32),
        scratch_shapes=[pltpu.VMEM((kc_pad, tile_n), f32)],
        compiler_params=compiler_params,
    )(kp_smem, wmat, pos_t, q_t, feats_t)

    # ---- Global BatchNorm statistics (training-mode batch stats) ------------
    # Tiny [Cout, N] reduction left to XLA (removes the narrow 2-lane psum
    # store the previous version emitted every tile).  Padded columns excluded.
    # TODO(synk): BN running-stats momentum update / eval mode not modelled.
    conv_valid = conv_t[:, :n]
    mean = jnp.mean(conv_valid, axis=1)
    var = jnp.mean(jnp.square(conv_valid - mean[:, None]), axis=1)
    inv_std = jax.lax.rsqrt(var + eps)
    g = jnp.reshape(gamma, (-1,)).astype(f32)
    b = jnp.reshape(beta, (-1,)).astype(f32)
    scale = (g * inv_std)[:, None]                                 # [Cout, 1]
    shift = (b - mean * g * inv_std)[:, None]                      # [Cout, 1]

    # ---- Pass 2: BN affine + LeakyReLU with much wider tiles ----------------
    t2_mult = 1
    for d_ in (16, 8, 4, 2, 1):
        if n_tiles % d_ == 0:
            t2_mult = d_
            break
    tile_n2 = tile_n * t2_mult
    out_t = pl.pallas_call(
        functools.partial(_bn_act_kernel,
                          negative_slope=float(negative_slope)),
        grid=(n_pad // tile_n2,),
        in_specs=[
            pl.BlockSpec((c_out, tile_n2), lambda i: (0, i)),
            pl.BlockSpec((c_out, 1), lambda i: (0, 0)),
            pl.BlockSpec((c_out, 1), lambda i: (0, 0)),
        ],
        out_specs=pl.BlockSpec((c_out, tile_n2), lambda i: (0, i)),
        out_shape=jax.ShapeDtypeStruct((c_out, n_pad), f32),
        compiler_params=compiler_params,
    )(conv_t, scale, shift)

    # [N, Cout] to match the PyTorch module; transpose left to XLA (an
    # in-kernel transpose would regress to 8-lane masked stores).  Downstream
    # consumers that accept channel-major [Cout, N] can take out_t[:, :n].
    return out_t[:, :n].T


# --------------------------------------------------------------------------- #
# Plain-JAX glue: RadiusNeighbourFinder + shadow-padded gather, param setup
# --------------------------------------------------------------------------- #
def radius_neighbour_finder(support_pos, query_pos, batch_x, batch_y,
                            radius, max_num_neighbors):
    """Brute-force radius neighbours (same batch only); shadow index = N_support."""
    d2 = jnp.sum((query_pos[:, None, :] - support_pos[None, :, :]) ** 2, axis=-1)
    valid = (d2 <= radius ** 2) & (batch_y[:, None] == batch_x[None, :])
    n_support = support_pos.shape[0]
    d2 = jnp.where(valid, d2, jnp.inf)
    order = jnp.argsort(d2, axis=1)[:, :max_num_neighbors]
    keep = jnp.take_along_axis(valid, order, axis=1)
    return jnp.where(keep, order, n_support)


def make_kernel_points(kernel_radius, n_kp):
    # TODO(synk): real KPConv loads kernel-point dispositions from an offline
    # optimisation (load_kernels); here: deterministic centre + fibonacci sphere.
    pts = [np.zeros(3, np.float32)]
    golden = math.pi * (3.0 - math.sqrt(5.0))
    m = n_kp - 1
    for i in range(m):
        z = 1.0 - 2.0 * (i + 0.5) / m
        r = math.sqrt(max(0.0, 1.0 - z * z))
        th = golden * i
        pts.append(np.array([r * math.cos(th), r * math.sin(th), z],
                            np.float32) * 0.66 * kernel_radius)
    return jnp.asarray(np.stack(pts, axis=0), dtype=jnp.float32)


def reference_forward(q_pos, neigh_pos, neigh_feat, kp, weights, gamma, beta,
                      point_influence, negative_slope=0.2, eps=1e-5):
    """Pure-jnp reference of the same math (correctness check)."""
    centered = neigh_pos - q_pos[:, None, :]
    diff = centered[:, :, None, :] - kp[None, None, :, :]
    sq = jnp.sum(diff ** 2, axis=-1)
    infl = jnp.maximum(1.0 - jnp.sqrt(sq) / point_influence, 0.0)       # [N,M,K]
    wf = jnp.einsum('nmk,nmc->nkc', infl, neigh_feat,
                    precision=jax.lax.Precision.HIGHEST)
    conv = jnp.einsum('nkc,kco->no', wf, weights,
                      precision=jax.lax.Precision.HIGHEST)
    mean = conv.mean(0, keepdims=True)
    var = ((conv - mean) ** 2).mean(0, keepdims=True)
    y = (conv - mean) / jnp.sqrt(var + eps) * gamma + beta
    return jnp.where(y >= 0.0, y, negative_slope * y)


if __name__ == "__main__":
    key = jax.random.PRNGKey(0)
    k_pos, k_feat, k_w = jax.random.split(key, 3)

    # SimpleBlock hyper-parameters (defaults, is_strided=False -> no sampler).
    grid_size = 0.1
    sigma = 1.0
    density_parameter = 2.5
    max_num_neighbors = 16
    point_influence = grid_size * sigma                 # KPConv KP_extent
    radius = density_parameter * sigma * grid_size      # neighbourhood radius
    kernel_radius = 1.5 * point_influence               # KPConvLayer._INFLUENCE_TO_RADIUS

    n_points, c_in, c_out, n_kp = 512, 4, 8, 15

    # Deterministic synthetic point cloud (2 batches of 256 points in [0,1]^3).
    pos = jax.random.uniform(k_pos, (n_points, 3), jnp.float32)
    x = jax.random.normal(k_feat, (n_points, c_in), jnp.float32)
    batch = jnp.concatenate([jnp.zeros(n_points // 2, jnp.int32),
                             jnp.ones(n_points - n_points // 2, jnp.int32)])

    # Deterministic parameters (shapes from KPConvLayer / BatchNorm1d __init__).
    kp = make_kernel_points(kernel_radius, n_kp)                         # [K, 3]
    std = math.sqrt(2.0 / (c_in + c_out))                                # xavier_normal
    weights = std * jax.random.normal(k_w, (n_kp, c_in, c_out), jnp.float32)
    gamma = jnp.ones((c_out,), jnp.float32)                              # BN weight
    beta = jnp.zeros((c_out,), jnp.float32)                              # BN bias

    # Neighbour search + gather with a shadow row (pos=1e6, feat=0).
    idx_neighbours = radius_neighbour_finder(pos, pos, batch, batch,
                                             radius, max_num_neighbors)   # [N, M]
    pos_pad = jnp.concatenate([pos, jnp.full((1, 3), 1e6, jnp.float32)], axis=0)
    x_pad = jnp.concatenate([x, jnp.zeros((1, c_in), jnp.float32)], axis=0)
    neigh_pos = pos_pad[idx_neighbours]      # [N, M, 3]
    neigh_feat = x_pad[idx_neighbours]       # [N, M, Cin]

    # tile_n=256 here so the small demo cloud still exercises a multi-tile grid.
    out = simple_block_pallas(pos, neigh_pos, neigh_feat, kp, weights,
                              gamma, beta, point_influence=point_influence,
                              tile_n=256)
    out = jax.block_until_ready(out)

    ref = reference_forward(pos, neigh_pos, neigh_feat, kp, weights,
                            gamma, beta, point_influence)
    assert out.shape == (n_points, c_out)
    assert bool(jnp.all(jnp.isfinite(out)))
    err = float(jnp.max(jnp.abs(out - ref)))
    assert bool(jnp.allclose(out, ref, atol=3e-2, rtol=3e-2)), \
        f"max abs diff {err}"

    print("KERNEL_OK")
</pallas_src>

<mosaic_0001>
module attributes {stable_mosaic.version = 11 : i64} {
  func.func @_kpconv_kernel(%arg0: i32, %arg1: memref<4x15xf32, #tpu.memory_space<smem>>, %arg2: memref<8x64xbf16, #tpu.memory_space<vmem>>, %arg3: memref<3x16x256xf32, #tpu.memory_space<vmem>>, %arg4: memref<3x1x256xf32, #tpu.memory_space<vmem>>, %arg5: memref<4x16x256xbf16, #tpu.memory_space<vmem>>, %arg6: memref<8x256xf32, #tpu.memory_space<vmem>>, %arg7: memref<64x256xf32, #tpu.memory_space<vmem>>) attributes {dimension_semantics = [#tpu.dimension_semantics<parallel>], iteration_bounds = array<i64: 2>, scalar_prefetch = 0 : i64, scratch_operands = 1 : i64, tpu.core_type = #tpu.core_type<tc>, window_params = [{transform_indices = @transform_0, window_bounds = array<i64: 4, 15>}, {pipeline_mode = #tpu.pipeline_mode<synchronous>, transform_indices = @transform_1, window_bounds = array<i64: 8, 64>}, {transform_indices = @transform_2, window_bounds = array<i64: 3, 16, 256>}, {transform_indices = @transform_3, window_bounds = array<i64: 3, 1, 256>}, {transform_indices = @transform_4, window_bounds = array<i64: 4, 16, 256>}, {transform_indices = @transform_5, window_bounds = array<i64: 8, 256>}]} {
    %c0 = arith.constant 0 : index
    %c0_0 = arith.constant 0 : index
    %c0_1 = arith.constant 0 : index
    %0 = vector.load %arg3[%c0, %c0_0, %c0_1] : memref<3x16x256xf32, #tpu.memory_space<vmem>>, vector<1x16x256xf32>
    %1 = vector.shape_cast %0 : vector<1x16x256xf32> to vector<16x256xf32>
    %c0_2 = arith.constant 0 : index
    %c0_3 = arith.constant 0 : index
    %c0_4 = arith.constant 0 : index
    %2 = vector.load %arg4[%c0_2, %c0_3, %c0_4] : memref<3x1x256xf32, #tpu.memory_space<vmem>>, vector<1x1x256xf32>
    %3 = vector.shape_cast %2 : vector<1x1x256xf32> to vector<1x256xf32>
    %4 = vector.broadcast %3 : vector<1x256xf32> to vector<16x256xf32>
    %5 = arith.subf %1, %4 : vector<16x256xf32>
    %c1 = arith.constant 1 : index
    %c0_5 = arith.constant 0 : index
    %c0_6 = arith.constant 0 : index
    %6 = vector.load %arg3[%c1, %c0_5, %c0_6] : memref<3x16x256xf32, #tpu.memory_space<vmem>>, vector<1x16x256xf32>
    %7 = vector.shape_cast %6 : vector<1x16x256xf32> to vector<16x256xf32>
    %c1_7 = arith.constant 1 : index
    %c0_8 = arith.constant 0 : index
    %c0_9 = arith.constant 0 : index
    %8 = vector.load %arg4[%c1_7, %c0_8, %c0_9] : memref<3x1x256xf32, #tpu.memory_space<vmem>>, vector<1x1x256xf32>
    %9 = vector.shape_cast %8 : vector<1x1x256xf32> to vector<1x256xf32>
    %10 = vector.broadcast %9 : vector<1x256xf32> to vector<16x256xf32>
    %11 = arith.subf %7, %10 : vector<16x256xf32>
    %c2 = arith.constant 2 : index
    %c0_10 = arith.constant 0 : index
    %c0_11 = arith.constant 0 : index
    %12 = vector.load %arg3[%c2, %c0_10, %c0_11] : memref<3x16x256xf32, #tpu.memory_space<vmem>>, vector<1x16x256xf32>
    %13 = vector.shape_cast %12 : vector<1x16x256xf32> to vector<16x256xf32>
    %c2_12 = arith.constant 2 : index
    %c0_13 = arith.constant 0 : index
    %c0_14 = arith.constant 0 : index
    %14 = vector.load %arg4[%c2_12, %c0_13, %c0_14] : memref<3x1x256xf32, #tpu.memory_space<vmem>>, vector<1x1x256xf32>
    %15 = vector.shape_cast %14 : vector<1x1x256xf32> to vector<1x256xf32>
    %16 = vector.broadcast %15 : vector<1x256xf32> to vector<16x256xf32>
    %17 = arith.subf %13, %16 : vector<16x256xf32>
    %18 = arith.mulf %5, %5 : vector<16x256xf32>
    %19 = arith.mulf %11, %11 : vector<16x256xf32>
    %20 = arith.addf %18, %19 : vector<16x256xf32>
    %21 = arith.mulf %17, %17 : vector<16x256xf32>
    %22 = arith.addf %20, %21 : vector<16x256xf32>
    %c0_15 = arith.constant 0 : index
    %c0_16 = arith.constant 0 : index
    %c0_17 = arith.constant 0 : index
    %23 = vector.load %arg5[%c0_15, %c0_16, %c0_17] : memref<4x16x256xbf16, #tpu.memory_space<vmem>>, vector<4x16x256xbf16>
    %24 = arith.extf %23 : vector<4x16x256xbf16> to vector<4x16x256xf32>
    %cst = arith.constant 0.000000e+00 : f32
    %25 = vector.broadcast %cst : f32 to vector<4x256xf32>
    %c60 = arith.constant 60 : index
    %c0_18 = arith.constant 0 : index
    %26 = vector.load %arg7[%c60, %c0_18] : memref<64x256xf32, #tpu.memory_space<vmem>>, vector<4x256xf32>
    tpu.vector_store %arg7[%c60, %c0_18], %25 {strides = array<i32>} : memref<64x256xf32, #tpu.memory_space<vmem>>, vector<4x256xf32>,
    %c0_19 = arith.constant 0 : index
    %c0_20 = arith.constant 0 : index
    %27 = memref.load %arg1[%c0_19, %c0_20] : memref<4x15xf32, #tpu.memory_space<smem>>
    %c1_21 = arith.constant 1 : index
    %c0_22 = arith.constant 0 : index
    %28 = memref.load %arg1[%c1_21, %c0_22] : memref<4x15xf32, #tpu.memory_space<smem>>
    %c2_23 = arith.constant 2 : index
    %c0_24 = arith.constant 0 : index
    %29 = memref.load %arg1[%c2_23, %c0_24] : memref<4x15xf32, #tpu.memory_space<smem>>
    %c3 = arith.constant 3 : index
    %c0_25 = arith.constant 0 : index
    %30 = memref.load %arg1[%c3, %c0_25] : memref<4x15xf32, #tpu.memory_space<smem>>
    %31 = vector.broadcast %27 : f32 to vector<16x256xf32>
    %32 = arith.mulf %5, %31 : vector<16x256xf32>
    %33 = vector.broadcast %28 : f32 to vector<16x256xf32>
    %34 = arith.mulf %11, %33 : vector<16x256xf32>
    %35 = arith.addf %32, %34 : vector<16x256xf32>
    %36 = vector.broadcast %29 : f32 to vector<16x256xf32>
    %37 = arith.mulf %17, %36 : vector<16x256xf32>
    %38 = arith.addf %35, %37 : vector<16x256xf32>
    %39 = arith.addf %22, %38 : vector<16x256xf32>
    %40 = vector.broadcast %30 : f32 to vector<16x256xf32>
    %41 = arith.addf %39, %40 : vector<16x256xf32>
    %cst_26 = arith.constant 0.000000e+00 : f32
    %42 = vector.broadcast %cst_26 : f32 to vector<16x256xf32>
    %43 = arith.maximumf %41, %42 : vector<16x256xf32>
    %44 = math.sqrt %43 : vector<16x256xf32>
    %cst_27 = arith.constant 1.000000e+01 : f32
    %45 = vector.broadcast %cst_27 : f32 to vector<16x256xf32>
    %46 = arith.mulf %44, %45 : vector<16x256xf32>
    %cst_28 = arith.constant 1.000000e+00 : f32
    %47 = vector.broadcast %cst_28 : f32 to vector<16x256xf32>
    %48 = arith.subf %47, %46 : vector<16x256xf32>
    %cst_29 = arith.constant 0.000000e+00 : f32
    %49 = vector.broadcast %cst_29 : f32 to vector<16x256xf32>
    %50 = arith.maximumf %48, %49 : vector<16x256xf32>
    %51 = vector.extract_strided_slice %24 {offsets = [0, 0, 0], sizes = [1, 16, 256], strides = [1, 1, 1]} : vector<4x16x256xf32> to vector<1x16x256xf32>
    %52 = vector.shape_cast %51 : vector<1x16x256xf32> to vector<16x256xf32>
    %53 = arith.mulf %52, %50 : vector<16x256xf32>
    %cst_30 = arith.constant dense<0.000000e+00> : vector<256xf32>
    %54 = vector.multi_reduction <add>, %53, %cst_30 [0] : vector<16x256xf32> to vector<256xf32>
    %55 = vector.shape_cast %54 : vector<256xf32> to vector<1x256xf32>
    %c0_31 = arith.constant 0 : index
    %c0_32 = arith.constant 0 : index
    %56 = vector.load %arg7[%c0_31, %c0_32] : memref<64x256xf32, #tpu.memory_space<vmem>>, vector<1x256xf32>
    tpu.vector_store %arg7[%c0_31, %c0_32], %55 {strides = array<i32>} : memref<64x256xf32, #tpu.memory_space<vmem>>, vector<1x256xf32>,
    %57 = vector.extract_strided_slice %24 {offsets = [1, 0, 0], sizes = [1, 16, 256], strides = [1, 1, 1]} : vector<4x16x256xf32> to vector<1x16x256xf32>
    %58 = vector.shape_cast %57 : vector<1x16x256xf32> to vector<16x256xf32>
    %59 = arith.mulf %58, %50 : vector<16x256xf32>
    %cst_33 = arith.constant dense<0.000000e+00> : vector<256xf32>
    %60 = vector.multi_reduction <add>, %59, %cst_33 [0] : vector<16x256xf32> to vector<256xf32>
    %61 = vector.shape_cast %60 : vector<256xf32> to vector<1x256xf32>
    %c1_34 = arith.constant 1 : index
    %c0_35 = arith.constant 0 : index
    %62 = vector.load %arg7[%c1_34, %c0_35] : memref<64x256xf32, #tpu.memory_space<vmem>>, vector<1x256xf32>
    tpu.vector_store %arg7[%c1_34, %c0_35], %61 {strides = array<i32>} : memref<64x256xf32, #tpu.memory_space<vmem>>, vector<1x256xf32>,
    %63 = vector.extract_strided_slice %24 {offsets = [2, 0, 0], sizes = [1, 16, 256], strides = [1, 1, 1]} : vector<4x16x256xf32> to vector<1x16x256xf32>
    %64 = vector.shape_cast %63 : vector<1x16x256xf32> to vector<16x256xf32>
    %65 = arith.mulf %64, %50 : vector<16x256xf32>
    %cst_36 = arith.constant dense<0.000000e+00> : vector<256xf32>
    %66 = vector.multi_reduction <add>, %65, %cst_36 [0] : vector<16x256xf32> to vector<256xf32>
    %67 = vector.shape_cast %66 : vector<256xf32> to vector<1x256xf32>
    %c2_37 = arith.constant 2 : index
    %c0_38 = arith.constant 0 : index
    %68 = vector.load %arg7[%c2_37, %c0_38] : memref<64x256xf32, #tpu.memory_space<vmem>>, vector<1x256xf32>
    tpu.vector_store %arg7[%c2_37, %c0_38], %67 {strides = array<i32>} : memref<64x256xf32, #tpu.memory_space<vmem>>, vector<1x256xf32>,
    %69 = vector.extract_strided_slice %24 {offsets = [3, 0, 0], sizes = [1, 16, 256], strides = [1, 1, 1]} : vector<4x16x256xf32> to vector<1x16x256xf32>
    %70 = vector.shape_cast %69 : vector<1x16x256xf32> to vector<16x256xf32>
    %71 = arith.mulf %70, %50 : vector<16x256xf32>
    %cst_39 = arith.constant dense<0.000000e+00> : vector<256xf32>
    %72 = vector.multi_reduction <add>, %71, %cst_39 [0] : vector<16x256xf32> to vector<256xf32>
    %73 = vector.shape_cast %72 : vector<256xf32> to vector<1x256xf32>
    %c3_40 = arith.constant 3 : index
    %c0_41 = arith.constant 0 : index
    %74 = vector.load %arg7[%c3_40, %c0_41] : memref<64x256xf32, #tpu.memory_space<vmem>>, vector<1x256xf32>
    tpu.vector_store %arg7[%c3_40, %c0_41], %73 {strides = array<i32>} : memref<64x256xf32, #tpu.memory_space<vmem>>, vector<1x256xf32>,
    %c0_42 = arith.constant 0 : index
    %c1_43 = arith.constant 1 : index
    %75 = memref.load %arg1[%c0_42, %c1_43] : memref<4x15xf32, #tpu.memory_space<smem>>
    %c1_44 = arith.constant 1 : index
    %c1_45 = arith.constant 1 : index
    %76 = memref.load %arg1[%c1_44, %c1_45] : memref<4x15xf32, #tpu.memory_space<smem>>
    %c2_46 = arith.constant 2 : index
    %c1_47 = arith.constant 1 : index
    %77 = memref.load %arg1[%c2_46, %c1_47] : memref<4x15xf32, #tpu.memory_space<smem>>
    %c3_48 = arith.constant 3 : index
    %c1_49 = arith.constant 1 : index
    %78 = memref.load %arg1[%c3_48, %c1_49] : memref<4x15xf32, #tpu.memory_space<smem>>
    %79 = vector.broadcast %75 : f32 to vector<16x256xf32>
    %80 = arith.mulf %5, %79 : vector<16x256xf32>
    %81 = vector.broadcast %76 : f32 to vector<16x256xf32>
    %82 = arith.mulf %11, %81 : vector<16x256xf32>
    %83 = arith.addf %80, %82 : vector<16x256xf32>
    %84 = vector.broadcast %77 : f32 to vector<16x256xf32>
    %85 = arith.mulf %17, %84 : vector<16x256xf32>
    %86 = arith.addf %83, %85 : vector<16x256xf32>
    %87 = arith.addf %22, %86 : vector<16x256xf32>
    %88 = vector.broadcast %78 : f32 to vector<16x256xf32>
    %89 = arith.addf %87, %88 : vector<16x256xf32>
    %cst_50 = arith.constant 0.000000e+00 : f32
    %90 = vector.broadcast %cst_50 : f32 to vector<16x256xf32>
    %91 = arith.maximumf %89, %90 : vector<16x256xf32>
    %92 = math.sqrt %91 : vector<16x256xf32>
    %cst_51 = arith.constant 1.000000e+01 : f32
    %93 = vector.broadcast %cst_51 : f32 to vector<16x256xf32>
    %94 = arith.mulf %92, %93 : vector<16x256xf32>
    %cst_52 = arith.constant 1.000000e+00 : f32
    %95 = vector.broadcast %cst_52 : f32 to vector<16x256xf32>
    %96 = arith.subf %95, %94 : vector<16x256xf32>
    %cst_53 = arith.constant 0.000000e+00 : f32
    %97 = vector.broadcast %cst_53 : f32 to vector<16x256xf32>
    %98 = arith.maximumf %96, %97 : vector<16x256xf32>
    %99 = vector.extract_strided_slice %24 {offsets = [0, 0, 0], sizes = [1, 16, 256], strides = [1, 1, 1]} : vector<4x16x256xf32> to vector<1x16x256xf32>
    %100 = vector.shape_cast %99 : vector<1x16x256xf32> to vector<16x256xf32>
    %101 = arith.mulf %100, %98 : vector<16x256xf32>
    %cst_54 = arith.constant dense<0.000000e+00> : vector<256xf32>
    %102 = vector.multi_reduction <add>, %101, %cst_54 [0] : vector<16x256xf32> to vector<256xf32>
    %103 = vector.shape_cast %102 : vector<256xf32> to vector<1x256xf32>
    %c4 = arith.constant 4 : index
    %c0_55 = arith.constant 0 : index
    %104 = vector.load %arg7[%c4, %c0_55] : memref<64x256xf32, #tpu.memory_space<vmem>>, vector<1x256xf32>
    tpu.vector_store %arg7[%c4, %c0_55], %103 {strides = array<i32>} : memref<64x256xf32, #tpu.memory_space<vmem>>, vector<1x256xf32>,
    %105 = vector.extract_strided_slice %24 {offsets = [1, 0, 0], sizes = [1, 16, 256], strides = [1, 1, 1]} : vector<4x16x256xf32> to vector<1x16x256xf32>
    %106 = vector.shape_cast %105 : vector<1x16x256xf32> to vector<16x256xf32>
    %107 = arith.mulf %106, %98 : vector<16x256xf32>
    %cst_56 = arith.constant dense<0.000000e+00> : vector<256xf32>
    %108 = vector.multi_reduction <add>, %107, %cst_56 [0] : vector<16x256xf32> to vector<256xf32>
    %109 = vector.shape_cast %108 : vector<256xf32> to vector<1x256xf32>
    %c5 = arith.constant 5 : index
    %c0_57 = arith.constant 0 : index
    %110 = vector.load %arg7[%c5, %c0_57] : memref<64x256xf32, #tpu.memory_space<vmem>>, vector<1x256xf32>
    tpu.vector_store %arg7[%c5, %c0_57], %109 {strides = array<i32>} : memref<64x256xf32, #tpu.memory_space<vmem>>, vector<1x256xf32>,
    %111 = vector.extract_strided_slice %24 {offsets = [2, 0, 0], sizes = [1, 16, 256], strides = [1, 1, 1]} : vector<4x16x256xf32> to vector<1x16x256xf32>
    %112 = vector.shape_cast %111 : vector<1x16x256xf32> to vector<16x256xf32>
    %113 = arith.mulf %112, %98 : vector<16x256xf32>
    %cst_58 = arith.constant dense<0.000000e+00> : vector<256xf32>
    %114 = vector.multi_reduction <add>, %113, %cst_58 [0] : vector<16x256xf32> to vector<256xf32>
    %115 = vector.shape_cast %114 : vector<256xf32> to vector<1x256xf32>
    %c6 = arith.constant 6 : index
    %c0_59 = arith.constant 0 : index
    %116 = vector.load %arg7[%c6, %c0_59] : memref<64x256xf32, #tpu.memory_space<vmem>>, vector<1x256xf32>
    tpu.vector_store %arg7[%c6, %c0_59], %115 {strides = array<i32>} : memref<64x256xf32, #tpu.memory_space<vmem>>, vector<1x256xf32>,
    %117 = vector.extract_strided_slice %24 {offsets = [3, 0, 0], sizes = [1, 16, 256], strides = [1, 1, 1]} : vector<4x16x256xf32> to vector<1x16x256xf32>
    %118 = vector.shape_cast %117 : vector<1x16x256xf32> to vector<16x256xf32>
    %119 = arith.mulf %118, %98 : vector<16x256xf32>
    %cst_60 = arith.constant dense<0.000000e+00> : vector<256xf32>
    %120 = vector.multi_reduction <add>, %119, %cst_60 [0] : vector<16x256xf32> to vector<256xf32>
    %121 = vector.shape_cast %120 : vector<256xf32> to vector<1x256xf32>
    %c7 = arith.constant 7 : index
    %c0_61 = arith.constant 0 : index
    %122 = vector.load %arg7[%c7, %c0_61] : memref<64x256xf32, #tpu.memory_space<vmem>>, vector<1x256xf32>
    tpu.vector_store %arg7[%c7, %c0_61], %121 {strides = array<i32>} : memref<64x256xf32, #tpu.memory_space<vmem>>, vector<1x256xf32>,
    %c0_62 = arith.constant 0 : index
    %c2_63 = arith.constant 2 : index
    %123 = memref.load %arg1[%c0_62, %c2_63] : memref<4x15xf32, #tpu.memory_space<smem>>
    %c1_64 = arith.constant 1 : index
    %c2_65 = arith.constant 2 : index
    %124 = memref.load %arg1[%c1_64, %c2_65] : memref<4x15xf32, #tpu.memory_space<smem>>
    %c2_66 = arith.constant 2 : index
    %c2_67 = arith.constant 2 : index
    %125 = memref.load %arg1[%c2_66, %c2_67] : memref<4x15xf32, #tpu.memory_space<smem>>
    %c3_68 = arith.constant 3 : index
    %c2_69 = arith.constant 2 : index
    %126 = memref.load %arg1[%c3_68, %c2_69] : memref<4x15xf32, #tpu.memory_space<smem>>
    %127 = vector.broadcast %123 : f32 to vector<16x256xf32>
    %128 = arith.mulf %5, %127 : vector<16x256xf32>
    %129 = vector.broadcast %124 : f32 to vector<16x256xf32>
    %130 = arith.mulf %11, %129 : vector<16x256xf32>
    %131 = arith.addf %128, %130 : vector<16x256xf32>
    %132 = vector.broadcast %125 : f32 to vector<16x256xf32>
    %133 = arith.mulf %17, %132 : vector<16x256xf32>
    %134 = arith.addf %131, %133 : vector<16x256xf32>
    %135 = arith.addf %22, %134 : vector<16x256xf32>
    %136 = vector.broadcast %126 : f32 to vector<16x256xf32>
    %137 = arith.addf %135, %136 : vector<16x256xf32>
    %cst_70 = arith.constant 0.000000e+00 : f32
    %138 = vector.broadcast %cst_70 : f32 to vector<16x256xf32>
    %139 = arith.maximumf %137, %138 : vector<16x256xf32>
    %140 = math.sqrt %139 : vector<16x256xf32>
    %cst_71 = arith.constant 1.000000e+01 : f32
    %141 = vector.broadcast %cst_71 : f32 to vector<16x256xf32>
    %142 = arith.mulf %140, %141 : vector<16x256xf32>
    %cst_72 = arith.constant 1.000000e+00 : f32
    %143 = vector.broadcast %cst_72 : f32 to vector<16x256xf32>
    %144 = arith.subf %143, %142 : vector<16x256xf32>
    %cst_73 = arith.constant 0.000000e+00 : f32
    %145 = vector.broadcast %cst_73 : f32 to vector<16x256xf32>
    %146 = arith.maximumf %144, %145 : vector<16x256xf32>
    %147 = vector.extract_strided_slice %24 {offsets = [0, 0, 0], sizes = [1, 16, 256], strides = [1, 1, 1]} : vector<4x16x256xf32> to vector<1x16x256xf32>
    %148 = vector.shape_cast %147 : vector<1x16x256xf32> to vector<16x256xf32>
    %149 = arith.mulf %148, %146 : vector<16x256xf32>
    %cst_74 = arith.constant dense<0.000000e+00> : vector<256xf32>
    %150 = vector.multi_reduction <add>, %149, %cst_74 [0] : vector<16x256xf32> to vector<256xf32>
    %151 = vector.shape_cast %150 : vector<256xf32> to vector<1x256xf32>
    %c8 = arith.constant 8 : index
    %c0_75 = arith.constant 0 : index
    %152 = vector.load %arg7[%c8, %c0_75] : memref<64x256xf32, #tpu.memory_space<vmem>>, vector<1x256xf32>
    tpu.vector_store %arg7[%c8, %c0_75], %151 {strides = array<i32>} : memref<64x256xf32, #tpu.memory_space<vmem>>, vector<1x256xf32>,
    %153 = vector.extract_strided_slice %24 {offsets = [1, 0, 0], sizes = [1, 16, 256], strides = [1, 1, 1]} : vector<4x16x256xf32> to vector<1x16x256xf32>
    %154 = vector.shape_cast %153 : vector<1x16x256xf32> to vector<16x256xf32>
    %155 = arith.mulf %154, %146 : vector<16x256xf32>
    %cst_76 = arith.constant dense<0.000000e+00> : vector<256xf32>
    %156 = vector.multi_reduction <add>, %155, %cst_76 [0] : vector<16x256xf32> to vector<256xf32>
    %157 = vector.shape_cast %156 : vector<256xf32> to vector<1x256xf32>
    %c9 = arith.constant 9 : index
    %c0_77 = arith.constant 0 : index
    %158 = vector.load %arg7[%c9, %c0_77] : memref<64x256xf32, #tpu.memory_space<vmem>>, vector<1x256xf32>
    tpu.vector_store %arg7[%c9, %c0_77], %157 {strides = array<i32>} : memref<64x256xf32, #tpu.memory_space<vmem>>, vector<1x256xf32>,
    %159 = vector.extract_strided_slice %24 {offsets = [2, 0, 0], sizes = [1, 16, 256], strides = [1, 1, 1]} : vector<4x16x256xf32> to vector<1x16x256xf32>
    %160 = vector.shape_cast %159 : vector<1x16x256xf32> to vector<16x256xf32>
    %161 = arith.mulf %160, %146 : vector<16x256xf32>
    %cst_78 = arith.constant dense<0.000000e+00> : vector<256xf32>
    %162 = vector.multi_reduction <add>, %161, %cst_78 [0] : vector<16x256xf32> to vector<256xf32>
    %163 = vector.shape_cast %162 : vector<256xf32> to vector<1x256xf32>
    %c10 = arith.constant 10 : index
    %c0_79 = arith.constant 0 : index
    %164 = vector.load %arg7[%c10, %c0_79] : memref<64x256xf32, #tpu.memory_space<vmem>>, vector<1x256xf32>
    tpu.vector_store %arg7[%c10, %c0_79], %163 {strides = array<i32>} : memref<64x256xf32, #tpu.memory_space<vmem>>, vector<1x256xf32>,
    %165 = vector.extract_strided_slice %24 {offsets = [3, 0, 0], sizes = [1, 16, 256], strides = [1, 1, 1]} : vector<4x16x256xf32> to vector<1x16x256xf32>
    %166 = vector.shape_cast %165 : vector<1x16x256xf32> to vector<16x256xf32>
    %167 = arith.mulf %166, %146 : vector<16x256xf32>
    %cst_80 = arith.constant dense<0.000000e+00> : vector<256xf32>
    %168 = vector.multi_reduction <add>, %167, %cst_80 [0] : vector<16x256xf32> to vector<256xf32>
    %169 = vector.shape_cast %168 : vector<256xf32> to vector<1x256xf32>
    %c11 = arith.constant 11 : index
    %c0_81 = arith.constant 0 : index
    %170 = vector.load %arg7[%c11, %c0_81] : memref<64x256xf32, #tpu.memory_space<vmem>>, vector<1x256xf32>
    tpu.vector_store %arg7[%c11, %c0_81], %169 {strides = array<i32>} : memref<64x256xf32, #tpu.memory_space<vmem>>, vector<1x256xf32>,
    %c0_82 = arith.constant 0 : index
    %c3_83 = arith.constant 3 : index
    %171 = memref.load %arg1[%c0_82, %c3_83] : memref<4x15xf32, #tpu.memory_space<smem>>
    %c1_84 = arith.constant 1 : index
    %c3_85 = arith.constant 3 : index
    %172 = memref.load %arg1[%c1_84, %c3_85] : memref<4x15xf32, #tpu.memory_space<smem>>
    %c2_86 = arith.constant 2 : index
    %c3_87 = arith.constant 3 : index
    %173 = memref.load %arg1[%c2_86, %c3_87] : memref<4x15xf32, #tpu.memory_space<smem>>
    %c3_88 = arith.constant 3 : index
    %c3_89 = arith.constant 3 : index
    %174 = memref.load %arg1[%c3_88, %c3_89] : memref<4x15xf32, #tpu.memory_space<smem>>
    %175 = vector.broadcast %171 : f32 to vector<16x256xf32>
    %176 = arith.mulf %5, %175 : vector<16x256xf32>
    %177 = vector.broadcast %172 : f32 to vector<16x256xf32>
    %178 = arith.mulf %11, %177 : vector<16x256xf32>
    %179 = arith.addf %176, %178 : vector<16x256xf32>
    %180 = vector.broadcast %173 : f32 to vector<16x256xf32>
    %181 = arith.mulf %17, %180 : vector<16x256xf32>
    %182 = arith.addf %179, %181 : vector<16x256xf32>
    %183 = arith.addf %22, %182 : vector<16x256xf32>
    %184 = vector.broadcast %174 : f32 to vector<16x256xf32>
    %185 = arith.addf %183, %184 : vector<16x256xf32>
    %cst_90 = arith.constant 0.000000e+00 : f32
    %186 = vector.broadcast %cst_90 : f32 to vector<16x256xf32>
    %187 = arith.maximumf %185, %186 : vector<16x256xf32>
    %188 = math.sqrt %187 : vector<16x256xf32>
    %cst_91 = arith.constant 1.000000e+01 : f32
    %189 = vector.broadcast %cst_91 : f32 to vector<16x256xf32>
    %190 = arith.mulf %188, %189 : vector<16x256xf32>
    %cst_92 = arith.constant 1.000000e+00 : f32
    %191 = vector.broadcast %cst_92 : f32 to vector<16x256xf32>
    %192 = arith.subf %191, %190 : vector<16x256xf32>
    %cst_93 = arith.constant 0.000000e+00 : f32
    %193 = vector.broadcast %cst_93 : f32 to vector<16x256xf32>
    %194 = arith.maximumf %192, %193 : vector<16x256xf32>
    %195 = vector.extract_strided_slice %24 {offsets = [0, 0, 0], sizes = [1, 16, 256], strides = [1, 1, 1]} : vector<4x16x256xf32> to vector<1x16x256xf32>
    %196 = vector.shape_cast %195 : vector<1x16x256xf32> to vector<16x256xf32>
    %197 = arith.mulf %196, %194 : vector<16x256xf32>
    %cst_94 = arith.constant dense<0.000000e+00> : vector<256xf32>
    %198 = vector.multi_reduction <add>, %197, %cst_94 [0] : vector<16x256xf32> to vector<256xf32>
    %199 = vector.shape_cast %198 : vector<256xf32> to vector<1x256xf32>
    %c12 = arith.constant 12 : index
    %c0_95 = arith.constant 0 : index
    %200 = vector.load %arg7[%c12, %c0_95] : memref<64x256xf32, #tpu.memory_space<vmem>>, vector<1x256xf32>
    tpu.vector_store %arg7[%c12, %c0_95], %199 {strides = array<i32>} : memref<64x256xf32, #tpu.memory_space<vmem>>, vector<1x256xf32>,
    %201 = vector.extract_strided_slice %24 {offsets = [1, 0, 0], sizes = [1, 16, 256], strides = [1, 1, 1]} : vector<4x16x256xf32> to vector<1x16x256xf32>
    %202 = vector.shape_cast %201 : vector<1x16x256xf32> to vector<16x256xf32>
    %203 = arith.mulf %202, %194 : vector<16x256xf32>
    %cst_96 = arith.constant dense<0.000000e+00> : vector<256xf32>
    %204 = vector.multi_reduction <add>, %203, %cst_96 [0] : vector<16x256xf32> to vector<256xf32>
    %205 = vector.shape_cast %204 : vector<256xf32> to vector<1x256xf32>
    %c13 = arith.constant 13 : index
    %c0_97 = arith.constant 0 : index
    %206 = vector.load %arg7[%c13, %c0_97] : memref<64x256xf32, #tpu.memory_space<vmem>>, vector<1x256xf32>
    tpu.vector_store %arg7[%c13, %c0_97], %205 {strides = array<i32>} : memref<64x256xf32, #tpu.memory_space<vmem>>, vector<1x256xf32>,
    %207 = vector.extract_strided_slice %24 {offsets = [2, 0, 0], sizes = [1, 16, 256], strides = [1, 1, 1]} : vector<4x16x256xf32> to vector<1x16x256xf32>
    %208 = vector.shape_cast %207 : vector<1x16x256xf32> to vector<16x256xf32>
    %209 = arith.mulf %208, %194 : vector<16x256xf32>
    %cst_98 = arith.constant dense<0.000000e+00> : vector<256xf32>
    %210 = vector.multi_reduction <add>, %209, %cst_98 [0] : vector<16x256xf32> to vector<256xf32>
    %211 = vector.shape_cast %210 : vector<256xf32> to vector<1x256xf32>
    %c14 = arith.constant 14 : index
    %c0_99 = arith.constant 0 : index
    %212 = vector.load %arg7[%c14, %c0_99] : memref<64x256xf32, #tpu.memory_space<vmem>>, vector<1x256xf32>
    tpu.vector_store %arg7[%c14, %c0_99], %211 {strides = array<i32>} : memref<64x256xf32, #tpu.memory_space<vmem>>, vector<1x256xf32>,
    %213 = vector.extract_strided_slice %24 {offsets = [3, 0, 0], sizes = [1, 16, 256], strides = [1, 1, 1]} : vector<4x16x256xf32> to vector<1x16x256xf32>
    %214 = vector.shape_cast %213 : vector<1x16x256xf32> to vector<16x256xf32>
    %215 = arith.mulf %214, %194 : vector<16x256xf32>
    %cst_100 = arith.constant dense<0.000000e+00> : vector<256xf32>
    %216 = vector.multi_reduction <add>, %215, %cst_100 [0] : vector<16x256xf32> to vector<256xf32>
    %217 = vector.shape_cast %216 : vector<256xf32> to vector<1x256xf32>
    %c15 = arith.constant 15 : index
    %c0_101 = arith.constant 0 : index
    %218 = vector.load %arg7[%c15, %c0_101] : memref<64x256xf32, #tpu.memory_space<vmem>>, vector<1x256xf32>
    tpu.vector_store %arg7[%c15, %c0_101], %217 {strides = array<i32>} : memref<64x256xf32, #tpu.memory_space<vmem>>, vector<1x256xf32>,
    %c0_102 = arith.constant 0 : index
    %c4_103 = arith.constant 4 : index
    %219 = memref.load %arg1[%c0_102, %c4_103] : memref<4x15xf32, #tpu.memory_space<smem>>
    %c1_104 = arith.constant 1 : index
    %c4_105 = arith.constant 4 : index
    %220 = memref.load %arg1[%c1_104, %c4_105] : memref<4x15xf32, #tpu.memory_space<smem>>
    %c2_106 = arith.constant 2 : index
    %c4_107 = arith.constant 4 : index
    %221 = memref.load %arg1[%c2_106, %c4_107] : memref<4x15xf32, #tpu.memory_space<smem>>
    %c3_108 = arith.constant 3 : index
    %c4_109 = arith.constant 4 : index
    %222 = memref.load %arg1[%c3_108, %c4_109] : memref<4x15xf32, #tpu.memory_space<smem>>
    %223 = vector.broadcast %219 : f32 to vector<16x256xf32>
    %224 = arith.mulf %5, %223 : vector<16x256xf32>
    %225 = vector.broadcast %220 : f32 to vector<16x256xf32>
    %226 = arith.mulf %11, %225 : vector<16x256xf32>
    %227 = arith.addf %224, %226 : vector<16x256xf32>
    %228 = vector.broadcast %221 : f32 to vector<16x256xf32>
    %229 = arith.mulf %17, %228 : vector<16x256xf32>
    %230 = arith.addf %227, %229 : vector<16x256xf32>
    %231 = arith.addf %22, %230 : vector<16x256xf32>
    %232 = vector.broadcast %222 : f32 to vector<16x256xf32>
    %233 = arith.addf %231, %232 : vector<16x256xf32>
    %cst_110 = arith.constant 0.000000e+00 : f32
    %234 = vector.broadcast %cst_110 : f32 to vector<16x256xf32>
    %235 = arith.maximumf %233, %234 : vector<16x256xf32>
    %236 = math.sqrt %235 : vector<16x256xf32>
    %cst_111 = arith.constant 1.000000e+01 : f32
    %237 = vector.broadcast %cst_111 : f32 to vector<16x256xf32>
    %238 = arith.mulf %236, %237 : vector<16x256xf32>
    %cst_112 = arith.constant 1.000000e+00 : f32
    %239 = vector.broadcast %cst_112 : f32 to vector<16x256xf32>
    %240 = arith.subf %239, %238 : vector<16x256xf32>
    %cst_113 = arith.constant 0.000000e+00 : f32
    %241 = vector.broadcast %cst_113 : f32 to vector<16x256xf32>
    %242 = arith.maximumf %240, %241 : vector<16x256xf32>
    %243 = vector.extract_strided_slice %24 {offsets = [0, 0, 0], sizes = [1, 16, 256], strides = [1, 1, 1]} : vector<4x16x256xf32> to vector<1x16x256xf32>
    %244 = vector.shape_cast %243 : vector<1x16x256xf32> to vector<16x256xf32>
    %245 = arith.mulf %244, %242 : vector<16x256xf32>
    %cst_114 = arith.constant dense<0.000000e+00> : vector<256xf32>
    %246 = vector.multi_reduction <add>, %245, %cst_114 [0] : vector<16x256xf32> to vector<256xf32>
    %247 = vector.shape_cast %246 : vector<256xf32> to vector<1x256xf32>
    %c16 = arith.constant 16 : index
    %c0_115 = arith.constant 0 : index
    %248 = vector.load %arg7[%c16, %c0_115] : memref<64x256xf32, #tpu.memory_space<vmem>>, vector<1x256xf32>
    tpu.vector_store %arg7[%c16, %c0_115], %247 {strides = array<i32>} : memref<64x256xf32, #tpu.memory_space<vmem>>, vector<1x256xf32>,
    %249 = vector.extract_strided_slice %24 {offsets = [1, 0, 0], sizes = [1, 16, 256], strides = [1, 1, 1]} : vector<4x16x256xf32> to vector<1x16x256xf32>
    %250 = vector.shape_cast %249 : vector<1x16x256xf32> to vector<16x256xf32>
    %251 = arith.mulf %250, %242 : vector<16x256xf32>
    %cst_116 = arith.constant dense<0.000000e+00> : vector<256xf32>
    %252 = vector.multi_reduction <add>, %251, %cst_116 [0] : vector<16x256xf32> to vector<256xf32>
    %253 = vector.shape_cast %252 : vector<256xf32> to vector<1x256xf32>
    %c17 = arith.constant 17 : index
    %c0_117 = arith.constant 0 : index
    %254 = vector.load %arg7[%c17, %c0_117] : memref<64x256xf32, #tpu.memory_space<vmem>>, vector<1x256xf32>
    tpu.vector_store %arg7[%c17, %c0_117], %253 {strides = array<i32>} : memref<64x256xf32, #tpu.memory_space<vmem>>, vector<1x256xf32>,
    %255 = vector.extract_strided_slice %24 {offsets = [2, 0, 0], sizes = [1, 16, 256], strides = [1, 1, 1]} : vector<4x16x256xf32> to vector<1x16x256xf32>
    %256 = vector.shape_cast %255 : vector<1x16x256xf32> to vector<16x256xf32>
    %257 = arith.mulf %256, %242 : vector<16x256xf32>
    %cst_118 = arith.constant dense<0.000000e+00> : vector<256xf32>
    %258 = vector.multi_reduction <add>, %257, %cst_118 [0] : vector<16x256xf32> to vector<256xf32>
    %259 = vector.shape_cast %258 : vector<256xf32> to vector<1x256xf32>
    %c18 = arith.constant 18 : index
    %c0_119 = arith.constant 0 : index
    %260 = vector.load %arg7[%c18, %c0_119] : memref<64x256xf32, #tpu.memory_space<vmem>>, vector<1x256xf32>
    tpu.vector_store %arg7[%c18, %c0_119], %259 {strides = array<i32>} : memref<64x256xf32, #tpu.memory_space<vmem>>, vector<1x256xf32>,
    %261 = vector.extract_strided_slice %24 {offsets = [3, 0, 0], sizes = [1, 16, 256], strides = [1, 1, 1]} : vector<4x16x256xf32> to vector<1x16x256xf32>
    %262 = vector.shape_cast %261 : vector<1x16x256xf32> to vector<16x256xf32>
    %263 = arith.mulf %262, %242 : vector<16x256xf32>
    %cst_120 = arith.constant dense<0.000000e+00> : vector<256xf32>
    %264 = vector.multi_reduction <add>, %263, %cst_120 [0] : vector<16x256xf32> to vector<256xf32>
    %265 = vector.shape_cast %264 : vector<256xf32> to vector<1x256xf32>
    %c19 = arith.constant 19 : index
    %c0_121 = arith.constant 0 : index
    %266 = vector.load %arg7[%c19, %c0_121] : memref<64x256xf32, #tpu.memory_space<vmem>>, vector<1x256xf32>
    tpu.vector_store %arg7[%c19, %c0_121], %265 {strides = array<i32>} : memref<64x256xf32, #tpu.memory_space<vmem>>, vector<1x256xf32>,
    %c0_122 = arith.constant 0 : index
    %c5_123 = arith.constant 5 : index
    %267 = memref.load %arg1[%c0_122, %c5_123] : memref<4x15xf32, #tpu.memory_space<smem>>
    %c1_124 = arith.constant 1 : index
    %c5_125 = arith.constant 5 : index
    %268 = memref.load %arg1[%c1_124, %c5_125] : memref<4x15xf32, #tpu.memory_space<smem>>
    %c2_126 = arith.constant 2 : index
    %c5_127 = arith.constant 5 : index
    %269 = memref.load %arg1[%c2_126, %c5_127] : memref<4x15xf32, #tpu.memory_space<smem>>
    %c3_128 = arith.constant 3 : index
    %c5_129 = arith.constant 5 : index
    %270 = memref.load %arg1[%c3_128, %c5_129] : memref<4x15xf32, #tpu.memory_space<smem>>
    %271 = vector.broadcast %267 : f32 to vector<16x256xf32>
    %272 = arith.mulf %5, %271 : vector<16x256xf32>
    %273 = vector.broadcast %268 : f32 to vector<16x256xf32>
    %274 = arith.mulf %11, %273 : vector<16x256xf32>
    %275 = arith.addf %272, %274 : vector<16x256xf32>
    %276 = vector.broadcast %269 : f32 to vector<16x256xf32>
    %277 = arith.mulf %17, %276 : vector<16x256xf32>
    %278 = arith.addf %275, %277 : vector<16x256xf32>
    %279 = arith.addf %22, %278 : vector<16x256xf32>
    %280 = vector.broadcast %270 : f32 to vector<16x256xf32>
    %281 = arith.addf %279, %280 : vector<16x256xf32>
    %cst_130 = arith.constant 0.000000e+00 : f32
    %282 = vector.broadcast %cst_130 : f32 to vector<16x256xf32>
    %283 = arith.maximumf %281, %282 : vector<16x256xf32>
    %284 = math.sqrt %283 : vector<16x256xf32>
    %cst_131 = arith.constant 1.000000e+01 : f32
    %285 = vector.broadcast %cst_131 : f32 to vector<16x256xf32>
    %286 = arith.mulf %284, %285 : vector<16x256xf32>
    %cst_132 = arith.constant 1.000000e+00 : f32
    %287 = vector.broadcast %cst_132 : f32 to vector<16x256xf32>
    %288 = arith.subf %287, %286 : vector<16x256xf32>
    %cst_133 = arith.constant 0.000000e+00 : f32
    %289 = vector.broadcast %cst_133 : f32 to vector<16x256xf32>
    %290 = arith.maximumf %288, %289 : vector<16x256xf32>
    %291 = vector.extract_strided_slice %24 {offsets = [0, 0, 0], sizes = [1, 16, 256], strides = [1, 1, 1]} : vector<4x16x256xf32> to vector<1x16x256xf32>
    %292 = vector.shape_cast %291 : vector<1x16x256xf32> to vector<16x256xf32>
    %293 = arith.mulf %292, %290 : vector<16x256xf32>
    %cst_134 = arith.constant dense<0.000000e+00> : vector<256xf32>
    %294 = vector.multi_reduction <add>, %293, %cst_134 [0] : vector<16x256xf32> to vector<256xf32>
    %295 = vector.shape_cast %294 : vector<256xf32> to vector<1x256xf32>
    %c20 = arith.constant 20 : index
    %c0_135 = arith.constant 0 : index
    %296 = vector.load %arg7[%c20, %c0_135] : memref<64x256xf32, #tpu.memory_space<vmem>>, vector<1x256xf32>
    tpu.vector_store %arg7[%c20, %c0_135], %295 {strides = array<i32>} : memref<64x256xf32, #tpu.memory_space<vmem>>, vector<1x256xf32>,
    %297 = vector.extract_strided_slice %24 {offsets = [1, 0, 0], sizes = [1, 16, 256], strides = [1, 1, 1]} : vector<4x16x256xf32> to vector<1x16x256xf32>
    %298 = vector.shape_cast %297 : vector<1x16x256xf32> to vector<16x256xf32>
    %299 = arith.mulf %298, %290 : vector<16x256xf32>
    %cst_136 = arith.constant dense<0.000000e+00> : vector<256xf32>
    %300 = vector.multi_reduction <add>, %299, %cst_136 [0] : vector<16x256xf32> to vector<256xf32>
    %301 = vector.shape_cast %300 : vector<256xf32> to vector<1x256xf32>
    %c21 = arith.constant 21 : index
    %c0_137 = arith.constant 0 : index
    %302 = vector.load %arg7[%c21, %c0_137] : memref<64x256xf32, #tpu.memory_space<vmem>>, vector<1x256xf32>
    tpu.vector_store %arg7[%c21, %c0_137], %301 {strides = array<i32>} : memref<64x256xf32, #tpu.memory_space<vmem>>, vector<1x256xf32>,
    %303 = vector.extract_strided_slice %24 {offsets = [2, 0, 0], sizes = [1, 16, 256], strides = [1, 1, 1]} : vector<4x16x256xf32> to vector<1x16x256xf32>
    %304 = vector.shape_cast %303 : vector<1x16x256xf32> to vector<16x256xf32>
    %305 = arith.mulf %304, %290 : vector<16x256xf32>
    %cst_138 = arith.constant dense<0.000000e+00> : vector<256xf32>
    %306 = vector.multi_reduction <add>, %305, %cst_138 [0] : vector<16x256xf32> to vector<256xf32>
    %307 = vector.shape_cast %306 : vector<256xf32> to vector<1x256xf32>
    %c22 = arith.constant 22 : index
    %c0_139 = arith.constant 0 : index
    %308 = vector.load %arg7[%c22, %c0_139] : memref<64x256xf32, #tpu.memory_space<vmem>>, vector<1x256xf32>
    tpu.vector_store %arg7[%c22, %c0_139], %307 {strides = array<i32>} : memref<64x256xf32, #tpu.memory_space<vmem>>, vector<1x256xf32>,
    %309 = vector.extract_strided_slice %24 {offsets = [3, 0, 0], sizes = [1, 16, 256], strides = [1, 1, 1]} : vector<4x16x256xf32> to vector<1x16x256xf32>
    %310 = vector.shape_cast %309 : vector<1x16x256xf32> to vector<16x256xf32>
    %311 = arith.mulf %310, %290 : vector<16x256xf32>
    %cst_140 = arith.constant dense<0.000000e+00> : vector<256xf32>
    %312 = vector.multi_reduction <add>, %311, %cst_140 [0] : vector<16x256xf32> to vector<256xf32>
    %313 = vector.shape_cast %312 : vector<256xf32> to vector<1x256xf32>
    %c23 = arith.constant 23 : index
    %c0_141 = arith.constant 0 : index
    %314 = vector.load %arg7[%c23, %c0_141] : memref<64x256xf32, #tpu.memory_space<vmem>>, vector<1x256xf32>
    tpu.vector_store %arg7[%c23, %c0_141], %313 {strides = array<i32>} : memref<64x256xf32, #tpu.memory_space<vmem>>, vector<1x256xf32>,
    %c0_142 = arith.constant 0 : index
    %c6_143 = arith.constant 6 : index
    %315 = memref.load %arg1[%c0_142, %c6_143] : memref<4x15xf32, #tpu.memory_space<smem>>
    %c1_144 = arith.constant 1 : index
    %c6_145 = arith.constant 6 : index
    %316 = memref.load %arg1[%c1_144, %c6_145] : memref<4x15xf32, #tpu.memory_space<smem>>
    %c2_146 = arith.constant 2 : index
    %c6_147 = arith.constant 6 : index
    %317 = memref.load %arg1[%c2_146, %c6_147] : memref<4x15xf32, #tpu.memory_space<smem>>
    %c3_148 = arith.constant 3 : index
    %c6_149 = arith.constant 6 : index
    %318 = memref.load %arg1[%c3_148, %c6_149] : memref<4x15xf32, #tpu.memory_space<smem>>
    %319 = vector.broadcast %315 : f32 to vector<16x256xf32>
    %320 = arith.mulf %5, %319 : vector<16x256xf32>
    %321 = vector.broadcast %316 : f32 to vector<16x256xf32>
    %322 = arith.mulf %11, %321 : vector<16x256xf32>
    %323 = arith.addf %320, %322 : vector<16x256xf32>
    %324 = vector.broadcast %317 : f32 to vector<16x256xf32>
    %325 = arith.mulf %17, %324 : vector<16x256xf32>
    %326 = arith.addf %323, %325 : vector<16x256xf32>
    %327 = arith.addf %22, %326 : vector<16x256xf32>
    %328 = vector.broadcast %318 : f32 to vector<16x256xf32>
    %329 = arith.addf %327, %328 : vector<16x256xf32>
    %cst_150 = arith.constant 0.000000e+00 : f32
    %330 = vector.broadcast %cst_150 : f32 to vector<16x256xf32>
    %331 = arith.maximumf %329, %330 : vector<16x256xf32>
    %332 = math.sqrt %331 : vector<16x256xf32>
    %cst_151 = arith.constant 1.000000e+01 : f32
    %333 = vector.broadcast %cst_151 : f32 to vector<16x256xf32>
    %334 = arith.mulf %332, %333 : vector<16x256xf32>
    %cst_152 = arith.constant 1.000000e+00 : f32
    %335 = vector.broadcast %cst_152 : f32 to vector<16x256xf32>
    %336 = arith.subf %335, %334 : vector<16x256xf32>
    %cst_153 = arith.constant 0.000000e+00 : f32
    %337 = vector.broadcast %cst_153 : f32 to vector<16x256xf32>
    %338 = arith.maximumf %336, %337 : vector<16x256xf32>
    %339 = vector.extract_strided_slice %24 {offsets = [0, 0, 0], sizes = [1, 16, 256], strides = [1, 1, 1]} : vector<4x16x256xf32> to vector<1x16x256xf32>
    %340 = vector.shape_cast %339 : vector<1x16x256xf32> to vector<16x256xf32>
    %341 = arith.mulf %340, %338 : vector<16x256xf32>
    %cst_154 = arith.constant dense<0.000000e+00> : vector<256xf32>
    %342 = vector.multi_reduction <add>, %341, %cst_154 [0] : vector<16x256xf32> to vector<256xf32>
    %343 = vector.shape_cast %342 : vector<256xf32> to vector<1x256xf32>
    %c24 = arith.constant 24 : index
    %c0_155 = arith.constant 0 : index
    %344 = vector.load %arg7[%c24, %c0_155] : memref<64x256xf32, #tpu.memory_space<vmem>>, vector<1x256xf32>
    tpu.vector_store %arg7[%c24, %c0_155], %343 {strides = array<i32>} : memref<64x256xf32, #tpu.memory_space<vmem>>, vector<1x256xf32>,
    %345 = vector.extract_strided_slice %24 {offsets = [1, 0, 0], sizes = [1, 16, 256], strides = [1, 1, 1]} : vector<4x16x256xf32> to vector<1x16x256xf32>
    %346 = vector.shape_cast %345 : vector<1x16x256xf32> to vector<16x256xf32>
    %347 = arith.mulf %346, %338 : vector<16x256xf32>
    %cst_156 = arith.constant dense<0.000000e+00> : vector<256xf32>
    %348 = vector.multi_reduction <add>, %347, %cst_156 [0] : vector<16x256xf32> to vector<256xf32>
    %349 = vector.shape_cast %348 : vector<256xf32> to vector<1x256xf32>
    %c25 = arith.constant 25 : index
    %c0_157 = arith.constant 0 : index
    %350 = vector.load %arg7[%c25, %c0_157] : memref<64x256xf32, #tpu.memory_space<vmem>>, vector<1x256xf32>
    tpu.vector_store %arg7[%c25, %c0_157], %349 {strides = array<i32>} : memref<64x256xf32, #tpu.memory_space<vmem>>, vector<1x256xf32>,
    %351 = vector.extract_strided_slice %24 {offsets = [2, 0, 0], sizes = [1, 16, 256], strides = [1, 1, 1]} : vector<4x16x256xf32> to vector<1x16x256xf32>
    %352 = vector.shape_cast %351 : vector<1x16x256xf32> to vector<16x256xf32>
    %353 = arith.mulf %352, %338 : vector<16x256xf32>
    %cst_158 = arith.constant dense<0.000000e+00> : vector<256xf32>
    %354 = vector.multi_reduction <add>, %353, %cst_158 [0] : vector<16x256xf32> to vector<256xf32>
    %355 = vector.shape_cast %354 : vector<256xf32> to vector<1x256xf32>
    %c26 = arith.constant 26 : index
    %c0_159 = arith.constant 0 : index
    %356 = vector.load %arg7[%c26, %c0_159] : memref<64x256xf32, #tpu.memory_space<vmem>>, vector<1x256xf32>
    tpu.vector_store %arg7[%c26, %c0_159], %355 {strides = array<i32>} : memref<64x256xf32, #tpu.memory_space<vmem>>, vector<1x256xf32>,
    %357 = vector.extract_strided_slice %24 {offsets = [3, 0, 0], sizes = [1, 16, 256], strides = [1, 1, 1]} : vector<4x16x256xf32> to vector<1x16x256xf32>
    %358 = vector.shape_cast %357 : vector<1x16x256xf32> to vector<16x256xf32>
    %359 = arith.mulf %358, %338 : vector<16x256xf32>
    %cst_160 = arith.constant dense<0.000000e+00> : vector<256xf32>
    %360 = vector.multi_reduction <add>, %359, %cst_160 [0] : vector<16x256xf32> to vector<256xf32>
    %361 = vector.shape_cast %360 : vector<256xf32> to vector<1x256xf32>
    %c27 = arith.constant 27 : index
    %c0_161 = arith.constant 0 : index
    %362 = vector.load %arg7[%c27, %c0_161] : memref<64x256xf32, #tpu.memory_space<vmem>>, vector<1x256xf32>
    tpu.vector_store %arg7[%c27, %c0_161], %361 {strides = array<i32>} : memref<64x256xf32, #tpu.memory_space<vmem>>, vector<1x256xf32>,
    %c0_162 = arith.constant 0 : index
    %c7_163 = arith.constant 7 : index
    %363 = memref.load %arg1[%c0_162, %c7_163] : memref<4x15xf32, #tpu.memory_space<smem>>
    %c1_164 = arith.constant 1 : index
    %c7_165 = arith.constant 7 : index
    %364 = memref.load %arg1[%c1_164, %c7_165] : memref<4x15xf32, #tpu.memory_space<smem>>
    %c2_166 = arith.constant 2 : index
    %c7_167 = arith.constant 7 : index
    %365 = memref.load %arg1[%c2_166, %c7_167] : memref<4x15xf32, #tpu.memory_space<smem>>
    %c3_168 = arith.constant 3 : index
    %c7_169 = arith.constant 7 : index
    %366 = memref.load %arg1[%c3_168, %c7_169] : memref<4x15xf32, #tpu.memory_space<smem>>
    %367 = vector.broadcast %363 : f32 to vector<16x256xf32>
    %368 = arith.mulf %5, %367 : vector<16x256xf32>
    %369 = vector.broadcast %364 : f32 to vector<16x256xf32>
    %370 = arith.mulf %11, %369 : vector<16x256xf32>
    %371 = arith.addf %368, %370 : vector<16x256xf32>
    %372 = vector.broadcast %365 : f32 to vector<16x256xf32>
    %373 = arith.mulf %17, %372 : vector<16x256xf32>
    %374 = arith.addf %371, %373 : vector<16x256xf32>
    %375 = arith.addf %22, %374 : vector<16x256xf32>
    %376 = vector.broadcast %366 : f32 to vector<16x256xf32>
    %377 = arith.addf %375, %376 : vector<16x256xf32>
    %cst_170 = arith.constant 0.000000e+00 : f32
    %378 = vector.broadcast %cst_170 : f32 to vector<16x256xf32>
    %379 = arith.maximumf %377, %378 : vector<16x256xf32>
    %380 = math.sqrt %379 : vector<16x256xf32>
    %cst_171 = arith.constant 1.000000e+01 : f32
    %381 = vector.broadcast %cst_171 : f32 to vector<16x256xf32>
    %382 = arith.mulf %380, %381 : vector<16x256xf32>
    %cst_172 = arith.constant 1.000000e+00 : f32
    %383 = vector.broadcast %cst_172 : f32 to vector<16x256xf32>
    %384 = arith.subf %383, %382 : vector<16x256xf32>
    %cst_173 = arith.constant 0.000000e+00 : f32
    %385 = vector.broadcast %cst_173 : f32 to vector<16x256xf32>
    %386 = arith.maximumf %384, %385 : vector<16x256xf32>
    %387 = vector.extract_strided_slice %24 {offsets = [0, 0, 0], sizes = [1, 16, 256], strides = [1, 1, 1]} : vector<4x16x256xf32> to vector<1x16x256xf32>
    %388 = vector.shape_cast %387 : vector<1x16x256xf32> to vector<16x256xf32>
    %389 = arith.mulf %388, %386 : vector<16x256xf32>
    %cst_174 = arith.constant dense<0.000000e+00> : vector<256xf32>
    %390 = vector.multi_reduction <add>, %389, %cst_174 [0] : vector<16x256xf32> to vector<256xf32>
    %391 = vector.shape_cast %390 : vector<256xf32> to vector<1x256xf32>
    %c28 = arith.constant 28 : index
    %c0_175 = arith.constant 0 : index
    %392 = vector.load %arg7[%c28, %c0_175] : memref<64x256xf32, #tpu.memory_space<vmem>>, vector<1x256xf32>
    tpu.vector_store %arg7[%c28, %c0_175], %391 {strides = array<i32>} : memref<64x256xf32, #tpu.memory_space<vmem>>, vector<1x256xf32>,
    %393 = vector.extract_strided_slice %24 {offsets = [1, 0, 0], sizes = [1, 16, 256], strides = [1, 1, 1]} : vector<4x16x256xf32> to vector<1x16x256xf32>
    %394 = vector.shape_cast %393 : vector<1x16x256xf32> to vector<16x256xf32>
    %395 = arith.mulf %394, %386 : vector<16x256xf32>
    %cst_176 = arith.constant dense<0.000000e+00> : vector<256xf32>
    %396 = vector.multi_reduction <add>, %395, %cst_176 [0] : vector<16x256xf32> to vector<256xf32>
    %397 = vector.shape_cast %396 : vector<256xf32> to vector<1x256xf32>
    %c29 = arith.constant 29 : index
    %c0_177 = arith.constant 0 : index
    %398 = vector.load %arg7[%c29, %c0_177] : memref<64x256xf32, #tpu.memory_space<vmem>>, vector<1x256xf32>
    tpu.vector_store %arg7[%c29, %c0_177], %397 {strides = array<i32>} : memref<64x256xf32, #tpu.memory_space<vmem>>, vector<1x256xf32>,
    %399 = vector.extract_strided_slice %24 {offsets = [2, 0, 0], sizes = [1, 16, 256], strides = [1, 1, 1]} : vector<4x16x256xf32> to vector<1x16x256xf32>
    %400 = vector.shape_cast %399 : vector<1x16x256xf32> to vector<16x256xf32>
    %401 = arith.mulf %400, %386 : vector<16x256xf32>
    %cst_178 = arith.constant dense<0.000000e+00> : vector<256xf32>
    %402 = vector.multi_reduction <add>, %401, %cst_178 [0] : vector<16x256xf32> to vector<256xf32>
    %403 = vector.shape_cast %402 : vector<256xf32> to vector<1x256xf32>
    %c30 = arith.constant 30 : index
    %c0_179 = arith.constant 0 : index
    %404 = vector.load %arg7[%c30, %c0_179] : memref<64x256xf32, #tpu.memory_space<vmem>>, vector<1x256xf32>
    tpu.vector_store %arg7[%c30, %c0_179], %403 {strides = array<i32>} : memref<64x256xf32, #tpu.memory_space<vmem>>, vector<1x256xf32>,
    %405 = vector.extract_strided_slice %24 {offsets = [3, 0, 0], sizes = [1, 16, 256], strides = [1, 1, 1]} : vector<4x16x256xf32> to vector<1x16x256xf32>
    %406 = vector.shape_cast %405 : vector<1x16x256xf32> to vector<16x256xf32>
    %407 = arith.mulf %406, %386 : vector<16x256xf32>
    %cst_180 = arith.constant dense<0.000000e+00> : vector<256xf32>
    %408 = vector.multi_reduction <add>, %407, %cst_180 [0] : vector<16x256xf32> to vector<256xf32>
    %409 = vector.shape_cast %408 : vector<256xf32> to vector<1x256xf32>
    %c31 = arith.constant 31 : index
    %c0_181 = arith.constant 0 : index
    %410 = vector.load %arg7[%c31, %c0_181] : memref<64x256xf32, #tpu.memory_space<vmem>>, vector<1x256xf32>
    tpu.vector_store %arg7[%c31, %c0_181], %409 {strides = array<i32>} : memref<64x256xf32, #tpu.memory_space<vmem>>, vector<1x256xf32>,
    %c0_182 = arith.constant 0 : index
    %c8_183 = arith.constant 8 : index
    %411 = memref.load %arg1[%c0_182, %c8_183] : memref<4x15xf32, #tpu.memory_space<smem>>
    %c1_184 = arith.constant 1 : index
    %c8_185 = arith.constant 8 : index
    %412 = memref.load %arg1[%c1_184, %c8_185] : memref<4x15xf32, #tpu.memory_space<smem>>
    %c2_186 = arith.constant 2 : index
    %c8_187 = arith.constant 8 : index
    %413 = memref.load %arg1[%c2_186, %c8_187] : memref<4x15xf32, #tpu.memory_space<smem>>
    %c3_188 = arith.constant 3 : index
    %c8_189 = arith.constant 8 : index
    %414 = memref.load %arg1[%c3_188, %c8_189] : memref<4x15xf32, #tpu.memory_space<smem>>
    %415 = vector.broadcast %411 : f32 to vector<16x256xf32>
    %416 = arith.mulf %5, %415 : vector<16x256xf32>
    %417 = vector.broadcast %412 : f32 to vector<16x256xf32>
    %418 = arith.mulf %11, %417 : vector<16x256xf32>
    %419 = arith.addf %416, %418 : vector<16x256xf32>
    %420 = vector.broadcast %413 : f32 to vector<16x256xf32>
    %421 = arith.mulf %17, %420 : vector<16x256xf32>
    %422 = arith.addf %419, %421 : vector<16x256xf32>
    %423 = arith.addf %22, %422 : vector<16x256xf32>
    %424 = vector.broadcast %414 : f32 to vector<16x256xf32>
    %425 = arith.addf %423, %424 : vector<16x256xf32>
    %cst_190 = arith.constant 0.000000e+00 : f32
    %426 = vector.broadcast %cst_190 : f32 to vector<16x256xf32>
    %427 = arith.maximumf %425, %426 : vector<16x256xf32>
    %428 = math.sqrt %427 : vector<16x256xf32>
    %cst_191 = arith.constant 1.000000e+01 : f32
    %429 = vector.broadcast %cst_191 : f32 to vector<16x256xf32>
    %430 = arith.mulf %428, %429 : vector<16x256xf32>
    %cst_192 = arith.constant 1.000000e+00 : f32
    %431 = vector.broadcast %cst_192 : f32 to vector<16x256xf32>
    %432 = arith.subf %431, %430 : vector<16x256xf32>
    %cst_193 = arith.constant 0.000000e+00 : f32
    %433 = vector.broadcast %cst_193 : f32 to vector<16x256xf32>
    %434 = arith.maximumf %432, %433 : vector<16x256xf32>
    %435 = vector.extract_strided_slice %24 {offsets = [0, 0, 0], sizes = [1, 16, 256], strides = [1, 1, 1]} : vector<4x16x256xf32> to vector<1x16x256xf32>
    %436 = vector.shape_cast %435 : vector<1x16x256xf32> to vector<16x256xf32>
    %437 = arith.mulf %436, %434 : vector<16x256xf32>
    %cst_194 = arith.constant dense<0.000000e+00> : vector<256xf32>
    %438 = vector.multi_reduction <add>, %437, %cst_194 [0] : vector<16x256xf32> to vector<256xf32>
    %439 = vector.shape_cast %438 : vector<256xf32> to vector<1x256xf32>
    %c32 = arith.constant 32 : index
    %c0_195 = arith.constant 0 : index
    %440 = vector.load %arg7[%c32, %c0_195] : memref<64x256xf32, #tpu.memory_space<vmem>>, vector<1x256xf32>
    tpu.vector_store %arg7[%c32, %c0_195], %439 {strides = array<i32>} : memref<64x256xf32, #tpu.memory_space<vmem>>, vector<1x256xf32>,
    %441 = vector.extract_strided_slice %24 {offsets = [1, 0, 0], sizes = [1, 16, 256], strides = [1, 1, 1]} : vector<4x16x256xf32> to vector<1x16x256xf32>
    %442 = vector.shape_cast %441 : vector<1x16x256xf32> to vector<16x256xf32>
    %443 = arith.mulf %442, %434 : vector<16x256xf32>
    %cst_196 = arith.constant dense<0.000000e+00> : vector<256xf32>
    %444 = vector.multi_reduction <add>, %443, %cst_196 [0] : vector<16x256xf32> to vector<256xf32>
    %445 = vector.shape_cast %444 : vector<256xf32> to vector<1x256xf32>
    %c33 = arith.constant 33 : index
    %c0_197 = arith.constant 0 : index
    %446 = vector.load %arg7[%c33, %c0_197] : memref<64x256xf32, #tpu.memory_space<vmem>>, vector<1x256xf32>
    tpu.vector_store %arg7[%c33, %c0_197], %445 {strides = array<i32>} : memref<64x256xf32, #tpu.memory_space<vmem>>, vector<1x256xf32>,
    %447 = vector.extract_strided_slice %24 {offsets = [2, 0, 0], sizes = [1, 16, 256], strides = [1, 1, 1]} : vector<4x16x256xf32> to vector<1x16x256xf32>
    %448 = vector.shape_cast %447 : vector<1x16x256xf32> to vector<16x256xf32>
    %449 = arith.mulf %448, %434 : vector<16x256xf32>
    %cst_198 = arith.constant dense<0.000000e+00> : vector<256xf32>
    %450 = vector.multi_reduction <add>, %449, %cst_198 [0] : vector<16x256xf32> to vector<256xf32>
    %451 = vector.shape_cast %450 : vector<256xf32> to vector<1x256xf32>
    %c34 = arith.constant 34 : index
    %c0_199 = arith.constant 0 : index
    %452 = vector.load %arg7[%c34, %c0_199] : memref<64x256xf32, #tpu.memory_space<vmem>>, vector<1x256xf32>
    tpu.vector_store %arg7[%c34, %c0_199], %451 {strides = array<i32>} : memref<64x256xf32, #tpu.memory_space<vmem>>, vector<1x256xf32>,
    %453 = vector.extract_strided_slice %24 {offsets = [3, 0, 0], sizes = [1, 16, 256], strides = [1, 1, 1]} : vector<4x16x256xf32> to vector<1x16x256xf32>
    %454 = vector.shape_cast %453 : vector<1x16x256xf32> to vector<16x256xf32>
    %455 = arith.mulf %454, %434 : vector<16x256xf32>
    %cst_200 = arith.constant dense<0.000000e+00> : vector<256xf32>
    %456 = vector.multi_reduction <add>, %455, %cst_200 [0] : vector<16x256xf32> to vector<256xf32>
    %457 = vector.shape_cast %456 : vector<256xf32> to vector<1x256xf32>
    %c35 = arith.constant 35 : index
    %c0_201 = arith.constant 0 : index
    %458 = vector.load %arg7[%c35, %c0_201] : memref<64x256xf32, #tpu.memory_space<vmem>>, vector<1x256xf32>
    tpu.vector_store %arg7[%c35, %c0_201], %457 {strides = array<i32>} : memref<64x256xf32, #tpu.memory_space<vmem>>, vector<1x256xf32>,
    %c0_202 = arith.constant 0 : index
    %c9_203 = arith.constant 9 : index
    %459 = memref.load %arg1[%c0_202, %c9_203] : memref<4x15xf32, #tpu.memory_space<smem>>
    %c1_204 = arith.constant 1 : index
    %c9_205 = arith.constant 9 : index
    %460 = memref.load %arg1[%c1_204, %c9_205] : memref<4x15xf32, #tpu.memory_space<smem>>
    %c2_206 = arith.constant 2 : index
    %c9_207 = arith.constant 9 : index
    %461 = memref.load %arg1[%c2_206, %c9_207] : memref<4x15xf32, #tpu.memory_space<smem>>
    %c3_208 = arith.constant 3 : index
    %c9_209 = arith.constant 9 : index
    %462 = memref.load %arg1[%c3_208, %c9_209] : memref<4x15xf32, #tpu.memory_space<smem>>
    %463 = vector.broadcast %459 : f32 to vector<16x256xf32>
    %464 = arith.mulf %5, %463 : vector<16x256xf32>
    %465 = vector.broadcast %460 : f32 to vector<16x256xf32>
    %466 = arith.mulf %11, %465 : vector<16x256xf32>
    %467 = arith.addf %464, %466 : vector<16x256xf32>
    %468 = vector.broadcast %461 : f32 to vector<16x256xf32>
    %469 = arith.mulf %17, %468 : vector<16x256xf32>
    %470 = arith.addf %467, %469 : vector<16x256xf32>
    %471 = arith.addf %22, %470 : vector<16x256xf32>
    %472 = vector.broadcast %462 : f32 to vector<16x256xf32>
    %473 = arith.addf %471, %472 : vector<16x256xf32>
    %cst_210 = arith.constant 0.000000e+00 : f32
    %474 = vector.broadcast %cst_210 : f32 to vector<16x256xf32>
    %475 = arith.maximumf %473, %474 : vector<16x256xf32>
    %476 = math.sqrt %475 : vector<16x256xf32>
    %cst_211 = arith.constant 1.000000e+01 : f32
    %477 = vector.broadcast %cst_211 : f32 to vector<16x256xf32>
    %478 = arith.mulf %476, %477 : vector<16x256xf32>
    %cst_212 = arith.constant 1.000000e+00 : f32
    %479 = vector.broadcast %cst_212 : f32 to vector<16x256xf32>
    %480 = arith.subf %479, %478 : vector<16x256xf32>
    %cst_213 = arith.constant 0.000000e+00 : f32
    %481 = vector.broadcast %cst_213 : f32 to vector<16x256xf32>
    %482 = arith.maximumf %480, %481 : vector<16x256xf32>
    %483 = vector.extract_strided_slice %24 {offsets = [0, 0, 0], sizes = [1, 16, 256], strides = [1, 1, 1]} : vector<4x16x256xf32> to vector<1x16x256xf32>
    %484 = vector.shape_cast %483 : vector<1x16x256xf32> to vector<16x256xf32>
    %485 = arith.mulf %484, %482 : vector<16x256xf32>
    %cst_214 = arith.constant dense<0.000000e+00> : vector<256xf32>
    %486 = vector.multi_reduction <add>, %485, %cst_214 [0] : vector<16x256xf32> to vector<256xf32>
    %487 = vector.shape_cast %486 : vector<256xf32> to vector<1x256xf32>
    %c36 = arith.constant 36 : index
    %c0_215 = arith.constant 0 : index
    %488 = vector.load %arg7[%c36, %c0_215] : memref<64x256xf32, #tpu.memory_space<vmem>>, vector<1x256xf32>
    tpu.vector_store %arg7[%c36, %c0_215], %487 {strides = array<i32>} : memref<64x256xf32, #tpu.memory_space<vmem>>, vector<1x256xf32>,
    %489 = vector.extract_strided_slice %24 {offsets = [1, 0, 0], sizes = [1, 16, 256], strides = [1, 1, 1]} : vector<4x16x256xf32> to vector<1x16x256xf32>
    %490 = vector.shape_cast %489 : vector<1x16x256xf32> to vector<16x256xf32>
    %491 = arith.mulf %490, %482 : vector<16x256xf32>
    %cst_216 = arith.constant dense<0.000000e+00> : vector<256xf32>
    %492 = vector.multi_reduction <add>, %491, %cst_216 [0] : vector<16x256xf32> to vector<256xf32>
    %493 = vector.shape_cast %492 : vector<256xf32> to vector<1x256xf32>
    %c37 = arith.constant 37 : index
    %c0_217 = arith.constant 0 : index
    %494 = vector.load %arg7[%c37, %c0_217] : memref<64x256xf32, #tpu.memory_space<vmem>>, vector<1x256xf32>
    tpu.vector_store %arg7[%c37, %c0_217], %493 {strides = array<i32>} : memref<64x256xf32, #tpu.memory_space<vmem>>, vector<1x256xf32>,
    %495 = vector.extract_strided_slice %24 {offsets = [2, 0, 0], sizes = [1, 16, 256], strides = [1, 1, 1]} : vector<4x16x256xf32> to vector<1x16x256xf32>
    %496 = vector.shape_cast %495 : vector<1x16x256xf32> to vector<16x256xf32>
    %497 = arith.mulf %496, %482 : vector<16x256xf32>
    %cst_218 = arith.constant dense<0.000000e+00> : vector<256xf32>
    %498 = vector.multi_reduction <add>, %497, %cst_218 [0] : vector<16x256xf32> to vector<256xf32>
    %499 = vector.shape_cast %498 : vector<256xf32> to vector<1x256xf32>
    %c38 = arith.constant 38 : index
    %c0_219 = arith.constant 0 : index
    %500 = vector.load %arg7[%c38, %c0_219] : memref<64x256xf32, #tpu.memory_space<vmem>>, vector<1x256xf32>
    tpu.vector_store %arg7[%c38, %c0_219], %499 {strides = array<i32>} : memref<64x256xf32, #tpu.memory_space<vmem>>, vector<1x256xf32>,
    %501 = vector.extract_strided_slice %24 {offsets = [3, 0, 0], sizes = [1, 16, 256], strides = [1, 1, 1]} : vector<4x16x256xf32> to vector<1x16x256xf32>
    %502 = vector.shape_cast %501 : vector<1x16x256xf32> to vector<16x256xf32>
    %503 = arith.mulf %502, %482 : vector<16x256xf32>
    %cst_220 = arith.constant dense<0.000000e+00> : vector<256xf32>
    %504 = vector.multi_reduction <add>, %503, %cst_220 [0] : vector<16x256xf32> to vector<256xf32>
    %505 = vector.shape_cast %504 : vector<256xf32> to vector<1x256xf32>
    %c39 = arith.constant 39 : index
    %c0_221 = arith.constant 0 : index
    %506 = vector.load %arg7[%c39, %c0_221] : memref<64x256xf32, #tpu.memory_space<vmem>>, vector<1x256xf32>
    tpu.vector_store %arg7[%c39, %c0_221], %505 {strides = array<i32>} : memref<64x256xf32, #tpu.memory_space<vmem>>, vector<1x256xf32>,
    %c0_222 = arith.constant 0 : index
    %c10_223 = arith.constant 10 : index
    %507 = memref.load %arg1[%c0_222, %c10_223] : memref<4x15xf32, #tpu.memory_space<smem>>
    %c1_224 = arith.constant 1 : index
    %c10_225 = arith.constant 10 : index
    %508 = memref.load %arg1[%c1_224, %c10_225] : memref<4x15xf32, #tpu.memory_space<smem>>
    %c2_226 = arith.constant 2 : index
    %c10_227 = arith.constant 10 : index
    %509 = memref.load %arg1[%c2_226, %c10_227] : memref<4x15xf32, #tpu.memory_space<smem>>
    %c3_228 = arith.constant 3 : index
    %c10_229 = arith.constant 10 : index
    %510 = memref.load %arg1[%c3_228, %c10_229] : memref<4x15xf32, #tpu.memory_space<smem>>
    %511 = vector.broadcast %507 : f32 to vector<16x256xf32>
    %512 = arith.mulf %5, %511 : vector<16x256xf32>
    %513 = vector.broadcast %508 : f32 to vector<16x256xf32>
    %514 = arith.mulf %11, %513 : vector<16x256xf32>
    %515 = arith.addf %512, %514 : vector<16x256xf32>
    %516 = vector.broadcast %509 : f32 to vector<16x256xf32>
    %517 = arith.mulf %17, %516 : vector<16x256xf32>
    %518 = arith.addf %515, %517 : vector<16x256xf32>
    %519 = arith.addf %22, %518 : vector<16x256xf32>
    %520 = vector.broadcast %510 : f32 to vector<16x256xf32>
    %521 = arith.addf %519, %520 : vector<16x256xf32>
    %cst_230 = arith.constant 0.000000e+00 : f32
    %522 = vector.broadcast %cst_230 : f32 to vector<16x256xf32>
    %523 = arith.maximumf %521, %522 : vector<16x256xf32>
    %524 = math.sqrt %523 : vector<16x256xf32>
    %cst_231 = arith.constant 1.000000e+01 : f32
    %525 = vector.broadcast %cst_231 : f32 to vector<16x256xf32>
    %526 = arith.mulf %524, %525 : vector<16x256xf32>
    %cst_232 = arith.constant 1.000000e+00 : f32
    %527 = vector.broadcast %cst_232 : f32 to vector<16x256xf32>
    %528 = arith.subf %527, %526 : vector<16x256xf32>
    %cst_233 = arith.constant 0.000000e+00 : f32
    %529 = vector.broadcast %cst_233 : f32 to vector<16x256xf32>
    %530 = arith.maximumf %528, %529 : vector<16x256xf32>
    %531 = vector.extract_strided_slice %24 {offsets = [0, 0, 0], sizes = [1, 16, 256], strides = [1, 1, 1]} : vector<4x16x256xf32> to vector<1x16x256xf32>
    %532 = vector.shape_cast %531 : vector<1x16x256xf32> to vector<16x256xf32>
    %533 = arith.mulf %532, %530 : vector<16x256xf32>
    %cst_234 = arith.constant dense<0.000000e+00> : vector<256xf32>
    %534 = vector.multi_reduction <add>, %533, %cst_234 [0] : vector<16x256xf32> to vector<256xf32>
    %535 = vector.shape_cast %534 : vector<256xf32> to vector<1x256xf32>
    %c40 = arith.constant 40 : index
    %c0_235 = arith.constant 0 : index
    %536 = vector.load %arg7[%c40, %c0_235] : memref<64x256xf32, #tpu.memory_space<vmem>>, vector<1x256xf32>
    tpu.vector_store %arg7[%c40, %c0_235], %535 {strides = array<i32>} : memref<64x256xf32, #tpu.memory_space<vmem>>, vector<1x256xf32>,
    %537 = vector.extract_strided_slice %24 {offsets = [1, 0, 0], sizes = [1, 16, 256], strides = [1, 1, 1]} : vector<4x16x256xf32> to vector<1x16x256xf32>
    %538 = vector.shape_cast %537 : vector<1x16x256xf32> to vector<16x256xf32>
    %539 = arith.mulf %538, %530 : vector<16x256xf32>
    %cst_236 = arith.constant dense<0.000000e+00> : vector<256xf32>
    %540 = vector.multi_reduction <add>, %539, %cst_236 [0] : vector<16x256xf32> to vector<256xf32>
    %541 = vector.shape_cast %540 : vector<256xf32> to vector<1x256xf32>
    %c41 = arith.constant 41 : index
    %c0_237 = arith.constant 0 : index
    %542 = vector.load %arg7[%c41, %c0_237] : memref<64x256xf32, #tpu.memory_space<vmem>>, vector<1x256xf32>
    tpu.vector_store %arg7[%c41, %c0_237], %541 {strides = array<i32>} : memref<64x256xf32, #tpu.memory_space<vmem>>, vector<1x256xf32>,
    %543 = vector.extract_strided_slice %24 {offsets = [2, 0, 0], sizes = [1, 16, 256], strides = [1, 1, 1]} : vector<4x16x256xf32> to vector<1x16x256xf32>
    %544 = vector.shape_cast %543 : vector<1x16x256xf32> to vector<16x256xf32>
    %545 = arith.mulf %544, %530 : vector<16x256xf32>
    %cst_238 = arith.constant dense<0.000000e+00> : vector<256xf32>
    %546 = vector.multi_reduction <add>, %545, %cst_238 [0] : vector<16x256xf32> to vector<256xf32>
    %547 = vector.shape_cast %546 : vector<256xf32> to vector<1x256xf32>
    %c42 = arith.constant 42 : index
    %c0_239 = arith.constant 0 : index
    %548 = vector.load %arg7[%c42, %c0_239] : memref<64x256xf32, #tpu.memory_space<vmem>>, vector<1x256xf32>
    tpu.vector_store %arg7[%c42, %c0_239], %547 {strides = array<i32>} : memref<64x256xf32, #tpu.memory_space<vmem>>, vector<1x256xf32>,
    %549 = vector.extract_strided_slice %24 {offsets = [3, 0, 0], sizes = [1, 16, 256], strides = [1, 1, 1]} : vector<4x16x256xf32> to vector<1x16x256xf32>
    %550 = vector.shape_cast %549 : vector<1x16x256xf32> to vector<16x256xf32>
    %551 = arith.mulf %550, %530 : vector<16x256xf32>
    %cst_240 = arith.constant dense<0.000000e+00> : vector<256xf32>
    %552 = vector.multi_reduction <add>, %551, %cst_240 [0] : vector<16x256xf32> to vector<256xf32>
    %553 = vector.shape_cast %552 : vector<256xf32> to vector<1x256xf32>
    %c43 = arith.constant 43 : index
    %c0_241 = arith.constant 0 : index
    %554 = vector.load %arg7[%c43, %c0_241] : memref<64x256xf32, #tpu.memory_space<vmem>>, vector<1x256xf32>
    tpu.vector_store %arg7[%c43, %c0_241], %553 {strides = array<i32>} : memref<64x256xf32, #tpu.memory_space<vmem>>, vector<1x256xf32>,
    %c0_242 = arith.constant 0 : index
    %c11_243 = arith.constant 11 : index
    %555 = memref.load %arg1[%c0_242, %c11_243] : memref<4x15xf32, #tpu.memory_space<smem>>
    %c1_244 = arith.constant 1 : index
    %c11_245 = arith.constant 11 : index
    %556 = memref.load %arg1[%c1_244, %c11_245] : memref<4x15xf32, #tpu.memory_space<smem>>
    %c2_246 = arith.constant 2 : index
    %c11_247 = arith.constant 11 : index
    %557 = memref.load %arg1[%c2_246, %c11_247] : memref<4x15xf32, #tpu.memory_space<smem>>
    %c3_248 = arith.constant 3 : index
    %c11_249 = arith.constant 11 : index
    %558 = memref.load %arg1[%c3_248, %c11_249] : memref<4x15xf32, #tpu.memory_space<smem>>
    %559 = vector.broadcast %555 : f32 to vector<16x256xf32>
    %560 = arith.mulf %5, %559 : vector<16x256xf32>
    %561 = vector.broadcast %556 : f32 to vector<16x256xf32>
    %562 = arith.mulf %11, %561 : vector<16x256xf32>
    %563 = arith.addf %560, %562 : vector<16x256xf32>
    %564 = vector.broadcast %557 : f32 to vector<16x256xf32>
    %565 = arith.mulf %17, %564 : vector<16x256xf32>
    %566 = arith.addf %563, %565 : vector<16x256xf32>
    %567 = arith.addf %22, %566 : vector<16x256xf32>
    %568 = vector.broadcast %558 : f32 to vector<16x256xf32>
    %569 = arith.addf %567, %568 : vector<16x256xf32>
    %cst_250 = arith.constant 0.000000e+00 : f32
    %570 = vector.broadcast %cst_250 : f32 to vector<16x256xf32>
    %571 = arith.maximumf %569, %570 : vector<16x256xf32>
    %572 = math.sqrt %571 : vector<16x256xf32>
    %cst_251 = arith.constant 1.000000e+01 : f32
    %573 = vector.broadcast %cst_251 : f32 to vector<16x256xf32>
    %574 = arith.mulf %572, %573 : vector<16x256xf32>
    %cst_252 = arith.constant 1.000000e+00 : f32
    %575 = vector.broadcast %cst_252 : f32 to vector<16x256xf32>
    %576 = arith.subf %575, %574 : vector<16x256xf32>
    %cst_253 = arith.constant 0.000000e+00 : f32
    %577 = vector.broadcast %cst_253 : f32 to vector<16x256xf32>
    %578 = arith.maximumf %576, %577 : vector<16x256xf32>
    %579 = vector.extract_strided_slice %24 {offsets = [0, 0, 0], sizes = [1, 16, 256], strides = [1, 1, 1]} : vector<4x16x256xf32> to vector<1x16x256xf32>
    %580 = vector.shape_cast %579 : vector<1x16x256xf32> to vector<16x256xf32>
    %581 = arith.mulf %580, %578 : vector<16x256xf32>
    %cst_254 = arith.constant dense<0.000000e+00> : vector<256xf32>
    %582 = vector.multi_reduction <add>, %581, %cst_254 [0] : vector<16x256xf32> to vector<256xf32>
    %583 = vector.shape_cast %582 : vector<256xf32> to vector<1x256xf32>
    %c44 = arith.constant 44 : index
    %c0_255 = arith.constant 0 : index
    %584 = vector.load %arg7[%c44, %c0_255] : memref<64x256xf32, #tpu.memory_space<vmem>>, vector<1x256xf32>
    tpu.vector_store %arg7[%c44, %c0_255], %583 {strides = array<i32>} : memref<64x256xf32, #tpu.memory_space<vmem>>, vector<1x256xf32>,
    %585 = vector.extract_strided_slice %24 {offsets = [1, 0, 0], sizes = [1, 16, 256], strides = [1, 1, 1]} : vector<4x16x256xf32> to vector<1x16x256xf32>
    %586 = vector.shape_cast %585 : vector<1x16x256xf32> to vector<16x256xf32>
    %587 = arith.mulf %586, %578 : vector<16x256xf32>
    %cst_256 = arith.constant dense<0.000000e+00> : vector<256xf32>
    %588 = vector.multi_reduction <add>, %587, %cst_256 [0] : vector<16x256xf32> to vector<256xf32>
    %589 = vector.shape_cast %588 : vector<256xf32> to vector<1x256xf32>
    %c45 = arith.constant 45 : index
    %c0_257 = arith.constant 0 : index
    %590 = vector.load %arg7[%c45, %c0_257] : memref<64x256xf32, #tpu.memory_space<vmem>>, vector<1x256xf32>
    tpu.vector_store %arg7[%c45, %c0_257], %589 {strides = array<i32>} : memref<64x256xf32, #tpu.memory_space<vmem>>, vector<1x256xf32>,
    %591 = vector.extract_strided_slice %24 {offsets = [2, 0, 0], sizes = [1, 16, 256], strides = [1, 1, 1]} : vector<4x16x256xf32> to vector<1x16x256xf32>
    %592 = vector.shape_cast %591 : vector<1x16x256xf32> to vector<16x256xf32>
    %593 = arith.mulf %592, %578 : vector<16x256xf32>
    %cst_258 = arith.constant dense<0.000000e+00> : vector<256xf32>
    %594 = vector.multi_reduction <add>, %593, %cst_258 [0] : vector<16x256xf32> to vector<256xf32>
    %595 = vector.shape_cast %594 : vector<256xf32> to vector<1x256xf32>
    %c46 = arith.constant 46 : index
    %c0_259 = arith.constant 0 : index
    %596 = vector.load %arg7[%c46, %c0_259] : memref<64x256xf32, #tpu.memory_space<vmem>>, vector<1x256xf32>
    tpu.vector_store %arg7[%c46, %c0_259], %595 {strides = array<i32>} : memref<64x256xf32, #tpu.memory_space<vmem>>, vector<1x256xf32>,
    %597 = vector.extract_strided_slice %24 {offsets = [3, 0, 0], sizes = [1, 16, 256], strides = [1, 1, 1]} : vector<4x16x256xf32> to vector<1x16x256xf32>
    %598 = vector.shape_cast %597 : vector<1x16x256xf32> to vector<16x256xf32>
    %599 = arith.mulf %598, %578 : vector<16x256xf32>
    %cst_260 = arith.constant dense<0.000000e+00> : vector<256xf32>
    %600 = vector.multi_reduction <add>, %599, %cst_260 [0] : vector<16x256xf32> to vector<256xf32>
    %601 = vector.shape_cast %600 : vector<256xf32> to vector<1x256xf32>
    %c47 = arith.constant 47 : index
    %c0_261 = arith.constant 0 : index
    %602 = vector.load %arg7[%c47, %c0_261] : memref<64x256xf32, #tpu.memory_space<vmem>>, vector<1x256xf32>
    tpu.vector_store %arg7[%c47, %c0_261], %601 {strides = array<i32>} : memref<64x256xf32, #tpu.memory_space<vmem>>, vector<1x256xf32>,
    %c0_262 = arith.constant 0 : index
    %c12_263 = arith.constant 12 : index
    %603 = memref.load %arg1[%c0_262, %c12_263] : memref<4x15xf32, #tpu.memory_space<smem>>
    %c1_264 = arith.constant 1 : index
    %c12_265 = arith.constant 12 : index
    %604 = memref.load %arg1[%c1_264, %c12_265] : memref<4x15xf32, #tpu.memory_space<smem>>
    %c2_266 = arith.constant 2 : index
    %c12_267 = arith.constant 12 : index
    %605 = memref.load %arg1[%c2_266, %c12_267] : memref<4x15xf32, #tpu.memory_space<smem>>
    %c3_268 = arith.constant 3 : index
    %c12_269 = arith.constant 12 : index
    %606 = memref.load %arg1[%c3_268, %c12_269] : memref<4x15xf32, #tpu.memory_space<smem>>
    %607 = vector.broadcast %603 : f32 to vector<16x256xf32>
    %608 = arith.mulf %5, %607 : vector<16x256xf32>
    %609 = vector.broadcast %604 : f32 to vector<16x256xf32>
    %610 = arith.mulf %11, %609 : vector<16x256xf32>
    %611 = arith.addf %608, %610 : vector<16x256xf32>
    %612 = vector.broadcast %605 : f32 to vector<16x256xf32>
    %613 = arith.mulf %17, %612 : vector<16x256xf32>
    %614 = arith.addf %611, %613 : vector<16x256xf32>
    %615 = arith.addf %22, %614 : vector<16x256xf32>
    %616 = vector.broadcast %606 : f32 to vector<16x256xf32>
    %617 = arith.addf %615, %616 : vector<16x256xf32>
    %cst_270 = arith.constant 0.000000e+00 : f32
    %618 = vector.broadcast %cst_270 : f32 to vector<16x256xf32>
    %619 = arith.maximumf %617, %618 : vector<16x256xf32>
    %620 = math.sqrt %619 : vector<16x256xf32>
    %cst_271 = arith.constant 1.000000e+01 : f32
    %621 = vector.broadcast %cst_271 : f32 to vector<16x256xf32>
    %622 = arith.mulf %620, %621 : vector<16x256xf32>
    %cst_272 = arith.constant 1.000000e+00 : f32
    %623 = vector.broadcast %cst_272 : f32 to vector<16x256xf32>
    %624 = arith.subf %623, %622 : vector<16x256xf32>
    %cst_273 = arith.constant 0.000000e+00 : f32
    %625 = vector.broadcast %cst_273 : f32 to vector<16x256xf32>
    %626 = arith.maximumf %624, %625 : vector<16x256xf32>
    %627 = vector.extract_strided_slice %24 {offsets = [0, 0, 0], sizes = [1, 16, 256], strides = [1, 1, 1]} : vector<4x16x256xf32> to vector<1x16x256xf32>
    %628 = vector.shape_cast %627 : vector<1x16x256xf32> to vector<16x256xf32>
    %629 = arith.mulf %628, %626 : vector<16x256xf32>
    %cst_274 = arith.constant dense<0.000000e+00> : vector<256xf32>
    %630 = vector.multi_reduction <add>, %629, %cst_274 [0] : vector<16x256xf32> to vector<256xf32>
    %631 = vector.shape_cast %630 : vector<256xf32> to vector<1x256xf32>
    %c48 = arith.constant 48 : index
    %c0_275 = arith.constant 0 : index
    %632 = vector.load %arg7[%c48, %c0_275] : memref<64x256xf32, #tpu.memory_space<vmem>>, vector<1x256xf32>
    tpu.vector_store %arg7[%c48, %c0_275], %631 {strides = array<i32>} : memref<64x256xf32, #tpu.memory_space<vmem>>, vector<1x256xf32>,
    %633 = vector.extract_strided_slice %24 {offsets = [1, 0, 0], sizes = [1, 16, 256], strides = [1, 1, 1]} : vector<4x16x256xf32> to vector<1x16x256xf32>
    %634 = vector.shape_cast %633 : vector<1x16x256xf32> to vector<16x256xf32>
    %635 = arith.mulf %634, %626 : vector<16x256xf32>
    %cst_276 = arith.constant dense<0.000000e+00> : vector<256xf32>
    %636 = vector.multi_reduction <add>, %635, %cst_276 [0] : vector<16x256xf32> to vector<256xf32>
    %637 = vector.shape_cast %636 : vector<256xf32> to vector<1x256xf32>
    %c49 = arith.constant 49 : index
    %c0_277 = arith.constant 0 : index
    %638 = vector.load %arg7[%c49, %c0_277] : memref<64x256xf32, #tpu.memory_space<vmem>>, vector<1x256xf32>
    tpu.vector_store %arg7[%c49, %c0_277], %637 {strides = array<i32>} : memref<64x256xf32, #tpu.memory_space<vmem>>, vector<1x256xf32>,
    %639 = vector.extract_strided_slice %24 {offsets = [2, 0, 0], sizes = [1, 16, 256], strides = [1, 1, 1]} : vector<4x16x256xf32> to vector<1x16x256xf32>
    %640 = vector.shape_cast %639 : vector<1x16x256xf32> to vector<16x256xf32>
    %641 = arith.mulf %640, %626 : vector<16x256xf32>
    %cst_278 = arith.constant dense<0.000000e+00> : vector<256xf32>
    %642 = vector.multi_reduction <add>, %641, %cst_278 [0] : vector<16x256xf32> to vector<256xf32>
    %643 = vector.shape_cast %642 : vector<256xf32> to vector<1x256xf32>
    %c50 = arith.constant 50 : index
    %c0_279 = arith.constant 0 : index
    %644 = vector.load %arg7[%c50, %c0_279] : memref<64x256xf32, #tpu.memory_space<vmem>>, vector<1x256xf32>
    tpu.vector_store %arg7[%c50, %c0_279], %643 {strides = array<i32>} : memref<64x256xf32, #tpu.memory_space<vmem>>, vector<1x256xf32>,
    %645 = vector.extract_strided_slice %24 {offsets = [3, 0, 0], sizes = [1, 16, 256], strides = [1, 1, 1]} : vector<4x16x256xf32> to vector<1x16x256xf32>
    %646 = vector.shape_cast %645 : vector<1x16x256xf32> to vector<16x256xf32>
    %647 = arith.mulf %646, %626 : vector<16x256xf32>
    %cst_280 = arith.constant dense<0.000000e+00> : vector<256xf32>
    %648 = vector.multi_reduction <add>, %647, %cst_280 [0] : vector<16x256xf32> to vector<256xf32>
    %649 = vector.shape_cast %648 : vector<256xf32> to vector<1x256xf32>
    %c51 = arith.constant 51 : index
    %c0_281 = arith.constant 0 : index
    %650 = vector.load %arg7[%c51, %c0_281] : memref<64x256xf32, #tpu.memory_space<vmem>>, vector<1x256xf32>
    tpu.vector_store %arg7[%c51, %c0_281], %649 {strides = array<i32>} : memref<64x256xf32, #tpu.memory_space<vmem>>, vector<1x256xf32>,
    %c0_282 = arith.constant 0 : index
    %c13_283 = arith.constant 13 : index
    %651 = memref.load %arg1[%c0_282, %c13_283] : memref<4x15xf32, #tpu.memory_space<smem>>
    %c1_284 = arith.constant 1 : index
    %c13_285 = arith.constant 13 : index
    %652 = memref.load %arg1[%c1_284, %c13_285] : memref<4x15xf32, #tpu.memory_space<smem>>
    %c2_286 = arith.constant 2 : index
    %c13_287 = arith.constant 13 : index
    %653 = memref.load %arg1[%c2_286, %c13_287] : memref<4x15xf32, #tpu.memory_space<smem>>
    %c3_288 = arith.constant 3 : index
    %c13_289 = arith.constant 13 : index
    %654 = memref.load %arg1[%c3_288, %c13_289] : memref<4x15xf32, #tpu.memory_space<smem>>
    %655 = vector.broadcast %651 : f32 to vector<16x256xf32>
    %656 = arith.mulf %5, %655 : vector<16x256xf32>
    %657 = vector.broadcast %652 : f32 to vector<16x256xf32>
    %658 = arith.mulf %11, %657 : vector<16x256xf32>
    %659 = arith.addf %656, %658 : vector<16x256xf32>
    %660 = vector.broadcast %653 : f32 to vector<16x256xf32>
    %661 = arith.mulf %17, %660 : vector<16x256xf32>
    %662 = arith.addf %659, %661 : vector<16x256xf32>
    %663 = arith.addf %22, %662 : vector<16x256xf32>
    %664 = vector.broadcast %654 : f32 to vector<16x256xf32>
    %665 = arith.addf %663, %664 : vector<16x256xf32>
    %cst_290 = arith.constant 0.000000e+00 : f32
    %666 = vector.broadcast %cst_290 : f32 to vector<16x256xf32>
    %667 = arith.maximumf %665, %666 : vector<16x256xf32>
    %668 = math.sqrt %667 : vector<16x256xf32>
    %cst_291 = arith.constant 1.000000e+01 : f32
    %669 = vector.broadcast %cst_291 : f32 to vector<16x256xf32>
    %670 = arith.mulf %668, %669 : vector<16x256xf32>
    %cst_292 = arith.constant 1.000000e+00 : f32
    %671 = vector.broadcast %cst_292 : f32 to vector<16x256xf32>
    %672 = arith.subf %671, %670 : vector<16x256xf32>
    %cst_293 = arith.constant 0.000000e+00 : f32
    %673 = vector.broadcast %cst_293 : f32 to vector<16x256xf32>
    %674 = arith.maximumf %672, %673 : vector<16x256xf32>
    %675 = vector.extract_strided_slice %24 {offsets = [0, 0, 0], sizes = [1, 16, 256], strides = [1, 1, 1]} : vector<4x16x256xf32> to vector<1x16x256xf32>
    %676 = vector.shape_cast %675 : vector<1x16x256xf32> to vector<16x256xf32>
    %677 = arith.mulf %676, %674 : vector<16x256xf32>
    %cst_294 = arith.constant dense<0.000000e+00> : vector<256xf32>
    %678 = vector.multi_reduction <add>, %677, %cst_294 [0] : vector<16x256xf32> to vector<256xf32>
    %679 = vector.shape_cast %678 : vector<256xf32> to vector<1x256xf32>
    %c52 = arith.constant 52 : index
    %c0_295 = arith.constant 0 : index
    %680 = vector.load %arg7[%c52, %c0_295] : memref<64x256xf32, #tpu.memory_space<vmem>>, vector<1x256xf32>
    tpu.vector_store %arg7[%c52, %c0_295], %679 {strides = array<i32>} : memref<64x256xf32, #tpu.memory_space<vmem>>, vector<1x256xf32>,
    %681 = vector.extract_strided_slice %24 {offsets = [1, 0, 0], sizes = [1, 16, 256], strides = [1, 1, 1]} : vector<4x16x256xf32> to vector<1x16x256xf32>
    %682 = vector.shape_cast %681 : vector<1x16x256xf32> to vector<16x256xf32>
    %683 = arith.mulf %682, %674 : vector<16x256xf32>
    %cst_296 = arith.constant dense<0.000000e+00> : vector<256xf32>
    %684 = vector.multi_reduction <add>, %683, %cst_296 [0] : vector<16x256xf32> to vector<256xf32>
    %685 = vector.shape_cast %684 : vector<256xf32> to vector<1x256xf32>
    %c53 = arith.constant 53 : index
    %c0_297 = arith.constant 0 : index
    %686 = vector.load %arg7[%c53, %c0_297] : memref<64x256xf32, #tpu.memory_space<vmem>>, vector<1x256xf32>
    tpu.vector_store %arg7[%c53, %c0_297], %685 {strides = array<i32>} : memref<64x256xf32, #tpu.memory_space<vmem>>, vector<1x256xf32>,
    %687 = vector.extract_strided_slice %24 {offsets = [2, 0, 0], sizes = [1, 16, 256], strides = [1, 1, 1]} : vector<4x16x256xf32> to vector<1x16x256xf32>
    %688 = vector.shape_cast %687 : vector<1x16x256xf32> to vector<16x256xf32>
    %689 = arith.mulf %688, %674 : vector<16x256xf32>
    %cst_298 = arith.constant dense<0.000000e+00> : vector<256xf32>
    %690 = vector.multi_reduction <add>, %689, %cst_298 [0] : vector<16x256xf32> to vector<256xf32>
    %691 = vector.shape_cast %690 : vector<256xf32> to vector<1x256xf32>
    %c54 = arith.constant 54 : index
    %c0_299 = arith.constant 0 : index
    %692 = vector.load %arg7[%c54, %c0_299] : memref<64x256xf32, #tpu.memory_space<vmem>>, vector<1x256xf32>
    tpu.vector_store %arg7[%c54, %c0_299], %691 {strides = array<i32>} : memref<64x256xf32, #tpu.memory_space<vmem>>, vector<1x256xf32>,
    %693 = vector.extract_strided_slice %24 {offsets = [3, 0, 0], sizes = [1, 16, 256], strides = [1, 1, 1]} : vector<4x16x256xf32> to vector<1x16x256xf32>
    %694 = vector.shape_cast %693 : vector<1x16x256xf32> to vector<16x256xf32>
    %695 = arith.mulf %694, %674 : vector<16x256xf32>
    %cst_300 = arith.constant dense<0.000000e+00> : vector<256xf32>
    %696 = vector.multi_reduction <add>, %695, %cst_300 [0] : vector<16x256xf32> to vector<256xf32>
    %697 = vector.shape_cast %696 : vector<256xf32> to vector<1x256xf32>
    %c55 = arith.constant 55 : index
    %c0_301 = arith.constant 0 : index
    %698 = vector.load %arg7[%c55, %c0_301] : memref<64x256xf32, #tpu.memory_space<vmem>>, vector<1x256xf32>
    tpu.vector_store %arg7[%c55, %c0_301], %697 {strides = array<i32>} : memref<64x256xf32, #tpu.memory_space<vmem>>, vector<1x256xf32>,
    %c0_302 = arith.constant 0 : index
    %c14_303 = arith.constant 14 : index
    %699 = memref.load %arg1[%c0_302, %c14_303] : memref<4x15xf32, #tpu.memory_space<smem>>
    %c1_304 = arith.constant 1 : index
    %c14_305 = arith.constant 14 : index
    %700 = memref.load %arg1[%c1_304, %c14_305] : memref<4x15xf32, #tpu.memory_space<smem>>
    %c2_306 = arith.constant 2 : index
    %c14_307 = arith.constant 14 : index
    %701 = memref.load %arg1[%c2_306, %c14_307] : memref<4x15xf32, #tpu.memory_space<smem>>
    %c3_308 = arith.constant 3 : index
    %c14_309 = arith.constant 14 : index
    %702 = memref.load %arg1[%c3_308, %c14_309] : memref<4x15xf32, #tpu.memory_space<smem>>
    %703 = vector.broadcast %699 : f32 to vector<16x256xf32>
    %704 = arith.mulf %5, %703 : vector<16x256xf32>
    %705 = vector.broadcast %700 : f32 to vector<16x256xf32>
    %706 = arith.mulf %11, %705 : vector<16x256xf32>
    %707 = arith.addf %704, %706 : vector<16x256xf32>
    %708 = vector.broadcast %701 : f32 to vector<16x256xf32>
    %709 = arith.mulf %17, %708 : vector<16x256xf32>
    %710 = arith.addf %707, %709 : vector<16x256xf32>
    %711 = arith.addf %22, %710 : vector<16x256xf32>
    %712 = vector.broadcast %702 : f32 to vector<16x256xf32>
    %713 = arith.addf %711, %712 : vector<16x256xf32>
    %cst_310 = arith.constant 0.000000e+00 : f32
    %714 = vector.broadcast %cst_310 : f32 to vector<16x256xf32>
    %715 = arith.maximumf %713, %714 : vector<16x256xf32>
    %716 = math.sqrt %715 : vector<16x256xf32>
    %cst_311 = arith.constant 1.000000e+01 : f32
    %717 = vector.broadcast %cst_311 : f32 to vector<16x256xf32>
    %718 = arith.mulf %716, %717 : vector<16x256xf32>
    %cst_312 = arith.constant 1.000000e+00 : f32
    %719 = vector.broadcast %cst_312 : f32 to vector<16x256xf32>
    %720 = arith.subf %719, %718 : vector<16x256xf32>
    %cst_313 = arith.constant 0.000000e+00 : f32
    %721 = vector.broadcast %cst_313 : f32 to vector<16x256xf32>
    %722 = arith.maximumf %720, %721 : vector<16x256xf32>
    %723 = vector.extract_strided_slice %24 {offsets = [0, 0, 0], sizes = [1, 16, 256], strides = [1, 1, 1]} : vector<4x16x256xf32> to vector<1x16x256xf32>
    %724 = vector.shape_cast %723 : vector<1x16x256xf32> to vector<16x256xf32>
    %725 = arith.mulf %724, %722 : vector<16x256xf32>
    %cst_314 = arith.constant dense<0.000000e+00> : vector<256xf32>
    %726 = vector.multi_reduction <add>, %725, %cst_314 [0] : vector<16x256xf32> to vector<256xf32>
    %727 = vector.shape_cast %726 : vector<256xf32> to vector<1x256xf32>
    %c56 = arith.constant 56 : index
    %c0_315 = arith.constant 0 : index
    %728 = vector.load %arg7[%c56, %c0_315] : memref<64x256xf32, #tpu.memory_space<vmem>>, vector<1x256xf32>
    tpu.vector_store %arg7[%c56, %c0_315], %727 {strides = array<i32>} : memref<64x256xf32, #tpu.memory_space<vmem>>, vector<1x256xf32>,
    %729 = vector.extract_strided_slice %24 {offsets = [1, 0, 0], sizes = [1, 16, 256], strides = [1, 1, 1]} : vector<4x16x256xf32> to vector<1x16x256xf32>
    %730 = vector.shape_cast %729 : vector<1x16x256xf32> to vector<16x256xf32>
    %731 = arith.mulf %730, %722 : vector<16x256xf32>
    %cst_316 = arith.constant dense<0.000000e+00> : vector<256xf32>
    %732 = vector.multi_reduction <add>, %731, %cst_316 [0] : vector<16x256xf32> to vector<256xf32>
    %733 = vector.shape_cast %732 : vector<256xf32> to vector<1x256xf32>
    %c57 = arith.constant 57 : index
    %c0_317 = arith.constant 0 : index
    %734 = vector.load %arg7[%c57, %c0_317] : memref<64x256xf32, #tpu.memory_space<vmem>>, vector<1x256xf32>
    tpu.vector_store %arg7[%c57, %c0_317], %733 {strides = array<i32>} : memref<64x256xf32, #tpu.memory_space<vmem>>, vector<1x256xf32>,
    %735 = vector.extract_strided_slice %24 {offsets = [2, 0, 0], sizes = [1, 16, 256], strides = [1, 1, 1]} : vector<4x16x256xf32> to vector<1x16x256xf32>
    %736 = vector.shape_cast %735 : vector<1x16x256xf32> to vector<16x256xf32>
    %737 = arith.mulf %736, %722 : vector<16x256xf32>
    %cst_318 = arith.constant dense<0.000000e+00> : vector<256xf32>
    %738 = vector.multi_reduction <add>, %737, %cst_318 [0] : vector<16x256xf32> to vector<256xf32>
    %739 = vector.shape_cast %738 : vector<256xf32> to vector<1x256xf32>
    %c58 = arith.constant 58 : index
    %c0_319 = arith.constant 0 : index
    %740 = vector.load %arg7[%c58, %c0_319] : memref<64x256xf32, #tpu.memory_space<vmem>>, vector<1x256xf32>
    tpu.vector_store %arg7[%c58, %c0_319], %739 {strides = array<i32>} : memref<64x256xf32, #tpu.memory_space<vmem>>, vector<1x256xf32>,
    %741 = vector.extract_strided_slice %24 {offsets = [3, 0, 0], sizes = [1, 16, 256], strides = [1, 1, 1]} : vector<4x16x256xf32> to vector<1x16x256xf32>
    %742 = vector.shape_cast %741 : vector<1x16x256xf32> to vector<16x256xf32>
    %743 = arith.mulf %742, %722 : vector<16x256xf32>
    %cst_320 = arith.constant dense<0.000000e+00> : vector<256xf32>
    %744 = vector.multi_reduction <add>, %743, %cst_320 [0] : vector<16x256xf32> to vector<256xf32>
    %745 = vector.shape_cast %744 : vector<256xf32> to vector<1x256xf32>
    %c59 = arith.constant 59 : index
    %c0_321 = arith.constant 0 : index
    %746 = vector.load %arg7[%c59, %c0_321] : memref<64x256xf32, #tpu.memory_space<vmem>>, vector<1x256xf32>
    tpu.vector_store %arg7[%c59, %c0_321], %745 {strides = array<i32>} : memref<64x256xf32, #tpu.memory_space<vmem>>, vector<1x256xf32>,
    %c0_322 = arith.constant 0 : index
    %c0_323 = arith.constant 0 : index
    %747 = vector.load %arg2[%c0_322, %c0_323] : memref<8x64xbf16, #tpu.memory_space<vmem>>, vector<8x64xbf16>
    %c0_324 = arith.constant 0 : index
    %c0_325 = arith.constant 0 : index
    %748 = vector.load %arg7[%c0_324, %c0_325] : memref<64x256xf32, #tpu.memory_space<vmem>>, vector<64x256xf32>
    %749 = arith.truncf %748 : vector<64x256xf32> to vector<64x256xbf16>
    %cst_326 = arith.constant dense<0.000000e+00> : vector<8x256xf32>
    %750 = tpu.matmul %747, %749, %cst_326 {dimension_numbers = #tpu.dot_dimension_numbers<[1], [0], [0], [1], [0, 0, 1, 1], [], []>} : vector<8x64xbf16>, vector<64x256xbf16>, vector<8x256xf32> -> vector<8x256xf32>
    %c0_327 = arith.constant 0 : index
    %c0_328 = arith.constant 0 : index
    %751 = vector.load %arg6[%c0_327, %c0_328] : memref<8x256xf32, #tpu.memory_space<vmem>>, vector<8x256xf32>
    tpu.vector_store %arg6[%c0_327, %c0_328], %750 {strides = array<i32>} : memref<8x256xf32, #tpu.memory_space<vmem>>, vector<8x256xf32>,
    return
  }
  func.func @transform_0(%arg0: i32) -> (i32, i32) {
    %c0_i32 = arith.constant 0 : i32
    %c0_i32_0 = arith.constant 0 : i32
    %c0_i32_1 = arith.constant 0 : i32
    return %c0_i32, %c0_i32_0 : i32, i32
  }
  func.func @transform_1(%arg0: i32) -> (i32, i32) {
    %c0_i32 = arith.constant 0 : i32
    %c0_i32_0 = arith.constant 0 : i32
    %c0_i32_1 = arith.constant 0 : i32
    return %c0_i32, %c0_i32_0 : i32, i32
  }
  func.func @transform_2(%arg0: i32) -> (i32, i32, i32) {
    %c0_i32 = arith.constant 0 : i32
    %c0_i32_0 = arith.constant 0 : i32
    %c0_i32_1 = arith.constant 0 : i32
    return %c0_i32, %c0_i32_0, %arg0 : i32, i32, i32
  }
  func.func @transform_3(%arg0: i32) -> (i32, i32, i32) {
    %c0_i32 = arith.constant 0 : i32
    %c0_i32_0 = arith.constant 0 : i32
    %c0_i32_1 = arith.constant 0 : i32
    return %c0_i32, %c0_i32_0, %arg0 : i32, i32, i32
  }
  func.func @transform_4(%arg0: i32) -> (i32, i32, i32) {
    %c0_i32 = arith.constant 0 : i32
    %c0_i32_0 = arith.constant 0 : i32
    %c0_i32_1 = arith.constant 0 : i32
    return %c0_i32, %c0_i32_0, %arg0 : i32, i32, i32
  }
  func.func @transform_5(%arg0: i32) -> (i32, i32) {
    %c0_i32 = arith.constant 0 : i32
    %c0_i32_0 = arith.constant 0 : i32
    return %c0_i32, %arg0 : i32, i32
  }
}

</mosaic_0001>

<llo_original>
// kernel: tpu_custom_call.1
$region0: #{tpu_custom_call.1}
  #allocation0 [shape = 'u32[]', space=smem, size = 0x4, offset = 0x4, fixed_abs, tag = 'smem constant byte address 0x4 - core index']
  #allocation1 [shape = 'u32[72,128]{1,0:T(1,128)}', space=vmem, size = 0x9000, scoped, tag = 'internal scratch']
  #allocation2 [shape = 'f32[64,256]{1,0:T(8,128)}', space=vmem, size = 0x10000, scoped, tag = 'scratch operand']
  %s0 = inlined_call_operand.hbm [shape: f32[4,15], index: 0, kind: input, shape index: {}]
  %s1 = inlined_call_operand.hbm [shape: bf16[8,64], index: 1, kind: input, shape index: {}]
  %s2 = inlined_call_operand.hbm [shape: f32[3,16,512], index: 2, kind: input, shape index: {}]
  %s3 = inlined_call_operand.hbm [shape: f32[3,1,512], index: 3, kind: input, shape index: {}]
  %s4 = inlined_call_operand.hbm [shape: bf16[4,16,512], index: 4, kind: input, shape index: {}]
  %s5 = inlined_call_operand.hbm [shape: f32[8,512], index: 5, kind: output, shape index: {}]
  %s6 = sld [smem:[#allocation0]]
  $region73: #{tpu_custom_call.1} parent=0
    _
  %s8 = ssub.s32 1, %s6
  %s9 = scalar_select 0, %s8, %s6
  $region1: #{tpu_custom_call.1} parent=0
    #allocation3 [shape = 'u8[2048]{0}', space=smem, size = 0x800, scoped, tag = 'input window, operand 0, single buffered']
    #allocation4 [shape = 's32[2]{0}', space=sflag, size = 0x8, scoped, tag = 'scoped memory for tpu_custom_call.1']
    #allocation5 [shape = 's32[2]{0}', space=sflag, size = 0x8, scoped, tag = 'scoped memory for tpu_custom_call.1']
    #allocation6 [shape = 's32[2]{0}', space=sflag, size = 0x8, scoped, tag = 'scoped memory for tpu_custom_call.1']
    #allocation7 [shape = 'u8[2048]{0}', space=vmem, size = 0x800, scoped, tag = 'input window, operand 1, single buffered']
    #allocation8 [shape = 'u8[98304]{0}', space=vmem, size = 0x18000, scoped, tag = 'input window, operand 2']
    #allocation9 [shape = 's32[2]{0}', space=sflag, size = 0x8, scoped, tag = 'scoped memory for tpu_custom_call.1']
    #allocation10 [shape = 'u8[6144]{0}', space=vmem, size = 0x1800, scoped, tag = 'input window, operand 3']
    #allocation11 [shape = 'u8[65536]{0}', space=vmem, size = 0x10000, scoped, tag = 'input window, operand 4']
    #allocation12 [shape = 's32[2]{0}', space=sflag, size = 0x8, scoped, tag = 'scoped memory for tpu_custom_call.1']
    #allocation13 [shape = 'u8[16384]{0}', space=vmem, size = 0x4000, scoped, tag = 'output window, operand 0']
    %10 = vsyncpa [#allocation6], 0
    %11 = vsyncpa [#allocation4], 0
    %12 = vsyncpa [#allocation9], 0
    %s13 = scalar_lea.sflag [#allocation9], 1
    %14 = vsyncpa %s13, 0
    %15 = vsyncpa [#allocation12], 0
    %s16 = scalar_lea.sflag [#allocation12], 1
    %17 = vsyncpa %s16, 0
    %18 = vsyncpa [#allocation5], 0
    %s19 = scalar_lea.sflag [#allocation5], 1
    %20 = vsyncpa %s19, 0
    loop: start=0, step=1, limit=4
    $region2: #{tpu_custom_call.1} parent=1 // loop_pre_header
      _
    $region3: #{tpu_custom_call.1} parent=1 // loop_header
      %s22 = sphi 0, %s26
      %p23 = scmp.ge.s32.totalorder %s22, 4
      %s30 = sphi 0, %s30
      %s32 = sphi 0, %s30
      %s33 = sphi 0, %s32
      %s47 = sphi 0, %s33
      %s51 = sphi 0, %s51
      %s53 = sphi 0, %s51
      %s54 = sphi 0, %s53
      %s68 = sphi 0, %s54
      %s74 = sphi 0, %s76
      %s77 = sphi 0, %s74
      %s78 = sphi 0, %s77
      %s94 = sphi 0, %s78
      %s100 = sphi 0, %s102
      %s103 = sphi 0, %s100
      %s104 = sphi 0, %s103
      %s120 = sphi 0, %s104
      %s126 = sphi 0, %s128
      %s129 = sphi 0, %s126
      %s130 = sphi 0, %s129
      %s146 = sphi 0, %s130
      %s152 = sphi 0, %s154
      %s155 = sphi 0, %s152
      %s156 = sphi 0, %s155
      %s172 = sphi 0, %s156
    $region4: #{tpu_custom_call.1} parent=1 // loop_header_branch
      %25 = sbr.rel (%p23) target = $region8
    $region5: #{tpu_custom_call.1} parent=1 // loop_body
      %s27 = ssub.s32 %s22, 1
      %s28 = ssub.s32 %s22, 2
      %s29 = sadd.s32 %s22, 1
      %s31 = sadd.s32 %s30, 1
      %p34 = scmp.eq.s32.totalorder %s22, 1
      %p35 = scmp.ne.s32.totalorder %s30, %s32
      %p36 = scmp.eq.s32.totalorder %s22, 0
      %p37 = por %p35, %p36
      %p38 = scmp.ne.s32.totalorder %s30, %s32
      %p39 = scmp.eq.s32.totalorder %s27, 1
      %p40 = por %p38, %p39
      %p41 = scmp.ne.s32.totalorder %s32, %s33
      %p42 = scmp.eq.s32.totalorder %s27, 0
      %p43 = por %p41, %p42
      %p44 = scmp.ne.s32.totalorder %s32, %s33
      %p45 = scmp.eq.s32.totalorder %s28, 1
      %p46 = por %p44, %p45
      %p48 = scmp.ne.s32.totalorder %s33, %s47
      %p49 = scmp.eq.s32.totalorder %s28, 0
      %p50 = por %p48, %p49
      %s52 = sadd.s32 %s51, 1
      %p55 = scmp.eq.s32.totalorder %s22, 1
      %p56 = scmp.ne.s32.totalorder %s51, %s53
      %p57 = scmp.eq.s32.totalorder %s22, 0
      %p58 = por %p56, %p57
      %p59 = scmp.ne.s32.totalorder %s51, %s53
      %p60 = scmp.eq.s32.totalorder %s27, 1
      %p61 = por %p59, %p60
      %p62 = scmp.ne.s32.totalorder %s53, %s54
      %p63 = scmp.eq.s32.totalorder %s27, 0
      %p64 = por %p62, %p63
      %p65 = scmp.ne.s32.totalorder %s53, %s54
      %p66 = scmp.eq.s32.totalorder %s28, 1
      %p67 = por %p65, %p66
      %p69 = scmp.ne.s32.totalorder %s54, %s68
      %p70 = scmp.eq.s32.totalorder %s28, 0
      %p71 = por %p69, %p70
      %s72 = ssub.s32 %s22, %s29
      %p73 = scmp.eq.s32.totalorder %s72, 0
      %s75 = sadd.s32 %s74, 1
      %s76 = scalar_select %p73, %s74, %s75
      %p79 = pneg %p73
      %p80 = scmp.eq.s32.totalorder %s22, 1
      %p81 = por %p79, %p80
      %p82 = scmp.ne.s32.totalorder %s74, %s77
      %p83 = scmp.eq.s32.totalorder %s22, 0
      %p84 = por %p82, %p83
      %p85 = scmp.ne.s32.totalorder %s74, %s77
      %p86 = scmp.eq.s32.totalorder %s27, 1
      %p87 = por %p85, %p86
      %p88 = scmp.ne.s32.totalorder %s77, %s78
      %p89 = scmp.eq.s32.totalorder %s27, 0
      %p90 = por %p88, %p89
      %p91 = scmp.ne.s32.totalorder %s77, %s78
      %p92 = scmp.eq.s32.totalorder %s28, 1
      %p93 = por %p91, %p92
      %p95 = scmp.ne.s32.totalorder %s78, %s94
      %p96 = scmp.eq.s32.totalorder %s28, 0
      %p97 = por %p95, %p96
      %s98 = ssub.s32 %s22, %s29
      %p99 = scmp.eq.s32.totalorder %s98, 0
      %s101 = sadd.s32 %s100, 1
      %s102 = scalar_select %p99, %s100, %s101
      %p105 = pneg %p99
      %p106 = scmp.eq.s32.totalorder %s22, 1
      %p107 = por %p105, %p106
      %p108 = scmp.ne.s32.totalorder %s100, %s103
      %p109 = scmp.eq.s32.totalorder %s22, 0
      %p110 = por %p108, %p109
      %p111 = scmp.ne.s32.totalorder %s100, %s103
      %p112 = scmp.eq.s32.totalorder %s27, 1
      %p113 = por %p111, %p112
      %p114 = scmp.ne.s32.totalorder %s103, %s104
      %p115 = scmp.eq.s32.totalorder %s27, 0
      %p116 = por %p114, %p115
      %p117 = scmp.ne.s32.totalorder %s103, %s104
      %p118 = scmp.eq.s32.totalorder %s28, 1
      %p119 = por %p117, %p118
      %p121 = scmp.ne.s32.totalorder %s104, %s120
      %p122 = scmp.eq.s32.totalorder %s28, 0
      %p123 = por %p121, %p122
      %s124 = ssub.s32 %s22, %s29
      %p125 = scmp.eq.s32.totalorder %s124, 0
      %s127 = sadd.s32 %s126, 1
      %s128 = scalar_select %p125, %s126, %s127
      %p131 = pneg %p125
      %p132 = scmp.eq.s32.totalorder %s22, 1
      %p133 = por %p131, %p132
      %p134 = scmp.ne.s32.totalorder %s126, %s129
      %p135 = scmp.eq.s32.totalorder %s22, 0
      %p136 = por %p134, %p135
      %p137 = scmp.ne.s32.totalorder %s126, %s129
      %p138 = scmp.eq.s32.totalorder %s27, 1
      %p139 = por %p137, %p138
      %p140 = scmp.ne.s32.totalorder %s129, %s130
      %p141 = scmp.eq.s32.totalorder %s27, 0
      %p142 = por %p140, %p141
      %p143 = scmp.ne.s32.totalorder %s129, %s130
      %p144 = scmp.eq.s32.totalorder %s28, 1
      %p145 = por %p143, %p144
      %p147 = scmp.ne.s32.totalorder %s130, %s146
      %p148 = scmp.eq.s32.totalorder %s28, 0
      %p149 = por %p147, %p148
      %s150 = ssub.s32 %s22, %s29
      %p151 = scmp.eq.s32.totalorder %s150, 0
      %s153 = sadd.s32 %s152, 1
      %s154 = scalar_select %p151, %s152, %s153
      %p157 = pneg %p151
      %p158 = scmp.eq.s32.totalorder %s22, 1
      %p159 = por %p157, %p158
      %p160 = scmp.ne.s32.totalorder %s152, %s155
      %p161 = scmp.eq.s32.totalorder %s22, 0
      %p162 = por %p160, %p161
      %p163 = scmp.ne.s32.totalorder %s152, %s155
      %p164 = scmp.eq.s32.totalorder %s27, 1
      %p165 = por %p163, %p164
      %p166 = scmp.ne.s32.totalorder %s155, %s156
      %p167 = scmp.eq.s32.totalorder %s27, 0
      %p168 = por %p166, %p167
      %p169 = scmp.ne.s32.totalorder %s155, %s156
      %p170 = scmp.eq.s32.totalorder %s28, 1
      %p171 = por %p169, %p170
      %p173 = scmp.ne.s32.totalorder %s156, %s172
      %p174 = scmp.eq.s32.totalorder %s28, 0
      %p175 = por %p173, %p174
      %p176 = scmp.le.s32.totalorder 1, %s22
      %p177 = scmp.lt.s32.totalorder %s22, 3
      %p178 = pnand %p176, %p177
      %p179 = pneg %p178
      // Predicated region
      $region9: #{tpu_custom_call.1} parent=5 // pred_check
        _
      $region10: #{tpu_custom_call.1} parent=5 // pred_check_branch
        %181 = sbr.rel (%p178) target = $region12
      $region11: #{tpu_custom_call.1} parent=5 // pred_region
        %s182 = ssub.s32 %s22, 1
        // Predicated region
        $region13: #{tpu_custom_call.1} parent=11 // pred_check
          %p183 = pneg %p43
        $region14: #{tpu_custom_call.1} parent=11 // pred_check_branch
          %185 = sbr.rel (%p183) target = $region16
        $region15: #{tpu_custom_call.1} parent=11 // pred_region
          %187 = vsyncadd [#allocation6], 0
          %s189 = sshll.u32 %s0, 4
          %s190 = int_to_ptr.hbm [resolvable:$true] %s189
          %192 = dma.hbm_to_smem %s190, 64, [#allocation3], [#allocation6]
        $region16: #{tpu_custom_call.1} parent=11 // pred_fallthru
          _
        // Predicated region
        $region17: #{tpu_custom_call.1} parent=11 // pred_check
          %p193 = pneg %p64
        $region18: #{tpu_custom_call.1} parent=11 // pred_check_branch
          %195 = sbr.rel (%p193) target = $region20
        $region19: #{tpu_custom_call.1} parent=11 // pred_region
          %197 = vsyncadd [#allocation4], 0
          %s199 = sshll.u32 %s1, 4
          %s200 = int_to_ptr.hbm [resolvable:$true] %s199
          %s201 = sshll.u32 [#allocation7], 4
          %s202 = int_to_ptr.vmem [resolvable:$true] %s201
          %204 = dma.hbm_to_vmem [thread:$0]  %s200, 64, %s202, [#allocation4]
        $region20: #{tpu_custom_call.1} parent=11 // pred_fallthru
          _
      $region12: #{tpu_custom_call.1} parent=5 // pred_fallthru
        _
      %p205 = scmp.lt.s32.totalorder %s22, 2
      // Predicated region
      $region21: #{tpu_custom_call.1} parent=5 // pred_check
        %p206 = pneg %p205
      $region22: #{tpu_custom_call.1} parent=5 // pred_check_branch
        %208 = sbr.rel (%p206) target = $region24
      $region23: #{tpu_custom_call.1} parent=5 // pred_region
        // Predicated region
        $region25: #{tpu_custom_call.1} parent=23 // pred_check
          %p209 = pneg %p84
        $region26: #{tpu_custom_call.1} parent=23 // pred_check_branch
          %211 = sbr.rel (%p209) target = $region28
        $region27: #{tpu_custom_call.1} parent=23 // pred_region
          %s212 = sand.u32 %s22, 1
          %s213 = scalar_lea.sflag [#allocation9], %s212
          %s214 = sand.u32 %s74, 1
          %s215 = smul.addr %s214, 96
          %s216 = scalar_lea.vmem [#allocation8], %s215
          %s217 = smul.u32 2, %s22
          %219 = vsyncadd %s213, 0
          %s220 = smul.addr %s217, 8
          %s221 = scalar_lea.hbm %s2, %s220
          %s222 = sshll.u32 %s221, 4
          %s223 = int_to_ptr.hbm [resolvable:$true] %s222
          %s224 = sshll.u32 %s216, 4
          %s225 = int_to_ptr.vmem [resolvable:$true] %s224
          %230 = dma.hbm_to_vmem [thread:$0]  %s223, 1536, %s225, %s213, 512, 256, 16
        $region28: #{tpu_custom_call.1} parent=23 // pred_fallthru
          _
        // Predicated region
        $region29: #{tpu_custom_call.1} parent=23 // pred_check
          %p231 = pneg %p110
        $region30: #{tpu_custom_call.1} parent=23 // pred_check_branch
          %233 = sbr.rel (%p231) target = $region32
        $region31: #{tpu_custom_call.1} parent=23 // pred_region
          %s234 = sand.u32 %s22, 1
          %s235 = scalar_lea.sflag [#allocation9], %s234
          %s236 = sand.u32 %s100, 1
          %s237 = smul.addr %s236, 6
          %s238 = scalar_lea.vmem [#allocation10], %s237
          %s239 = smul.u32 2, %s22
          %241 = vsyncadd %s235, 0
          %s242 = scalar_lea.hbm %s3, %s239
          %s243 = sshll.u32 %s242, 4
          %s244 = int_to_ptr.hbm [resolvable:$true] %s243
          %s245 = sshll.u32 %s238, 4
          %s246 = int_to_ptr.vmem [resolvable:$true] %s245
          %251 = dma.hbm_to_vmem [thread:$0]  %s244, 96, %s246, %s235, 64, 32, 2
        $region32: #{tpu_custom_call.1} parent=23 // pred_fallthru
          _
        // Predicated region
        $region33: #{tpu_custom_call.1} parent=23 // pred_check
          %p252 = pneg %p136
        $region34: #{tpu_custom_call.1} parent=23 // pred_check_branch
          %254 = sbr.rel (%p252) target = $region36
        $region35: #{tpu_custom_call.1} parent=23 // pred_region
          %s255 = sand.u32 %s126, 1
          %s256 = scalar_lea.sflag [#allocation12], %s255
          %s257 = sand.u32 %s126, 1
          %s258 = smul.addr %s257, 64
          %s259 = scalar_lea.vmem [#allocation11], %s258
          %s260 = smul.u32 2, %s22
          %262 = vsyncadd %s256, 0
          %s263 = smul.addr %s260, 4
          %s264 = scalar_lea.hbm %s4, %s263
          %s265 = sshll.u32 %s264, 4
          %s266 = int_to_ptr.hbm [resolvable:$true] %s265
          %s267 = sshll.u32 %s259, 4
          %s268 = int_to_ptr.vmem [resolvable:$true] %s267
          %273 = dma.hbm_to_vmem [thread:$0]  %s266, 1024, %s268, %s256, 256, 128, 8
        $region36: #{tpu_custom_call.1} parent=23 // pred_fallthru
          _
      $region24: #{tpu_custom_call.1} parent=5 // pred_fallthru
        _
      %p274 = scmp.le.s32.totalorder 1, %s22
      %p275 = scmp.lt.s32.totalorder %s22, 3
      %p276 = pnand %p274, %p275
      %p277 = pneg %p276
      // Predicated region
      $region37: #{tpu_custom_call.1} parent=5 // pred_check
        _
      $region38: #{tpu_custom_call.1} parent=5 // pred_check_branch
        %279 = sbr.rel (%p276) target = $region40
      $region39: #{tpu_custom_call.1} parent=5 // pred_region
        %s280 = ssub.s32 %s22, 1
        // Predicated region
        $region41: #{tpu_custom_call.1} parent=39 // pred_check
          %p281 = pneg %p43
        $region42: #{tpu_custom_call.1} parent=39 // pred_check_branch
          %283 = sbr.rel (%p281) target = $region44
        $region43: #{tpu_custom_call.1} parent=39 // pred_region
          %285 = dma.done [#allocation6], 64
        $region44: #{tpu_custom_call.1} parent=39 // pred_fallthru
          _
        // Predicated region
        $region45: #{tpu_custom_call.1} parent=39 // pred_check
          %p286 = pneg %p64
        $region46: #{tpu_custom_call.1} parent=39 // pred_check_branch
          %288 = sbr.rel (%p286) target = $region48
        $region47: #{tpu_custom_call.1} parent=39 // pred_region
          %290 = dma.done [#allocation4], 64
        $region48: #{tpu_custom_call.1} parent=39 // pred_fallthru
          _
        %s291 = sand.u32 %s27, 1
        %s292 = scalar_lea.sflag [#allocation9], %s291
        %s293 = sand.u32 %s77, 1
        %s294 = smul.addr %s293, 96
        %s295 = scalar_lea.vmem [#allocation8], %s294
        // Predicated region
        $region49: #{tpu_custom_call.1} parent=39 // pred_check
          %p296 = pneg %p90
        $region50: #{tpu_custom_call.1} parent=39 // pred_check_branch
          %298 = sbr.rel (%p296) target = $region52
        $region51: #{tpu_custom_call.1} parent=39 // pred_region
          %300 = dma.done %s292, 1536
        $region52: #{tpu_custom_call.1} parent=39 // pred_fallthru
          _
        %s301 = sand.u32 %s27, 1
        %s302 = scalar_lea.sflag [#allocation9], %s301
        %s303 = sand.u32 %s103, 1
        %s304 = smul.addr %s303, 6
        %s305 = scalar_lea.vmem [#allocation10], %s304
        // Predicated region
        $region53: #{tpu_custom_call.1} parent=39 // pred_check
          %p306 = pneg %p116
        $region54: #{tpu_custom_call.1} parent=39 // pred_check_branch
          %308 = sbr.rel (%p306) target = $region56
        $region55: #{tpu_custom_call.1} parent=39 // pred_region
          %310 = dma.done %s302, 96
        $region56: #{tpu_custom_call.1} parent=39 // pred_fallthru
          _
        %s311 = sand.u32 %s129, 1
        %s312 = scalar_lea.sflag [#allocation12], %s311
        %s313 = sand.u32 %s129, 1
        %s314 = smul.addr %s313, 64
        %s315 = scalar_lea.vmem [#allocation11], %s314
        // Predicated region
        $region57: #{tpu_custom_call.1} parent=39 // pred_check
          %p316 = pneg %p142
        $region58: #{tpu_custom_call.1} parent=39 // pred_check_branch
          %318 = sbr.rel (%p316) target = $region60
        $region59: #{tpu_custom_call.1} parent=39 // pred_region
          %320 = dma.done %s312, 1024
        $region60: #{tpu_custom_call.1} parent=39 // pred_fallthru
          _
        %321 = sfence
        %p322 = pneg %p43
        %p323 = pneg %p40
        %p324 = pneg %p64
        %p325 = pneg %p61
        %s326 = sand.u32 %s27, 1
        %s327 = scalar_lea.sflag [#allocation9], %s326
        %s328 = sand.u32 %s77, 1
        %s329 = smul.addr %s328, 96
        %s330 = scalar_lea.vmem [#allocation8], %s329
        %p331 = pneg %p90
        %p332 = pneg %p87
        %s333 = sand.u32 %s27, 1
        %s334 = scalar_lea.sflag [#allocation9], %s333
        %s335 = sand.u32 %s103, 1
        %s336 = smul.addr %s335, 6
        %s337 = scalar_lea.vmem [#allocation10], %s336
        %p338 = pneg %p116
        %p339 = pneg %p113
        %s340 = sand.u32 %s129, 1
        %s341 = scalar_lea.sflag [#allocation12], %s340
        %s342 = sand.u32 %s129, 1
        %s343 = smul.addr %s342, 64
        %s344 = scalar_lea.vmem [#allocation11], %s343
        %p345 = pneg %p142
        %p346 = pneg %p139
        %p347 = pneg %p168
        %p348 = pneg %p165
        %s349 = sand.u32 %s155, 1
        %s350 = scalar_lea.sflag [#allocation5], %s349
        %s351 = sand.u32 %s155, 1
        %s352 = smul.addr %s351, 16
        %s353 = scalar_lea.vmem [#allocation13], %s352
        %s354 = smul.u32 2, %s27
        %s355 = smul.u32 2, %s27
        %s356 = smul.u32 2, %s27
        %s357 = smul.u32 2, %s27
        %v359 = vld [vmem:[%s295] sm:$0xff]
        %v360 = vld [vmem:[%s295 + $0x8] sm:$0xff]
        %v361 = vld [vmem:[%s295 + $0x10] sm:$0xff]
        %v362 = vld [vmem:[%s295 + $0x18] sm:$0xff]
        %v363 = vld [vmem:[%s305] sm:$0x3]
        %v365 = vperm.slane %v363, 0
        %v366 = vperm.slane %v363, 1
        %v369 = vsub.f32 %v359, %v365
        %v370 = vsub.f32 %v360, %v366
        %v371 = vsub.f32 %v361, %v365
        %v372 = vsub.f32 %v362, %v366
        %s373 = scalar_lea.vmem %s295, 32 [#allocation8]
        %v374 = vld [vmem:[%s373] sm:$0xff]
        %v375 = vld [vmem:[%s373 + $0x8] sm:$0xff]
        %v376 = vld [vmem:[%s373 + $0x10] sm:$0xff]
        %v377 = vld [vmem:[%s373 + $0x18] sm:$0xff]
        %s378 = scalar_lea.vmem %s305, 2 [#allocation10]
        %v379 = vld [vmem:[%s378] sm:$0x3]
        %v381 = vperm.slane %v379, 0
        %v382 = vperm.slane %v379, 1
        %v385 = vsub.f32 %v374, %v381
        %v386 = vsub.f32 %v375, %v382
        %v387 = vsub.f32 %v376, %v381
        %v388 = vsub.f32 %v377, %v382
        %s389 = scalar_lea.vmem %s295, 64 [#allocation8]
        %v390 = vld [vmem:[%s389] sm:$0xff]
        %v391 = vld [vmem:[%s389 + $0x8] sm:$0xff]
        %v392 = vld [vmem:[%s389 + $0x10] sm:$0xff]
        %v393 = vld [vmem:[%s389 + $0x18] sm:$0xff]
        %s394 = scalar_lea.vmem %s305, 4 [#allocation10]
        %v395 = vld [vmem:[%s394] sm:$0x3]
        %v397 = vperm.slane %v395, 0
        %v398 = vperm.slane %v395, 1
        %v401 = vsub.f32 %v390, %v397
        %v402 = vsub.f32 %v391, %v398
        %v403 = vsub.f32 %v392, %v397
        %v404 = vsub.f32 %v393, %v398
        %v405 = vmul.f32 %v369, %v369
        %v406 = vmul.f32 %v370, %v370
        %v407 = vmul.f32 %v371, %v371
        %v408 = vmul.f32 %v372, %v372
        %v409 = vmul.f32 %v385, %v385
        %v410 = vmul.f32 %v386, %v386
        %v411 = vmul.f32 %v387, %v387
        %v412 = vmul.f32 %v388, %v388
        %v413 = vadd.f32 %v405, %v409
        %v414 = vadd.f32 %v406, %v410
        %v415 = vadd.f32 %v407, %v411
        %v416 = vadd.f32 %v408, %v412
        %v417 = vmul.f32 %v401, %v401
        %v418 = vmul.f32 %v402, %v402
        %v419 = vmul.f32 %v403, %v403
        %v420 = vmul.f32 %v404, %v404
        %v421 = vadd.f32 %v413, %v417
        %v422 = vadd.f32 %v414, %v418
        %v423 = vadd.f32 %v415, %v419
        %v424 = vadd.f32 %v416, %v420
        %v425 = vld [vmem:[%s315] sm:$0xff]
        %v426 = vld [vmem:[%s315 + $0x8] sm:$0xff]
        %v427 = vld [vmem:[%s315 + $0x10] sm:$0xff]
        %v428 = vld [vmem:[%s315 + $0x18] sm:$0xff]
        %v429 = vld [vmem:[%s315 + $0x20] sm:$0xff]
        %v430 = vld [vmem:[%s315 + $0x28] sm:$0xff]
        %v431 = vld [vmem:[%s315 + $0x30] sm:$0xff]
        %v432 = vld [vmem:[%s315 + $0x38] sm:$0xff]
        %v433 = vunpack.c.l.bf16 %v425
        %v434 = vunpack.c.h.bf16 %v425
        %v435 = vunpack.c.l.bf16 %v426
        %v436 = vunpack.c.h.bf16 %v426
        %v437 = vunpack.c.l.bf16 %v427
        %v438 = vunpack.c.h.bf16 %v427
        %v439 = vunpack.c.l.bf16 %v428
        %v440 = vunpack.c.h.bf16 %v428
        %v441 = vunpack.c.l.bf16 %v429
        %v442 = vunpack.c.h.bf16 %v429
        %v443 = vunpack.c.l.bf16 %v430
        %v444 = vunpack.c.h.bf16 %v430
        %v445 = vunpack.c.l.bf16 %v431
        %v446 = vunpack.c.h.bf16 %v431
        %v447 = vunpack.c.l.bf16 %v432
        %v448 = vunpack.c.h.bf16 %v432
        %449 = vst [vmem:[#allocation2 + $0x70] sm:$0xf0] 0.0
        %450 = vst [vmem:[#allocation2 + $0x78] sm:$0xf0] 0.0
        %s451 = sld [smem:[#allocation3]]
        %s452 = sld [smem:[#allocation3 + $0x80]]
        %s453 = sld [smem:[#allocation3 + $0x100]]
        %s454 = sld [smem:[#allocation3 + $0x180]]
        %v455 = vstv %s451
        %v456 = vmul.f32 %v369, %v455
        %v457 = vmul.f32 %v370, %v455
        %v458 = vmul.f32 %v371, %v455
        %v459 = vmul.f32 %v372, %v455
        %v460 = vstv %s452
        %v461 = vmul.f32 %v385, %v460
        %v462 = vmul.f32 %v386, %v460
        %v463 = vmul.f32 %v387, %v460
        %v464 = vmul.f32 %v388, %v460
        %v465 = vadd.f32 %v456, %v461
        %v466 = vadd.f32 %v457, %v462
        %v467 = vadd.f32 %v458, %v463
        %v468 = vadd.f32 %v459, %v464
        %v469 = vstv %s453
        %v470 = vmul.f32 %v401, %v469
        %v471 = vmul.f32 %v402, %v469
        %v472 = vmul.f32 %v403, %v469
        %v473 = vmul.f32 %v404, %v469
        %v474 = vadd.f32 %v465, %v470
        %v475 = vadd.f32 %v466, %v471
        %v476 = vadd.f32 %v467, %v472
        %v477 = vadd.f32 %v468, %v473
        %v478 = vadd.f32 %v421, %v474
        %v479 = vadd.f32 %v422, %v475
        %v480 = vadd.f32 %v423, %v476
        %v481 = vadd.f32 %v424, %v477
        %v482 = vstv %s454
        %v483 = vadd.f32 %v478, %v482
        %v484 = vadd.f32 %v479, %v482
        %v485 = vadd.f32 %v480, %v482
        %v486 = vadd.f32 %v481, %v482
        %v487 = vmax.f32 %v483, 0.0
        %v488 = vmax.f32 %v484, 0.0
        %v489 = vmax.f32 %v485, 0.0
        %v490 = vmax.f32 %v486, 0.0
        %v491 = vrsqrt.pop %v487
        %v492 = vmul.f32 %v491, %v487
        %v493 = vmul.f32 %v492, %v491
        %v494 = vmul.f32 0.5, %v493
        %v495 = vsub.f32 1.5, %v494
        %v496 = vmul.f32 %v491, %v495
        %v497 = vmul.f32 %v487, %v496
        %vm498 = vcmp.eq.f32.partialorder %v487, inf
        %v499 = vsel %vm498, %v487, %v497
        %vm500 = vcmp.eq.f32.partialorder %v487, 0.0
        %v501 = vand.u32 %v487, 2147483648
        %v502 = vsel %vm500, %v501, %v499
        %v503 = vrsqrt.pop %v488
        %v504 = vmul.f32 %v503, %v488
        %v505 = vmul.f32 %v504, %v503
        %v506 = vmul.f32 0.5, %v505
        %v507 = vsub.f32 1.5, %v506
        %v508 = vmul.f32 %v503, %v507
        %v509 = vmul.f32 %v488, %v508
        %vm510 = vcmp.eq.f32.partialorder %v488, inf
        %v511 = vsel %vm510, %v488, %v509
        %vm512 = vcmp.eq.f32.partialorder %v488, 0.0
        %v513 = vand.u32 %v488, 2147483648
        %v514 = vsel %vm512, %v513, %v511
        %v515 = vrsqrt.pop %v489
        %v516 = vmul.f32 %v515, %v489
        %v517 = vmul.f32 %v516, %v515
        %v518 = vmul.f32 0.5, %v517
        %v519 = vsub.f32 1.5, %v518
        %v520 = vmul.f32 %v515, %v519
        %v521 = vmul.f32 %v489, %v520
        %vm522 = vcmp.eq.f32.partialorder %v489, inf
        %v523 = vsel %vm522, %v489, %v521
        %vm524 = vcmp.eq.f32.partialorder %v489, 0.0
        %v525 = vand.u32 %v489, 2147483648
        %v526 = vsel %vm524, %v525, %v523
        %v527 = vrsqrt.pop %v490
        %v528 = vmul.f32 %v527, %v490
        %v529 = vmul.f32 %v528, %v527
        %v530 = vmul.f32 0.5, %v529
        %v531 = vsub.f32 1.5, %v530
        %v532 = vmul.f32 %v527, %v531
        %v533 = vmul.f32 %v490, %v532
        %vm534 = vcmp.eq.f32.partialorder %v490, inf
        %v535 = vsel %vm534, %v490, %v533
        %vm536 = vcmp.eq.f32.partialorder %v490, 0.0
        %v537 = vand.u32 %v490, 2147483648
        %v538 = vsel %vm536, %v537, %v535
        %v539 = vmul.f32 %v502, 10.0
        %v540 = vmul.f32 %v514, 10.0
        %v541 = vmul.f32 %v526, 10.0
        %v542 = vmul.f32 %v538, 10.0
        %v543 = vsub.f32 1.0, %v539
        %v544 = vsub.f32 1.0, %v540
        %v545 = vsub.f32 1.0, %v541
        %v546 = vsub.f32 1.0, %v542
        %v547 = vmax.f32 %v543, 0.0
        %v548 = vmax.f32 %v544, 0.0
        %v549 = vmax.f32 %v545, 0.0
        %v550 = vmax.f32 %v546, 0.0
        %v551 = vmul.f32 %v433, %v547
        %v552 = vmul.f32 %v434, %v548
        %v553 = vmul.f32 %v435, %v549
        %v554 = vmul.f32 %v436, %v550
        %v555 = vadd.f32 %v551, %v553
        %v556 = vrot.slane %v555, 4
        %v557 = vadd.f32 %v555, %v556
        %v558 = vrot.slane %v557, 2
        %v559 = vadd.f32 %v557, %v558
        %v560 = vrot.slane %v559, 1
        %v561 = vadd.f32 %v559, %v560
        %v562 = vadd.f32 %v552, %v554
        %v563 = vrot.slane %v562, 4
        %v564 = vadd.f32 %v562, %v563
        %v565 = vrot.slane %v564, 2
        %v566 = vadd.f32 %v564, %v565
        %v567 = vrot.slane %v566, 1
        %v568 = vadd.f32 %v566, %v567
        %v571 = vrot.slane %v568, 7
        %vm572 = vcmask 1040384
        %v573 = vsel %vm572, %v561, %v571
        %v575 = vlaneseq
        %vm576 = vcmp.ge.s32.totalorder %v575, 0
        %vm577 = vcmp.lt.s32.totalorder %v575, 256
        %vm578 = vmand %vm576, %vm577
        %579 = vst.msk [vmem:[#allocation2] ss:$8 sm:$0x3] %vm578, %v573
        %580 = vst.msk [vmem:[#allocation2] ss:$8 sm:$0x0] %vm578, %v573
        %v581 = vmul.f32 %v437, %v547
        %v582 = vmul.f32 %v438, %v548
        %v583 = vmul.f32 %v439, %v549
        %v584 = vmul.f32 %v440, %v550
        %v585 = vadd.f32 %v581, %v583
        %v586 = vrot.slane %v585, 4
        %v587 = vadd.f32 %v585, %v586
        %v588 = vrot.slane %v587, 2
        %v589 = vadd.f32 %v587, %v588
        %v590 = vrot.slane %v589, 1
        %v591 = vadd.f32 %v589, %v590
        %v592 = vadd.f32 %v582, %v584
        %v593 = vrot.slane %v592, 4
        %v594 = vadd.f32 %v592, %v593
        %v595 = vrot.slane %v594, 2
        %v596 = vadd.f32 %v594, %v595
        %v597 = vrot.slane %v596, 1
        %v598 = vadd.f32 %v596, %v597
        %v601 = vrot.slane %v598, 7
        %v602 = vsel %vm572, %v591, %v601
        %s604 = scalar_lea.vmem [#allocation2], 1
        %605 = vst.msk [vmem:[%s604] ss:$8 sm:$0x3] %vm578, %v602
        %606 = vst.msk [vmem:[%s604] ss:$8 sm:$0x0] %vm578, %v602
        %v607 = vmul.f32 %v441, %v547
        %v608 = vmul.f32 %v442, %v548
        %v609 = vmul.f32 %v443, %v549
        %v610 = vmul.f32 %v444, %v550
        %v611 = vadd.f32 %v607, %v609
        %v612 = vrot.slane %v611, 4
        %v613 = vadd.f32 %v611, %v612
        %v614 = vrot.slane %v613, 2
        %v615 = vadd.f32 %v613, %v614
        %v616 = vrot.slane %v615, 1
        %v617 = vadd.f32 %v615, %v616
        %v618 = vadd.f32 %v608, %v610
        %v619 = vrot.slane %v618, 4
        %v620 = vadd.f32 %v618, %v619
        %v621 = vrot.slane %v620, 2
        %v622 = vadd.f32 %v620, %v621
        %v623 = vrot.slane %v622, 1
        %v624 = vadd.f32 %v622, %v623
        %v627 = vrot.slane %v624, 7
        %v628 = vsel %vm572, %v617, %v627
        %s630 = scalar_lea.vmem [#allocation2], 2
        %631 = vst.msk [vmem:[%s630] ss:$8 sm:$0x3] %vm578, %v628
        %632 = vst.msk [vmem:[%s630] ss:$8 sm:$0x0] %vm578, %v628
        %v633 = vmul.f32 %v445, %v547
        %v634 = vmul.f32 %v446, %v548
        %v635 = vmul.f32 %v447, %v549
        %v636 = vmul.f32 %v448, %v550
        %v637 = vadd.f32 %v633, %v635
        %v638 = vrot.slane %v637, 4
        %v639 = vadd.f32 %v637, %v638
        %v640 = vrot.slane %v639, 2
        %v641 = vadd.f32 %v639, %v640
        %v642 = vrot.slane %v641, 1
        %v643 = vadd.f32 %v641, %v642
        %v644 = vadd.f32 %v634, %v636
        %v645 = vrot.slane %v644, 4
        %v646 = vadd.f32 %v644, %v645
        %v647 = vrot.slane %v646, 2
        %v648 = vadd.f32 %v646, %v647
        %v649 = vrot.slane %v648, 1
        %v650 = vadd.f32 %v648, %v649
        %v653 = vrot.slane %v650, 7
        %v654 = vsel %vm572, %v643, %v653
        %s656 = scalar_lea.vmem [#allocation2], 3
        %657 = vst.msk [vmem:[%s656] ss:$8 sm:$0x3] %vm578, %v654
        %658 = vst.msk [vmem:[%s656] ss:$8 sm:$0x0] %vm578, %v654
        %s659 = sld [smem:[#allocation3 + $0x1]]
        %s660 = sld [smem:[#allocation3 + $0x81]]
        %s661 = sld [smem:[#allocation3 + $0x101]]
        %s662 = sld [smem:[#allocation3 + $0x181]]
        %v663 = vstv %s659
        %v664 = vmul.f32 %v369, %v663
        %v665 = vmul.f32 %v370, %v663
        %v666 = vmul.f32 %v371, %v663
        %v667 = vmul.f32 %v372, %v663
        %v668 = vstv %s660
        %v669 = vmul.f32 %v385, %v668
        %v670 = vmul.f32 %v386, %v668
        %v671 = vmul.f32 %v387, %v668
        %v672 = vmul.f32 %v388, %v668
        %v673 = vadd.f32 %v664, %v669
        %v674 = vadd.f32 %v665, %v670
        %v675 = vadd.f32 %v666, %v671
        %v676 = vadd.f32 %v667, %v672
        %v677 = vstv %s661
        %v678 = vmul.f32 %v401, %v677
        %v679 = vmul.f32 %v402, %v677
        %v680 = vmul.f32 %v403, %v677
        %v681 = vmul.f32 %v404, %v677
        %v682 = vadd.f32 %v673, %v678
        %v683 = vadd.f32 %v674, %v679
        %v684 = vadd.f32 %v675, %v680
        %v685 = vadd.f32 %v676, %v681
        %v686 = vadd.f32 %v421, %v682
        %v687 = vadd.f32 %v422, %v683
        %v688 = vadd.f32 %v423, %v684
        %v689 = vadd.f32 %v424, %v685
        %v690 = vstv %s662
        %v691 = vadd.f32 %v686, %v690
        %v692 = vadd.f32 %v687, %v690
        %v693 = vadd.f32 %v688, %v690
        %v694 = vadd.f32 %v689, %v690
        %v695 = vmax.f32 %v691, 0.0
        %v696 = vmax.f32 %v692, 0.0
        %v697 = vmax.f32 %v693, 0.0
        %v698 = vmax.f32 %v694, 0.0
        %v699 = vrsqrt.pop %v695
        %v700 = vmul.f32 %v699, %v695
        %v701 = vmul.f32 %v700, %v699
        %v702 = vmul.f32 0.5, %v701
        %v703 = vsub.f32 1.5, %v702
        %v704 = vmul.f32 %v699, %v703
        %v705 = vmul.f32 %v695, %v704
        %vm706 = vcmp.eq.f32.partialorder %v695, inf
        %v707 = vsel %vm706, %v695, %v705
        %vm708 = vcmp.eq.f32.partialorder %v695, 0.0
        %v709 = vand.u32 %v695, 2147483648
        %v710 = vsel %vm708, %v709, %v707
        %v711 = vrsqrt.pop %v696
        %v712 = vmul.f32 %v711, %v696
        %v713 = vmul.f32 %v712, %v711
        %v714 = vmul.f32 0.5, %v713
        %v715 = vsub.f32 1.5, %v714
        %v716 = vmul.f32 %v711, %v715
        %v717 = vmul.f32 %v696, %v716
        %vm718 = vcmp.eq.f32.partialorder %v696, inf
        %v719 = vsel %vm718, %v696, %v717
        %vm720 = vcmp.eq.f32.partialorder %v696, 0.0
        %v721 = vand.u32 %v696, 2147483648
        %v722 = vsel %vm720, %v721, %v719
        %v723 = vrsqrt.pop %v697
        %v724 = vmul.f32 %v723, %v697
        %v725 = vmul.f32 %v724, %v723
        %v726 = vmul.f32 0.5, %v725
        %v727 = vsub.f32 1.5, %v726
        %v728 = vmul.f32 %v723, %v727
        %v729 = vmul.f32 %v697, %v728
        %vm730 = vcmp.eq.f32.partialorder %v697, inf
        %v731 = vsel %vm730, %v697, %v729
        %vm732 = vcmp.eq.f32.partialorder %v697, 0.0
        %v733 = vand.u32 %v697, 2147483648
        %v734 = vsel %vm732, %v733, %v731
        %v735 = vrsqrt.pop %v698
        %v736 = vmul.f32 %v735, %v698
        %v737 = vmul.f32 %v736, %v735
        %v738 = vmul.f32 0.5, %v737
        %v739 = vsub.f32 1.5, %v738
        %v740 = vmul.f32 %v735, %v739
        %v741 = vmul.f32 %v698, %v740
        %vm742 = vcmp.eq.f32.partialorder %v698, inf
        %v743 = vsel %vm742, %v698, %v741
        %vm744 = vcmp.eq.f32.partialorder %v698, 0.0
        %v745 = vand.u32 %v698, 2147483648
        %v746 = vsel %vm744, %v745, %v743
        %v747 = vmul.f32 %v710, 10.0
        %v748 = vmul.f32 %v722, 10.0
        %v749 = vmul.f32 %v734, 10.0
        %v750 = vmul.f32 %v746, 10.0
        %v751 = vsub.f32 1.0, %v747
        %v752 = vsub.f32 1.0, %v748
        %v753 = vsub.f32 1.0, %v749
        %v754 = vsub.f32 1.0, %v750
        %v755 = vmax.f32 %v751, 0.0
        %v756 = vmax.f32 %v752, 0.0
        %v757 = vmax.f32 %v753, 0.0
        %v758 = vmax.f32 %v754, 0.0
        %v759 = vmul.f32 %v433, %v755
        %v760 = vmul.f32 %v434, %v756
        %v761 = vmul.f32 %v435, %v757
        %v762 = vmul.f32 %v436, %v758
        %v763 = vadd.f32 %v759, %v761
        %v764 = vrot.slane %v763, 4
        %v765 = vadd.f32 %v763, %v764
        %v766 = vrot.slane %v765, 2
        %v767 = vadd.f32 %v765, %v766
        %v768 = vrot.slane %v767, 1
        %v769 = vadd.f32 %v767, %v768
        %v770 = vadd.f32 %v760, %v762
        %v771 = vrot.slane %v770, 4
        %v772 = vadd.f32 %v770, %v771
        %v773 = vrot.slane %v772, 2
        %v774 = vadd.f32 %v772, %v773
        %v775 = vrot.slane %v774, 1
        %v776 = vadd.f32 %v774, %v775
        %v779 = vrot.slane %v776, 7
        %v780 = vsel %vm572, %v769, %v779
        %s782 = scalar_lea.vmem [#allocation2], 4
        %783 = vst.msk [vmem:[%s782] ss:$8 sm:$0x3] %vm578, %v780
        %784 = vst.msk [vmem:[%s782] ss:$8 sm:$0x0] %vm578, %v780
        %v785 = vmul.f32 %v437, %v755
        %v786 = vmul.f32 %v438, %v756
        %v787 = vmul.f32 %v439, %v757
        %v788 = vmul.f32 %v440, %v758
        %v789 = vadd.f32 %v785, %v787
        %v790 = vrot.slane %v789, 4
        %v791 = vadd.f32 %v789, %v790
        %v792 = vrot.slane %v791, 2
        %v793 = vadd.f32 %v791, %v792
        %v794 = vrot.slane %v793, 1
        %v795 = vadd.f32 %v793, %v794
        %v796 = vadd.f32 %v786, %v788
        %v797 = vrot.slane %v796, 4
        %v798 = vadd.f32 %v796, %v797
        %v799 = vrot.slane %v798, 2
        %v800 = vadd.f32 %v798, %v799
        %v801 = vrot.slane %v800, 1
        %v802 = vadd.f32 %v800, %v801
        %v805 = vrot.slane %v802, 7
        %v806 = vsel %vm572, %v795, %v805
        %s808 = scalar_lea.vmem [#allocation2], 5
        %809 = vst.msk [vmem:[%s808] ss:$8 sm:$0x3] %vm578, %v806
        %810 = vst.msk [vmem:[%s808] ss:$8 sm:$0x0] %vm578, %v806
        %v811 = vmul.f32 %v441, %v755
        %v812 = vmul.f32 %v442, %v756
        %v813 = vmul.f32 %v443, %v757
        %v814 = vmul.f32 %v444, %v758
        %v815 = vadd.f32 %v811, %v813
        %v816 = vrot.slane %v815, 4
        %v817 = vadd.f32 %v815, %v816
        %v818 = vrot.slane %v817, 2
        %v819 = vadd.f32 %v817, %v818
        %v820 = vrot.slane %v819, 1
        %v821 = vadd.f32 %v819, %v820
        %v822 = vadd.f32 %v812, %v814
        %v823 = vrot.slane %v822, 4
        %v824 = vadd.f32 %v822, %v823
        %v825 = vrot.slane %v824, 2
        %v826 = vadd.f32 %v824, %v825
        %v827 = vrot.slane %v826, 1
        %v828 = vadd.f32 %v826, %v827
        %v831 = vrot.slane %v828, 7
        %v832 = vsel %vm572, %v821, %v831
        %s834 = scalar_lea.vmem [#allocation2], 6
        %835 = vst.msk [vmem:[%s834] ss:$8 sm:$0x3] %vm578, %v832
        %836 = vst.msk [vmem:[%s834] ss:$8 sm:$0x0] %vm578, %v832
        %v837 = vmul.f32 %v445, %v755
        %v838 = vmul.f32 %v446, %v756
        %v839 = vmul.f32 %v447, %v757
        %v840 = vmul.f32 %v448, %v758
        %v841 = vadd.f32 %v837, %v839
        %v842 = vrot.slane %v841, 4
        %v843 = vadd.f32 %v841, %v842
        %v844 = vrot.slane %v843, 2
        %v845 = vadd.f32 %v843, %v844
        %v846 = vrot.slane %v845, 1
        %v847 = vadd.f32 %v845, %v846
        %v848 = vadd.f32 %v838, %v840
        %v849 = vrot.slane %v848, 4
        %v850 = vadd.f32 %v848, %v849
        %v851 = vrot.slane %v850, 2
        %v852 = vadd.f32 %v850, %v851
        %v853 = vrot.slane %v852, 1
        %v854 = vadd.f32 %v852, %v853
        %v857 = vrot.slane %v854, 7
        %v858 = vsel %vm572, %v847, %v857
        %s860 = scalar_lea.vmem [#allocation2], 7
        %861 = vst.msk [vmem:[%s860] ss:$8 sm:$0x3] %vm578, %v858
        %862 = vst.msk [vmem:[%s860] ss:$8 sm:$0x0] %vm578, %v858
        %s863 = sld [smem:[#allocation3 + $0x2]]
        %s864 = sld [smem:[#allocation3 + $0x82]]
        %s865 = sld [smem:[#allocation3 + $0x102]]
        %s866 = sld [smem:[#allocation3 + $0x182]]
        %v867 = vstv %s863
        %v868 = vmul.f32 %v369, %v867
        %v869 = vmul.f32 %v370, %v867
        %v870 = vmul.f32 %v371, %v867
        %v871 = vmul.f32 %v372, %v867
        %v872 = vstv %s864
        %v873 = vmul.f32 %v385, %v872
        %v874 = vmul.f32 %v386, %v872
        %v875 = vmul.f32 %v387, %v872
        %v876 = vmul.f32 %v388, %v872
        %v877 = vadd.f32 %v868, %v873
        %v878 = vadd.f32 %v869, %v874
        %v879 = vadd.f32 %v870, %v875
        %v880 = vadd.f32 %v871, %v876
        %v881 = vstv %s865
        %v882 = vmul.f32 %v401, %v881
        %v883 = vmul.f32 %v402, %v881
        %v884 = vmul.f32 %v403, %v881
        %v885 = vmul.f32 %v404, %v881
        %v886 = vadd.f32 %v877, %v882
        %v887 = vadd.f32 %v878, %v883
        %v888 = vadd.f32 %v879, %v884
        %v889 = vadd.f32 %v880, %v885
        %v890 = vadd.f32 %v421, %v886
        %v891 = vadd.f32 %v422, %v887
        %v892 = vadd.f32 %v423, %v888
        %v893 = vadd.f32 %v424, %v889
        %v894 = vstv %s866
        %v895 = vadd.f32 %v890, %v894
        %v896 = vadd.f32 %v891, %v894
        %v897 = vadd.f32 %v892, %v894
        %v898 = vadd.f32 %v893, %v894
        %v899 = vmax.f32 %v895, 0.0
        %v900 = vmax.f32 %v896, 0.0
        %v901 = vmax.f32 %v897, 0.0
        %v902 = vmax.f32 %v898, 0.0
        %v903 = vrsqrt.pop %v899
        %v904 = vmul.f32 %v903, %v899
        %v905 = vmul.f32 %v904, %v903
        %v906 = vmul.f32 0.5, %v905
        %v907 = vsub.f32 1.5, %v906
        %v908 = vmul.f32 %v903, %v907
        %v909 = vmul.f32 %v899, %v908
        %vm910 = vcmp.eq.f32.partialorder %v899, inf
        %v911 = vsel %vm910, %v899, %v909
        %vm912 = vcmp.eq.f32.partialorder %v899, 0.0
        %v913 = vand.u32 %v899, 2147483648
        %v914 = vsel %vm912, %v913, %v911
        %v915 = vrsqrt.pop %v900
        %v916 = vmul.f32 %v915, %v900
        %v917 = vmul.f32 %v916, %v915
        %v918 = vmul.f32 0.5, %v917
        %v919 = vsub.f32 1.5, %v918
        %v920 = vmul.f32 %v915, %v919
        %v921 = vmul.f32 %v900, %v920
        %vm922 = vcmp.eq.f32.partialorder %v900, inf
        %v923 = vsel %vm922, %v900, %v921
        %vm924 = vcmp.eq.f32.partialorder %v900, 0.0
        %v925 = vand.u32 %v900, 2147483648
        %v926 = vsel %vm924, %v925, %v923
        %v927 = vrsqrt.pop %v901
        %v928 = vmul.f32 %v927, %v901
        %v929 = vmul.f32 %v928, %v927
        %v930 = vmul.f32 0.5, %v929
        %v931 = vsub.f32 1.5, %v930
        %v932 = vmul.f32 %v927, %v931
        %v933 = vmul.f32 %v901, %v932
        %vm934 = vcmp.eq.f32.partialorder %v901, inf
        %v935 = vsel %vm934, %v901, %v933
        %vm936 = vcmp.eq.f32.partialorder %v901, 0.0
        %v937 = vand.u32 %v901, 2147483648
        %v938 = vsel %vm936, %v937, %v935
        %v939 = vrsqrt.pop %v902
        %v940 = vmul.f32 %v939, %v902
        %v941 = vmul.f32 %v940, %v939
        %v942 = vmul.f32 0.5, %v941
        %v943 = vsub.f32 1.5, %v942
        %v944 = vmul.f32 %v939, %v943
        %v945 = vmul.f32 %v902, %v944
        %vm946 = vcmp.eq.f32.partialorder %v902, inf
        %v947 = vsel %vm946, %v902, %v945
        %vm948 = vcmp.eq.f32.partialorder %v902, 0.0
        %v949 = vand.u32 %v902, 2147483648
        %v950 = vsel %vm948, %v949, %v947
        %v951 = vmul.f32 %v914, 10.0
        %v952 = vmul.f32 %v926, 10.0
        %v953 = vmul.f32 %v938, 10.0
        %v954 = vmul.f32 %v950, 10.0
        %v955 = vsub.f32 1.0, %v951
        %v956 = vsub.f32 1.0, %v952
        %v957 = vsub.f32 1.0, %v953
        %v958 = vsub.f32 1.0, %v954
        %v959 = vmax.f32 %v955, 0.0
        %v960 = vmax.f32 %v956, 0.0
        %v961 = vmax.f32 %v957, 0.0
        %v962 = vmax.f32 %v958, 0.0
        %v963 = vmul.f32 %v433, %v959
        %v964 = vmul.f32 %v434, %v960
        %v965 = vmul.f32 %v435, %v961
        %v966 = vmul.f32 %v436, %v962
        %v967 = vadd.f32 %v963, %v965
        %v968 = vrot.slane %v967, 4
        %v969 = vadd.f32 %v967, %v968
        %v970 = vrot.slane %v969, 2
        %v971 = vadd.f32 %v969, %v970
        %v972 = vrot.slane %v971, 1
        %v973 = vadd.f32 %v971, %v972
        %v974 = vadd.f32 %v964, %v966
        %v975 = vrot.slane %v974, 4
        %v976 = vadd.f32 %v974, %v975
        %v977 = vrot.slane %v976, 2
        %v978 = vadd.f32 %v976, %v977
        %v979 = vrot.slane %v978, 1
        %v980 = vadd.f32 %v978, %v979
        %v983 = vrot.slane %v980, 7
        %v984 = vsel %vm572, %v973, %v983
        %s986 = scalar_lea.vmem [#allocation2], 16
        %987 = vst.msk [vmem:[%s986] ss:$8 sm:$0x3] %vm578, %v984
        %988 = vst.msk [vmem:[%s986] ss:$8 sm:$0x0] %vm578, %v984
        %v989 = vmul.f32 %v437, %v959
        %v990 = vmul.f32 %v438, %v960
        %v991 = vmul.f32 %v439, %v961
        %v992 = vmul.f32 %v440, %v962
        %v993 = vadd.f32 %v989, %v991
        %v994 = vrot.slane %v993, 4
        %v995 = vadd.f32 %v993, %v994
        %v996 = vrot.slane %v995, 2
        %v997 = vadd.f32 %v995, %v996
        %v998 = vrot.slane %v997, 1
        %v999 = vadd.f32 %v997, %v998
        %v1000 = vadd.f32 %v990, %v992
        %v1001 = vrot.slane %v1000, 4
        %v1002 = vadd.f32 %v1000, %v1001
        %v1003 = vrot.slane %v1002, 2
        %v1004 = vadd.f32 %v1002, %v1003
        %v1005 = vrot.slane %v1004, 1
        %v1006 = vadd.f32 %v1004, %v1005
        %v1009 = vrot.slane %v1006, 7
        %v1010 = vsel %vm572, %v999, %v1009
        %s1012 = scalar_lea.vmem [#allocation2], 17
        %1013 = vst.msk [vmem:[%s1012] ss:$8 sm:$0x3] %vm578, %v1010
        %1014 = vst.msk [vmem:[%s1012] ss:$8 sm:$0x0] %vm578, %v1010
        %v1015 = vmul.f32 %v441, %v959
        %v1016 = vmul.f32 %v442, %v960
        %v1017 = vmul.f32 %v443, %v961
        %v1018 = vmul.f32 %v444, %v962
        %v1019 = vadd.f32 %v1015, %v1017
        %v1020 = vrot.slane %v1019, 4
        %v1021 = vadd.f32 %v1019, %v1020
        %v1022 = vrot.slane %v1021, 2
        %v1023 = vadd.f32 %v1021, %v1022
        %v1024 = vrot.slane %v1023, 1
        %v1025 = vadd.f32 %v1023, %v1024
        %v1026 = vadd.f32 %v1016, %v1018
        %v1027 = vrot.slane %v1026, 4
        %v1028 = vadd.f32 %v1026, %v1027
        %v1029 = vrot.slane %v1028, 2
        %v1030 = vadd.f32 %v1028, %v1029
        %v1031 = vrot.slane %v1030, 1
        %v1032 = vadd.f32 %v1030, %v1031
        %v1035 = vrot.slane %v1032, 7
        %v1036 = vsel %vm572, %v1025, %v1035
        %s1038 = scalar_lea.vmem [#allocation2], 18
        %1039 = vst.msk [vmem:[%s1038] ss:$8 sm:$0x3] %vm578, %v1036
        %1040 = vst.msk [vmem:[%s1038] ss:$8 sm:$0x0] %vm578, %v1036
        %v1041 = vmul.f32 %v445, %v959
        %v1042 = vmul.f32 %v446, %v960
        %v1043 = vmul.f32 %v447, %v961
        %v1044 = vmul.f32 %v448, %v962
        %v1045 = vadd.f32 %v1041, %v1043
        %v1046 = vrot.slane %v1045, 4
        %v1047 = vadd.f32 %v1045, %v1046
        %v1048 = vrot.slane %v1047, 2
        %v1049 = vadd.f32 %v1047, %v1048
        %v1050 = vrot.slane %v1049, 1
        %v1051 = vadd.f32 %v1049, %v1050
        %v1052 = vadd.f32 %v1042, %v1044
        %v1053 = vrot.slane %v1052, 4
        %v1054 = vadd.f32 %v1052, %v1053
        %v1055 = vrot.slane %v1054, 2
        %v1056 = vadd.f32 %v1054, %v1055
        %v1057 = vrot.slane %v1056, 1
        %v1058 = vadd.f32 %v1056, %v1057
        %v1061 = vrot.slane %v1058, 7
        %v1062 = vsel %vm572, %v1051, %v1061
        %s1064 = scalar_lea.vmem [#allocation2], 19
        %1065 = vst.msk [vmem:[%s1064] ss:$8 sm:$0x3] %vm578, %v1062
        %1066 = vst.msk [vmem:[%s1064] ss:$8 sm:$0x0] %vm578, %v1062
        %s1067 = sld [smem:[#allocation3 + $0x3]]
        %s1068 = sld [smem:[#allocation3 + $0x83]]
        %s1069 = sld [smem:[#allocation3 + $0x103]]
        %s1070 = sld [smem:[#allocation3 + $0x183]]
        %v1071 = vstv %s1067
        %v1072 = vmul.f32 %v369, %v1071
        %v1073 = vmul.f32 %v370, %v1071
        %v1074 = vmul.f32 %v371, %v1071
        %v1075 = vmul.f32 %v372, %v1071
        %v1076 = vstv %s1068
        %v1077 = vmul.f32 %v385, %v1076
        %v1078 = vmul.f32 %v386, %v1076
        %v1079 = vmul.f32 %v387, %v1076
        %v1080 = vmul.f32 %v388, %v1076
        %v1081 = vadd.f32 %v1072, %v1077
        %v1082 = vadd.f32 %v1073, %v1078
        %v1083 = vadd.f32 %v1074, %v1079
        %v1084 = vadd.f32 %v1075, %v1080
        %v1085 = vstv %s1069
        %v1086 = vmul.f32 %v401, %v1085
        %v1087 = vmul.f32 %v402, %v1085
        %v1088 = vmul.f32 %v403, %v1085
        %v1089 = vmul.f32 %v404, %v1085
        %v1090 = vadd.f32 %v1081, %v1086
        %v1091 = vadd.f32 %v1082, %v1087
        %v1092 = vadd.f32 %v1083, %v1088
        %v1093 = vadd.f32 %v1084, %v1089
        %v1094 = vadd.f32 %v421, %v1090
        %v1095 = vadd.f32 %v422, %v1091
        %v1096 = vadd.f32 %v423, %v1092
        %v1097 = vadd.f32 %v424, %v1093
        %v1098 = vstv %s1070
        %v1099 = vadd.f32 %v1094, %v1098
        %v1100 = vadd.f32 %v1095, %v1098
        %v1101 = vadd.f32 %v1096, %v1098
        %v1102 = vadd.f32 %v1097, %v1098
        %v1103 = vmax.f32 %v1099, 0.0
        %v1104 = vmax.f32 %v1100, 0.0
        %v1105 = vmax.f32 %v1101, 0.0
        %v1106 = vmax.f32 %v1102, 0.0
        %v1107 = vrsqrt.pop %v1103
        %v1108 = vmul.f32 %v1107, %v1103
        %v1109 = vmul.f32 %v1108, %v1107
        %v1110 = vmul.f32 0.5, %v1109
        %v1111 = vsub.f32 1.5, %v1110
        %v1112 = vmul.f32 %v1107, %v1111
        %v1113 = vmul.f32 %v1103, %v1112
        %vm1114 = vcmp.eq.f32.partialorder %v1103, inf
        %v1115 = vsel %vm1114, %v1103, %v1113
        %vm1116 = vcmp.eq.f32.partialorder %v1103, 0.0
        %v1117 = vand.u32 %v1103, 2147483648
        %v1118 = vsel %vm1116, %v1117, %v1115
        %v1119 = vrsqrt.pop %v1104
        %v1120 = vmul.f32 %v1119, %v1104
        %v1121 = vmul.f32 %v1120, %v1119
        %v1122 = vmul.f32 0.5, %v1121
        %v1123 = vsub.f32 1.5, %v1122
        %v1124 = vmul.f32 %v1119, %v1123
        %v1125 = vmul.f32 %v1104, %v1124
        %vm1126 = vcmp.eq.f32.partialorder %v1104, inf
        %v1127 = vsel %vm1126, %v1104, %v1125
        %vm1128 = vcmp.eq.f32.partialorder %v1104, 0.0
        %v1129 = vand.u32 %v1104, 2147483648
        %v1130 = vsel %vm1128, %v1129, %v1127
        %v1131 = vrsqrt.pop %v1105
        %v1132 = vmul.f32 %v1131, %v1105
        %v1133 = vmul.f32 %v1132, %v1131
        %v1134 = vmul.f32 0.5, %v1133
        %v1135 = vsub.f32 1.5, %v1134
        %v1136 = vmul.f32 %v1131, %v1135
        %v1137 = vmul.f32 %v1105, %v1136
        %vm1138 = vcmp.eq.f32.partialorder %v1105, inf
        %v1139 = vsel %vm1138, %v1105, %v1137
        %vm1140 = vcmp.eq.f32.partialorder %v1105, 0.0
        %v1141 = vand.u32 %v1105, 2147483648
        %v1142 = vsel %vm1140, %v1141, %v1139
        %v1143 = vrsqrt.pop %v1106
        %v1144 = vmul.f32 %v1143, %v1106
        %v1145 = vmul.f32 %v1144, %v1143
        %v1146 = vmul.f32 0.5, %v1145
        %v1147 = vsub.f32 1.5, %v1146
        %v1148 = vmul.f32 %v1143, %v1147
        %v1149 = vmul.f32 %v1106, %v1148
        %vm1150 = vcmp.eq.f32.partialorder %v1106, inf
        %v1151 = vsel %vm1150, %v1106, %v1149
        %vm1152 = vcmp.eq.f32.partialorder %v1106, 0.0
        %v1153 = vand.u32 %v1106, 2147483648
        %v1154 = vsel %vm1152, %v1153, %v1151
        %v1155 = vmul.f32 %v1118, 10.0
        %v1156 = vmul.f32 %v1130, 10.0
        %v1157 = vmul.f32 %v1142, 10.0
        %v1158 = vmul.f32 %v1154, 10.0
        %v1159 = vsub.f32 1.0, %v1155
        %v1160 = vsub.f32 1.0, %v1156
        %v1161 = vsub.f32 1.0, %v1157
        %v1162 = vsub.f32 1.0, %v1158
        %v1163 = vmax.f32 %v1159, 0.0
        %v1164 = vmax.f32 %v1160, 0.0
        %v1165 = vmax.f32 %v1161, 0.0
        %v1166 = vmax.f32 %v1162, 0.0
        %v1167 = vmul.f32 %v433, %v1163
        %v1168 = vmul.f32 %v434, %v1164
        %v1169 = vmul.f32 %v435, %v1165
        %v1170 = vmul.f32 %v436, %v1166
        %v1171 = vadd.f32 %v1167, %v1169
        %v1172 = vrot.slane %v1171, 4
        %v1173 = vadd.f32 %v1171, %v1172
        %v1174 = vrot.slane %v1173, 2
        %v1175 = vadd.f32 %v1173, %v1174
        %v1176 = vrot.slane %v1175, 1
        %v1177 = vadd.f32 %v1175, %v1176
        %v1178 = vadd.f32 %v1168, %v1170
        %v1179 = vrot.slane %v1178, 4
        %v1180 = vadd.f32 %v1178, %v1179
        %v1181 = vrot.slane %v1180, 2
        %v1182 = vadd.f32 %v1180, %v1181
        %v1183 = vrot.slane %v1182, 1
        %v1184 = vadd.f32 %v1182, %v1183
        %v1187 = vrot.slane %v1184, 7
        %v1188 = vsel %vm572, %v1177, %v1187
        %s1190 = scalar_lea.vmem [#allocation2], 20
        %1191 = vst.msk [vmem:[%s1190] ss:$8 sm:$0x3] %vm578, %v1188
        %1192 = vst.msk [vmem:[%s1190] ss:$8 sm:$0x0] %vm578, %v1188
        %v1193 = vmul.f32 %v437, %v1163
        %v1194 = vmul.f32 %v438, %v1164
        %v1195 = vmul.f32 %v439, %v1165
        %v1196 = vmul.f32 %v440, %v1166
        %v1197 = vadd.f32 %v1193, %v1195
        %v1198 = vrot.slane %v1197, 4
        %v1199 = vadd.f32 %v1197, %v1198
        %v1200 = vrot.slane %v1199, 2
        %v1201 = vadd.f32 %v1199, %v1200
        %v1202 = vrot.slane %v1201, 1
        %v1203 = vadd.f32 %v1201, %v1202
        %v1204 = vadd.f32 %v1194, %v1196
        %v1205 = vrot.slane %v1204, 4
        %v1206 = vadd.f32 %v1204, %v1205
        %v1207 = vrot.slane %v1206, 2
        %v1208 = vadd.f32 %v1206, %v1207
        %v1209 = vrot.slane %v1208, 1
        %v1210 = vadd.f32 %v1208, %v1209
        %v1213 = vrot.slane %v1210, 7
        %v1214 = vsel %vm572, %v1203, %v1213
        %s1216 = scalar_lea.vmem [#allocation2], 21
        %1217 = vst.msk [vmem:[%s1216] ss:$8 sm:$0x3] %vm578, %v1214
        %1218 = vst.msk [vmem:[%s1216] ss:$8 sm:$0x0] %vm578, %v1214
        %v1219 = vmul.f32 %v441, %v1163
        %v1220 = vmul.f32 %v442, %v1164
        %v1221 = vmul.f32 %v443, %v1165
        %v1222 = vmul.f32 %v444, %v1166
        %v1223 = vadd.f32 %v1219, %v1221
        %v1224 = vrot.slane %v1223, 4
        %v1225 = vadd.f32 %v1223, %v1224
        %v1226 = vrot.slane %v1225, 2
        %v1227 = vadd.f32 %v1225, %v1226
        %v1228 = vrot.slane %v1227, 1
        %v1229 = vadd.f32 %v1227, %v1228
        %v1230 = vadd.f32 %v1220, %v1222
        %v1231 = vrot.slane %v1230, 4
        %v1232 = vadd.f32 %v1230, %v1231
        %v1233 = vrot.slane %v1232, 2
        %v1234 = vadd.f32 %v1232, %v1233
        %v1235 = vrot.slane %v1234, 1
        %v1236 = vadd.f32 %v1234, %v1235
        %v1239 = vrot.slane %v1236, 7
        %v1240 = vsel %vm572, %v1229, %v1239
        %s1242 = scalar_lea.vmem [#allocation2], 22
        %1243 = vst.msk [vmem:[%s1242] ss:$8 sm:$0x3] %vm578, %v1240
        %1244 = vst.msk [vmem:[%s1242] ss:$8 sm:$0x0] %vm578, %v1240
        %v1245 = vmul.f32 %v445, %v1163
        %v1246 = vmul.f32 %v446, %v1164
        %v1247 = vmul.f32 %v447, %v1165
        %v1248 = vmul.f32 %v448, %v1166
        %v1249 = vadd.f32 %v1245, %v1247
        %v1250 = vrot.slane %v1249, 4
        %v1251 = vadd.f32 %v1249, %v1250
        %v1252 = vrot.slane %v1251, 2
        %v1253 = vadd.f32 %v1251, %v1252
        %v1254 = vrot.slane %v1253, 1
        %v1255 = vadd.f32 %v1253, %v1254
        %v1256 = vadd.f32 %v1246, %v1248
        %v1257 = vrot.slane %v1256, 4
        %v1258 = vadd.f32 %v1256, %v1257
        %v1259 = vrot.slane %v1258, 2
        %v1260 = vadd.f32 %v1258, %v1259
        %v1261 = vrot.slane %v1260, 1
        %v1262 = vadd.f32 %v1260, %v1261
        %v1265 = vrot.slane %v1262, 7
        %v1266 = vsel %vm572, %v1255, %v1265
        %s1268 = scalar_lea.vmem [#allocation2], 23
        %1269 = vst.msk [vmem:[%s1268] ss:$8 sm:$0x3] %vm578, %v1266
        %1270 = vst.msk [vmem:[%s1268] ss:$8 sm:$0x0] %vm578, %v1266
        %s1271 = sld [smem:[#allocation3 + $0x4]]
        %s1272 = sld [smem:[#allocation3 + $0x84]]
        %s1273 = sld [smem:[#allocation3 + $0x104]]
        %s1274 = sld [smem:[#allocation3 + $0x184]]
        %v1275 = vstv %s1271
        %v1276 = vmul.f32 %v369, %v1275
        %v1277 = vmul.f32 %v370, %v1275
        %v1278 = vmul.f32 %v371, %v1275
        %v1279 = vmul.f32 %v372, %v1275
        %v1280 = vstv %s1272
        %v1281 = vmul.f32 %v385, %v1280
        %v1282 = vmul.f32 %v386, %v1280
        %v1283 = vmul.f32 %v387, %v1280
        %v1284 = vmul.f32 %v388, %v1280
        %v1285 = vadd.f32 %v1276, %v1281
        %v1286 = vadd.f32 %v1277, %v1282
        %v1287 = vadd.f32 %v1278, %v1283
        %v1288 = vadd.f32 %v1279, %v1284
        %v1289 = vstv %s1273
        %v1290 = vmul.f32 %v401, %v1289
        %v1291 = vmul.f32 %v402, %v1289
        %v1292 = vmul.f32 %v403, %v1289
        %v1293 = vmul.f32 %v404, %v1289
        %v1294 = vadd.f32 %v1285, %v1290
        %v1295 = vadd.f32 %v1286, %v1291
        %v1296 = vadd.f32 %v1287, %v1292
        %v1297 = vadd.f32 %v1288, %v1293
        %v1298 = vadd.f32 %v421, %v1294
        %v1299 = vadd.f32 %v422, %v1295
        %v1300 = vadd.f32 %v423, %v1296
        %v1301 = vadd.f32 %v424, %v1297
        %v1302 = vstv %s1274
        %v1303 = vadd.f32 %v1298, %v1302
        %v1304 = vadd.f32 %v1299, %v1302
        %v1305 = vadd.f32 %v1300, %v1302
        %v1306 = vadd.f32 %v1301, %v1302
        %v1307 = vmax.f32 %v1303, 0.0
        %v1308 = vmax.f32 %v1304, 0.0
        %v1309 = vmax.f32 %v1305, 0.0
        %v1310 = vmax.f32 %v1306, 0.0
        %v1311 = vrsqrt.pop %v1307
        %v1312 = vmul.f32 %v1311, %v1307
        %v1313 = vmul.f32 %v1312, %v1311
        %v1314 = vmul.f32 0.5, %v1313
        %v1315 = vsub.f32 1.5, %v1314
        %v1316 = vmul.f32 %v1311, %v1315
        %v1317 = vmul.f32 %v1307, %v1316
        %vm1318 = vcmp.eq.f32.partialorder %v1307, inf
        %v1319 = vsel %vm1318, %v1307, %v1317
        %vm1320 = vcmp.eq.f32.partialorder %v1307, 0.0
        %v1321 = vand.u32 %v1307, 2147483648
        %v1322 = vsel %vm1320, %v1321, %v1319
        %v1323 = vrsqrt.pop %v1308
        %v1324 = vmul.f32 %v1323, %v1308
        %v1325 = vmul.f32 %v1324, %v1323
        %v1326 = vmul.f32 0.5, %v1325
        %v1327 = vsub.f32 1.5, %v1326
        %v1328 = vmul.f32 %v1323, %v1327
        %v1329 = vmul.f32 %v1308, %v1328
        %vm1330 = vcmp.eq.f32.partialorder %v1308, inf
        %v1331 = vsel %vm1330, %v1308, %v1329
        %vm1332 = vcmp.eq.f32.partialorder %v1308, 0.0
        %v1333 = vand.u32 %v1308, 2147483648
        %v1334 = vsel %vm1332, %v1333, %v1331
        %v1335 = vrsqrt.pop %v1309
        %v1336 = vmul.f32 %v1335, %v1309
        %v1337 = vmul.f32 %v1336, %v1335
        %v1338 = vmul.f32 0.5, %v1337
        %v1339 = vsub.f32 1.5, %v1338
        %v1340 = vmul.f32 %v1335, %v1339
        %v1341 = vmul.f32 %v1309, %v1340
        %vm1342 = vcmp.eq.f32.partialorder %v1309, inf
        %v1343 = vsel %vm1342, %v1309, %v1341
        %vm1344 = vcmp.eq.f32.partialorder %v1309, 0.0
        %v1345 = vand.u32 %v1309, 2147483648
        %v1346 = vsel %vm1344, %v1345, %v1343
        %v1347 = vrsqrt.pop %v1310
        %v1348 = vmul.f32 %v1347, %v1310
        %v1349 = vmul.f32 %v1348, %v1347
        %v1350 = vmul.f32 0.5, %v1349
        %v1351 = vsub.f32 1.5, %v1350
        %v1352 = vmul.f32 %v1347, %v1351
        %v1353 = vmul.f32 %v1310, %v1352
        %vm1354 = vcmp.eq.f32.partialorder %v1310, inf
        %v1355 = vsel %vm1354, %v1310, %v1353
        %vm1356 = vcmp.eq.f32.partialorder %v1310, 0.0
        %v1357 = vand.u32 %v1310, 2147483648
        %v1358 = vsel %vm1356, %v1357, %v1355
        %v1359 = vmul.f32 %v1322, 10.0
        %v1360 = vmul.f32 %v1334, 10.0
        %v1361 = vmul.f32 %v1346, 10.0
        %v1362 = vmul.f32 %v1358, 10.0
        %v1363 = vsub.f32 1.0, %v1359
        %v1364 = vsub.f32 1.0, %v1360
        %v1365 = vsub.f32 1.0, %v1361
        %v1366 = vsub.f32 1.0, %v1362
        %v1367 = vmax.f32 %v1363, 0.0
        %v1368 = vmax.f32 %v1364, 0.0
        %v1369 = vmax.f32 %v1365, 0.0
        %v1370 = vmax.f32 %v1366, 0.0
        %v1371 = vmul.f32 %v433, %v1367
        %v1372 = vmul.f32 %v434, %v1368
        %v1373 = vmul.f32 %v435, %v1369
        %v1374 = vmul.f32 %v436, %v1370
        %v1375 = vadd.f32 %v1371, %v1373
        %v1376 = vrot.slane %v1375, 4
        %v1377 = vadd.f32 %v1375, %v1376
        %v1378 = vrot.slane %v1377, 2
        %v1379 = vadd.f32 %v1377, %v1378
        %v1380 = vrot.slane %v1379, 1
        %v1381 = vadd.f32 %v1379, %v1380
        %v1382 = vadd.f32 %v1372, %v1374
        %v1383 = vrot.slane %v1382, 4
        %v1384 = vadd.f32 %v1382, %v1383
        %v1385 = vrot.slane %v1384, 2
        %v1386 = vadd.f32 %v1384, %v1385
        %v1387 = vrot.slane %v1386, 1
        %v1388 = vadd.f32 %v1386, %v1387
        %v1391 = vrot.slane %v1388, 7
        %v1392 = vsel %vm572, %v1381, %v1391
        %s1394 = scalar_lea.vmem [#allocation2], 32
        %1395 = vst.msk [vmem:[%s1394] ss:$8 sm:$0x3] %vm578, %v1392
        %1396 = vst.msk [vmem:[%s1394] ss:$8 sm:$0x0] %vm578, %v1392
        %v1397 = vmul.f32 %v437, %v1367
        %v1398 = vmul.f32 %v438, %v1368
        %v1399 = vmul.f32 %v439, %v1369
        %v1400 = vmul.f32 %v440, %v1370
        %v1401 = vadd.f32 %v1397, %v1399
        %v1402 = vrot.slane %v1401, 4
        %v1403 = vadd.f32 %v1401, %v1402
        %v1404 = vrot.slane %v1403, 2
        %v1405 = vadd.f32 %v1403, %v1404
        %v1406 = vrot.slane %v1405, 1
        %v1407 = vadd.f32 %v1405, %v1406
        %v1408 = vadd.f32 %v1398, %v1400
        %v1409 = vrot.slane %v1408, 4
        %v1410 = vadd.f32 %v1408, %v1409
        %v1411 = vrot.slane %v1410, 2
        %v1412 = vadd.f32 %v1410, %v1411
        %v1413 = vrot.slane %v1412, 1
        %v1414 = vadd.f32 %v1412, %v1413
        %v1417 = vrot.slane %v1414, 7
        %v1418 = vsel %vm572, %v1407, %v1417
        %s1420 = scalar_lea.vmem [#allocation2], 33
        %1421 = vst.msk [vmem:[%s1420] ss:$8 sm:$0x3] %vm578, %v1418
        %1422 = vst.msk [vmem:[%s1420] ss:$8 sm:$0x0] %vm578, %v1418
        %v1423 = vmul.f32 %v441, %v1367
        %v1424 = vmul.f32 %v442, %v1368
        %v1425 = vmul.f32 %v443, %v1369
        %v1426 = vmul.f32 %v444, %v1370
        %v1427 = vadd.f32 %v1423, %v1425
        %v1428 = vrot.slane %v1427, 4
        %v1429 = vadd.f32 %v1427, %v1428
        %v1430 = vrot.slane %v1429, 2
        %v1431 = vadd.f32 %v1429, %v1430
        %v1432 = vrot.slane %v1431, 1
        %v1433 = vadd.f32 %v1431, %v1432
        %v1434 = vadd.f32 %v1424, %v1426
        %v1435 = vrot.slane %v1434, 4
        %v1436 = vadd.f32 %v1434, %v1435
        %v1437 = vrot.slane %v1436, 2
        %v1438 = vadd.f32 %v1436, %v1437
        %v1439 = vrot.slane %v1438, 1
        %v1440 = vadd.f32 %v1438, %v1439
        %v1443 = vrot.slane %v1440, 7
        %v1444 = vsel %vm572, %v1433, %v1443
        %s1446 = scalar_lea.vmem [#allocation2], 34
        %1447 = vst.msk [vmem:[%s1446] ss:$8 sm:$0x3] %vm578, %v1444
        %1448 = vst.msk [vmem:[%s1446] ss:$8 sm:$0x0] %vm578, %v1444
        %v1449 = vmul.f32 %v445, %v1367
        %v1450 = vmul.f32 %v446, %v1368
        %v1451 = vmul.f32 %v447, %v1369
        %v1452 = vmul.f32 %v448, %v1370
        %v1453 = vadd.f32 %v1449, %v1451
        %v1454 = vrot.slane %v1453, 4
        %v1455 = vadd.f32 %v1453, %v1454
        %v1456 = vrot.slane %v1455, 2
        %v1457 = vadd.f32 %v1455, %v1456
        %v1458 = vrot.slane %v1457, 1
        %v1459 = vadd.f32 %v1457, %v1458
        %v1460 = vadd.f32 %v1450, %v1452
        %v1461 = vrot.slane %v1460, 4
        %v1462 = vadd.f32 %v1460, %v1461
        %v1463 = vrot.slane %v1462, 2
        %v1464 = vadd.f32 %v1462, %v1463
        %v1465 = vrot.slane %v1464, 1
        %v1466 = vadd.f32 %v1464, %v1465
        %v1469 = vrot.slane %v1466, 7
        %v1470 = vsel %vm572, %v1459, %v1469
        %s1472 = scalar_lea.vmem [#allocation2], 35
        %1473 = vst.msk [vmem:[%s1472] ss:$8 sm:$0x3] %vm578, %v1470
        %1474 = vst.msk [vmem:[%s1472] ss:$8 sm:$0x0] %vm578, %v1470
        %s1475 = sld [smem:[#allocation3 + $0x5]]
        %s1476 = sld [smem:[#allocation3 + $0x85]]
        %s1477 = sld [smem:[#allocation3 + $0x105]]
        %s1478 = sld [smem:[#allocation3 + $0x185]]
        %v1479 = vstv %s1475
        %v1480 = vmul.f32 %v369, %v1479
        %v1481 = vmul.f32 %v370, %v1479
        %v1482 = vmul.f32 %v371, %v1479
        %v1483 = vmul.f32 %v372, %v1479
        %v1484 = vstv %s1476
        %v1485 = vmul.f32 %v385, %v1484
        %v1486 = vmul.f32 %v386, %v1484
        %v1487 = vmul.f32 %v387, %v1484
        %v1488 = vmul.f32 %v388, %v1484
        %v1489 = vadd.f32 %v1480, %v1485
        %v1490 = vadd.f32 %v1481, %v1486
        %v1491 = vadd.f32 %v1482, %v1487
        %v1492 = vadd.f32 %v1483, %v1488
        %v1493 = vstv %s1477
        %v1494 = vmul.f32 %v401, %v1493
        %v1495 = vmul.f32 %v402, %v1493
        %v1496 = vmul.f32 %v403, %v1493
        %v1497 = vmul.f32 %v404, %v1493
        %v1498 = vadd.f32 %v1489, %v1494
        %v1499 = vadd.f32 %v1490, %v1495
        %v1500 = vadd.f32 %v1491, %v1496
        %v1501 = vadd.f32 %v1492, %v1497
        %v1502 = vadd.f32 %v421, %v1498
        %v1503 = vadd.f32 %v422, %v1499
        %v1504 = vadd.f32 %v423, %v1500
        %v1505 = vadd.f32 %v424, %v1501
        %v1506 = vstv %s1478
        %v1507 = vadd.f32 %v1502, %v1506
        %v1508 = vadd.f32 %v1503, %v1506
        %v1509 = vadd.f32 %v1504, %v1506
        %v1510 = vadd.f32 %v1505, %v1506
        %v1511 = vmax.f32 %v1507, 0.0
        %v1512 = vmax.f32 %v1508, 0.0
        %v1513 = vmax.f32 %v1509, 0.0
        %v1514 = vmax.f32 %v1510, 0.0
        %v1515 = vrsqrt.pop %v1511
        %v1516 = vmul.f32 %v1515, %v1511
        %v1517 = vmul.f32 %v1516, %v1515
        %v1518 = vmul.f32 0.5, %v1517
        %v1519 = vsub.f32 1.5, %v1518
        %v1520 = vmul.f32 %v1515, %v1519
        %v1521 = vmul.f32 %v1511, %v1520
        %vm1522 = vcmp.eq.f32.partialorder %v1511, inf
        %v1523 = vsel %vm1522, %v1511, %v1521
        %vm1524 = vcmp.eq.f32.partialorder %v1511, 0.0
        %v1525 = vand.u32 %v1511, 2147483648
        %v1526 = vsel %vm1524, %v1525, %v1523
        %v1527 = vrsqrt.pop %v1512
        %v1528 = vmul.f32 %v1527, %v1512
        %v1529 = vmul.f32 %v1528, %v1527
        %v1530 = vmul.f32 0.5, %v1529
        %v1531 = vsub.f32 1.5, %v1530
        %v1532 = vmul.f32 %v1527, %v1531
        %v1533 = vmul.f32 %v1512, %v1532
        %vm1534 = vcmp.eq.f32.partialorder %v1512, inf
        %v1535 = vsel %vm1534, %v1512, %v1533
        %vm1536 = vcmp.eq.f32.partialorder %v1512, 0.0
        %v1537 = vand.u32 %v1512, 2147483648
        %v1538 = vsel %vm1536, %v1537, %v1535
        %v1539 = vrsqrt.pop %v1513
        %v1540 = vmul.f32 %v1539, %v1513
        %v1541 = vmul.f32 %v1540, %v1539
        %v1542 = vmul.f32 0.5, %v1541
        %v1543 = vsub.f32 1.5, %v1542
        %v1544 = vmul.f32 %v1539, %v1543
        %v1545 = vmul.f32 %v1513, %v1544
        %vm1546 = vcmp.eq.f32.partialorder %v1513, inf
        %v1547 = vsel %vm1546, %v1513, %v1545
        %vm1548 = vcmp.eq.f32.partialorder %v1513, 0.0
        %v1549 = vand.u32 %v1513, 2147483648
        %v1550 = vsel %vm1548, %v1549, %v1547
        %v1551 = vrsqrt.pop %v1514
        %v1552 = vmul.f32 %v1551, %v1514
        %v1553 = vmul.f32 %v1552, %v1551
        %v1554 = vmul.f32 0.5, %v1553
        %v1555 = vsub.f32 1.5, %v1554
        %v1556 = vmul.f32 %v1551, %v1555
        %v1557 = vmul.f32 %v1514, %v1556
        %vm1558 = vcmp.eq.f32.partialorder %v1514, inf
        %v1559 = vsel %vm1558, %v1514, %v1557
        %vm1560 = vcmp.eq.f32.partialorder %v1514, 0.0
        %v1561 = vand.u32 %v1514, 2147483648
        %v1562 = vsel %vm1560, %v1561, %v1559
        %v1563 = vmul.f32 %v1526, 10.0
        %v1564 = vmul.f32 %v1538, 10.0
        %v1565 = vmul.f32 %v1550, 10.0
        %v1566 = vmul.f32 %v1562, 10.0
        %v1567 = vsub.f32 1.0, %v1563
        %v1568 = vsub.f32 1.0, %v1564
        %v1569 = vsub.f32 1.0, %v1565
        %v1570 = vsub.f32 1.0, %v1566
        %v1571 = vmax.f32 %v1567, 0.0
        %v1572 = vmax.f32 %v1568, 0.0
        %v1573 = vmax.f32 %v1569, 0.0
        %v1574 = vmax.f32 %v1570, 0.0
        %v1575 = vmul.f32 %v433, %v1571
        %v1576 = vmul.f32 %v434, %v1572
        %v1577 = vmul.f32 %v435, %v1573
        %v1578 = vmul.f32 %v436, %v1574
        %v1579 = vadd.f32 %v1575, %v1577
        %v1580 = vrot.slane %v1579, 4
        %v1581 = vadd.f32 %v1579, %v1580
        %v1582 = vrot.slane %v1581, 2
        %v1583 = vadd.f32 %v1581, %v1582
        %v1584 = vrot.slane %v1583, 1
        %v1585 = vadd.f32 %v1583, %v1584
        %v1586 = vadd.f32 %v1576, %v1578
        %v1587 = vrot.slane %v1586, 4
        %v1588 = vadd.f32 %v1586, %v1587
        %v1589 = vrot.slane %v1588, 2
        %v1590 = vadd.f32 %v1588, %v1589
        %v1591 = vrot.slane %v1590, 1
        %v1592 = vadd.f32 %v1590, %v1591
        %v1595 = vrot.slane %v1592, 7
        %v1596 = vsel %vm572, %v1585, %v1595
        %s1598 = scalar_lea.vmem [#allocation2], 36
        %1599 = vst.msk [vmem:[%s1598] ss:$8 sm:$0x3] %vm578, %v1596
        %1600 = vst.msk [vmem:[%s1598] ss:$8 sm:$0x0] %vm578, %v1596
        %v1601 = vmul.f32 %v437, %v1571
        %v1602 = vmul.f32 %v438, %v1572
        %v1603 = vmul.f32 %v439, %v1573
        %v1604 = vmul.f32 %v440, %v1574
        %v1605 = vadd.f32 %v1601, %v1603
        %v1606 = vrot.slane %v1605, 4
        %v1607 = vadd.f32 %v1605, %v1606
        %v1608 = vrot.slane %v1607, 2
        %v1609 = vadd.f32 %v1607, %v1608
        %v1610 = vrot.slane %v1609, 1
        %v1611 = vadd.f32 %v1609, %v1610
        %v1612 = vadd.f32 %v1602, %v1604
        %v1613 = vrot.slane %v1612, 4
        %v1614 = vadd.f32 %v1612, %v1613
        %v1615 = vrot.slane %v1614, 2
        %v1616 = vadd.f32 %v1614, %v1615
        %v1617 = vrot.slane %v1616, 1
        %v1618 = vadd.f32 %v1616, %v1617
        %v1621 = vrot.slane %v1618, 7
        %v1622 = vsel %vm572, %v1611, %v1621
        %s1624 = scalar_lea.vmem [#allocation2], 37
        %1625 = vst.msk [vmem:[%s1624] ss:$8 sm:$0x3] %vm578, %v1622
        %1626 = vst.msk [vmem:[%s1624] ss:$8 sm:$0x0] %vm578, %v1622
        %v1627 = vmul.f32 %v441, %v1571
        %v1628 = vmul.f32 %v442, %v1572
        %v1629 = vmul.f32 %v443, %v1573
        %v1630 = vmul.f32 %v444, %v1574
        %v1631 = vadd.f32 %v1627, %v1629
        %v1632 = vrot.slane %v1631, 4
        %v1633 = vadd.f32 %v1631, %v1632
        %v1634 = vrot.slane %v1633, 2
        %v1635 = vadd.f32 %v1633, %v1634
        %v1636 = vrot.slane %v1635, 1
        %v1637 = vadd.f32 %v1635, %v1636
        %v1638 = vadd.f32 %v1628, %v1630
        %v1639 = vrot.slane %v1638, 4
        %v1640 = vadd.f32 %v1638, %v1639
        %v1641 = vrot.slane %v1640, 2
        %v1642 = vadd.f32 %v1640, %v1641
        %v1643 = vrot.slane %v1642, 1
        %v1644 = vadd.f32 %v1642, %v1643
        %v1647 = vrot.slane %v1644, 7
        %v1648 = vsel %vm572, %v1637, %v1647
        %s1650 = scalar_lea.vmem [#allocation2], 38
        %1651 = vst.msk [vmem:[%s1650] ss:$8 sm:$0x3] %vm578, %v1648
        %1652 = vst.msk [vmem:[%s1650] ss:$8 sm:$0x0] %vm578, %v1648
        %v1653 = vmul.f32 %v445, %v1571
        %v1654 = vmul.f32 %v446, %v1572
        %v1655 = vmul.f32 %v447, %v1573
        %v1656 = vmul.f32 %v448, %v1574
        %v1657 = vadd.f32 %v1653, %v1655
        %v1658 = vrot.slane %v1657, 4
        %v1659 = vadd.f32 %v1657, %v1658
        %v1660 = vrot.slane %v1659, 2
        %v1661 = vadd.f32 %v1659, %v1660
        %v1662 = vrot.slane %v1661, 1
        %v1663 = vadd.f32 %v1661, %v1662
        %v1664 = vadd.f32 %v1654, %v1656
        %v1665 = vrot.slane %v1664, 4
        %v1666 = vadd.f32 %v1664, %v1665
        %v1667 = vrot.slane %v1666, 2
        %v1668 = vadd.f32 %v1666, %v1667
        %v1669 = vrot.slane %v1668, 1
        %v1670 = vadd.f32 %v1668, %v1669
        %v1673 = vrot.slane %v1670, 7
        %v1674 = vsel %vm572, %v1663, %v1673
        %s1676 = scalar_lea.vmem [#allocation2], 39
        %1677 = vst.msk [vmem:[%s1676] ss:$8 sm:$0x3] %vm578, %v1674
        %1678 = vst.msk [vmem:[%s1676] ss:$8 sm:$0x0] %vm578, %v1674
        %s1679 = sld [smem:[#allocation3 + $0x6]]
        %s1680 = sld [smem:[#allocation3 + $0x86]]
        %s1681 = sld [smem:[#allocation3 + $0x106]]
        %s1682 = sld [smem:[#allocation3 + $0x186]]
        %v1683 = vstv %s1679
        %v1684 = vmul.f32 %v369, %v1683
        %v1685 = vmul.f32 %v370, %v1683
        %v1686 = vmul.f32 %v371, %v1683
        %v1687 = vmul.f32 %v372, %v1683
        %v1688 = vstv %s1680
        %v1689 = vmul.f32 %v385, %v1688
        %v1690 = vmul.f32 %v386, %v1688
        %v1691 = vmul.f32 %v387, %v1688
        %v1692 = vmul.f32 %v388, %v1688
        %v1693 = vadd.f32 %v1684, %v1689
        %v1694 = vadd.f32 %v1685, %v1690
        %v1695 = vadd.f32 %v1686, %v1691
        %v1696 = vadd.f32 %v1687, %v1692
        %v1697 = vstv %s1681
        %v1698 = vmul.f32 %v401, %v1697
        %v1699 = vmul.f32 %v402, %v1697
        %v1700 = vmul.f32 %v403, %v1697
        %v1701 = vmul.f32 %v404, %v1697
        %v1702 = vadd.f32 %v1693, %v1698
        %v1703 = vadd.f32 %v1694, %v1699
        %v1704 = vadd.f32 %v1695, %v1700
        %v1705 = vadd.f32 %v1696, %v1701
        %v1706 = vadd.f32 %v421, %v1702
        %v1707 = vadd.f32 %v422, %v1703
        %v1708 = vadd.f32 %v423, %v1704
        %v1709 = vadd.f32 %v424, %v1705
        %v1710 = vstv %s1682
        %v1711 = vadd.f32 %v1706, %v1710
        %v1712 = vadd.f32 %v1707, %v1710
        %v1713 = vadd.f32 %v1708, %v1710
        %v1714 = vadd.f32 %v1709, %v1710
        %v1715 = vmax.f32 %v1711, 0.0
        %v1716 = vmax.f32 %v1712, 0.0
        %v1717 = vmax.f32 %v1713, 0.0
        %v1718 = vmax.f32 %v1714, 0.0
        %v1719 = vrsqrt.pop %v1715
        %v1720 = vmul.f32 %v1719, %v1715
        %v1721 = vmul.f32 %v1720, %v1719
        %v1722 = vmul.f32 0.5, %v1721
        %v1723 = vsub.f32 1.5, %v1722
        %v1724 = vmul.f32 %v1719, %v1723
        %v1725 = vmul.f32 %v1715, %v1724
        %vm1726 = vcmp.eq.f32.partialorder %v1715, inf
        %v1727 = vsel %vm1726, %v1715, %v1725
        %vm1728 = vcmp.eq.f32.partialorder %v1715, 0.0
        %v1729 = vand.u32 %v1715, 2147483648
        %v1730 = vsel %vm1728, %v1729, %v1727
        %v1731 = vrsqrt.pop %v1716
        %v1732 = vmul.f32 %v1731, %v1716
        %v1733 = vmul.f32 %v1732, %v1731
        %v1734 = vmul.f32 0.5, %v1733
        %v1735 = vsub.f32 1.5, %v1734
        %v1736 = vmul.f32 %v1731, %v1735
        %v1737 = vmul.f32 %v1716, %v1736
        %vm1738 = vcmp.eq.f32.partialorder %v1716, inf
        %v1739 = vsel %vm1738, %v1716, %v1737
        %vm1740 = vcmp.eq.f32.partialorder %v1716, 0.0
        %v1741 = vand.u32 %v1716, 2147483648
        %v1742 = vsel %vm1740, %v1741, %v1739
        %v1743 = vrsqrt.pop %v1717
        %v1744 = vmul.f32 %v1743, %v1717
        %v1745 = vmul.f32 %v1744, %v1743
        %v1746 = vmul.f32 0.5, %v1745
        %v1747 = vsub.f32 1.5, %v1746
        %v1748 = vmul.f32 %v1743, %v1747
        %v1749 = vmul.f32 %v1717, %v1748
        %vm1750 = vcmp.eq.f32.partialorder %v1717, inf
        %v1751 = vsel %vm1750, %v1717, %v1749
        %vm1752 = vcmp.eq.f32.partialorder %v1717, 0.0
        %v1753 = vand.u32 %v1717, 2147483648
        %v1754 = vsel %vm1752, %v1753, %v1751
        %v1755 = vrsqrt.pop %v1718
        %v1756 = vmul.f32 %v1755, %v1718
        %v1757 = vmul.f32 %v1756, %v1755
        %v1758 = vmul.f32 0.5, %v1757
        %v1759 = vsub.f32 1.5, %v1758
        %v1760 = vmul.f32 %v1755, %v1759
        %v1761 = vmul.f32 %v1718, %v1760
        %vm1762 = vcmp.eq.f32.partialorder %v1718, inf
        %v1763 = vsel %vm1762, %v1718, %v1761
        %vm1764 = vcmp.eq.f32.partialorder %v1718, 0.0
        %v1765 = vand.u32 %v1718, 2147483648
        %v1766 = vsel %vm1764, %v1765, %v1763
        %v1767 = vmul.f32 %v1730, 10.0
        %v1768 = vmul.f32 %v1742, 10.0
        %v1769 = vmul.f32 %v1754, 10.0
        %v1770 = vmul.f32 %v1766, 10.0
        %v1771 = vsub.f32 1.0, %v1767
        %v1772 = vsub.f32 1.0, %v1768
        %v1773 = vsub.f32 1.0, %v1769
        %v1774 = vsub.f32 1.0, %v1770
        %v1775 = vmax.f32 %v1771, 0.0
        %v1776 = vmax.f32 %v1772, 0.0
        %v1777 = vmax.f32 %v1773, 0.0
        %v1778 = vmax.f32 %v1774, 0.0
        %v1779 = vmul.f32 %v433, %v1775
        %v1780 = vmul.f32 %v434, %v1776
        %v1781 = vmul.f32 %v435, %v1777
        %v1782 = vmul.f32 %v436, %v1778
        %v1783 = vadd.f32 %v1779, %v1781
        %v1784 = vrot.slane %v1783, 4
        %v1785 = vadd.f32 %v1783, %v1784
        %v1786 = vrot.slane %v1785, 2
        %v1787 = vadd.f32 %v1785, %v1786
        %v1788 = vrot.slane %v1787, 1
        %v1789 = vadd.f32 %v1787, %v1788
        %v1790 = vadd.f32 %v1780, %v1782
        %v1791 = vrot.slane %v1790, 4
        %v1792 = vadd.f32 %v1790, %v1791
        %v1793 = vrot.slane %v1792, 2
        %v1794 = vadd.f32 %v1792, %v1793
        %v1795 = vrot.slane %v1794, 1
        %v1796 = vadd.f32 %v1794, %v1795
        %v1799 = vrot.slane %v1796, 7
        %v1800 = vsel %vm572, %v1789, %v1799
        %s1802 = scalar_lea.vmem [#allocation2], 48
        %1803 = vst.msk [vmem:[%s1802] ss:$8 sm:$0x3] %vm578, %v1800
        %1804 = vst.msk [vmem:[%s1802] ss:$8 sm:$0x0] %vm578, %v1800
        %v1805 = vmul.f32 %v437, %v1775
        %v1806 = vmul.f32 %v438, %v1776
        %v1807 = vmul.f32 %v439, %v1777
        %v1808 = vmul.f32 %v440, %v1778
        %v1809 = vadd.f32 %v1805, %v1807
        %v1810 = vrot.slane %v1809, 4
        %v1811 = vadd.f32 %v1809, %v1810
        %v1812 = vrot.slane %v1811, 2
        %v1813 = vadd.f32 %v1811, %v1812
        %v1814 = vrot.slane %v1813, 1
        %v1815 = vadd.f32 %v1813, %v1814
        %v1816 = vadd.f32 %v1806, %v1808
        %v1817 = vrot.slane %v1816, 4
        %v1818 = vadd.f32 %v1816, %v1817
        %v1819 = vrot.slane %v1818, 2
        %v1820 = vadd.f32 %v1818, %v1819
        %v1821 = vrot.slane %v1820, 1
        %v1822 = vadd.f32 %v1820, %v1821
        %v1825 = vrot.slane %v1822, 7
        %v1826 = vsel %vm572, %v1815, %v1825
        %s1828 = scalar_lea.vmem [#allocation2], 49
        %1829 = vst.msk [vmem:[%s1828] ss:$8 sm:$0x3] %vm578, %v1826
        %1830 = vst.msk [vmem:[%s1828] ss:$8 sm:$0x0] %vm578, %v1826
        %v1831 = vmul.f32 %v441, %v1775
        %v1832 = vmul.f32 %v442, %v1776
        %v1833 = vmul.f32 %v443, %v1777
        %v1834 = vmul.f32 %v444, %v1778
        %v1835 = vadd.f32 %v1831, %v1833
        %v1836 = vrot.slane %v1835, 4
        %v1837 = vadd.f32 %v1835, %v1836
        %v1838 = vrot.slane %v1837, 2
        %v1839 = vadd.f32 %v1837, %v1838
        %v1840 = vrot.slane %v1839, 1
        %v1841 = vadd.f32 %v1839, %v1840
        %v1842 = vadd.f32 %v1832, %v1834
        %v1843 = vrot.slane %v1842, 4
        %v1844 = vadd.f32 %v1842, %v1843
        %v1845 = vrot.slane %v1844, 2
        %v1846 = vadd.f32 %v1844, %v1845
        %v1847 = vrot.slane %v1846, 1
        %v1848 = vadd.f32 %v1846, %v1847
        %v1851 = vrot.slane %v1848, 7
        %v1852 = vsel %vm572, %v1841, %v1851
        %s1854 = scalar_lea.vmem [#allocation2], 50
        %1855 = vst.msk [vmem:[%s1854] ss:$8 sm:$0x3] %vm578, %v1852
        %1856 = vst.msk [vmem:[%s1854] ss:$8 sm:$0x0] %vm578, %v1852
        %v1857 = vmul.f32 %v445, %v1775
        %v1858 = vmul.f32 %v446, %v1776
        %v1859 = vmul.f32 %v447, %v1777
        %v1860 = vmul.f32 %v448, %v1778
        %v1861 = vadd.f32 %v1857, %v1859
        %v1862 = vrot.slane %v1861, 4
        %v1863 = vadd.f32 %v1861, %v1862
        %v1864 = vrot.slane %v1863, 2
        %v1865 = vadd.f32 %v1863, %v1864
        %v1866 = vrot.slane %v1865, 1
        %v1867 = vadd.f32 %v1865, %v1866
        %v1868 = vadd.f32 %v1858, %v1860
        %v1869 = vrot.slane %v1868, 4
        %v1870 = vadd.f32 %v1868, %v1869
        %v1871 = vrot.slane %v1870, 2
        %v1872 = vadd.f32 %v1870, %v1871
        %v1873 = vrot.slane %v1872, 1
        %v1874 = vadd.f32 %v1872, %v1873
        %v1877 = vrot.slane %v1874, 7
        %v1878 = vsel %vm572, %v1867, %v1877
        %s1880 = scalar_lea.vmem [#allocation2], 51
        %1881 = vst.msk [vmem:[%s1880] ss:$8 sm:$0x3] %vm578, %v1878
        %1882 = vst.msk [vmem:[%s1880] ss:$8 sm:$0x0] %vm578, %v1878
        %s1883 = sld [smem:[#allocation3 + $0x7]]
        %s1884 = sld [smem:[#allocation3 + $0x87]]
        %s1885 = sld [smem:[#allocation3 + $0x107]]
        %s1886 = sld [smem:[#allocation3 + $0x187]]
        %v1887 = vstv %s1883
        %v1888 = vmul.f32 %v369, %v1887
        %v1889 = vmul.f32 %v370, %v1887
        %v1890 = vmul.f32 %v371, %v1887
        %v1891 = vmul.f32 %v372, %v1887
        %v1892 = vstv %s1884
        %v1893 = vmul.f32 %v385, %v1892
        %v1894 = vmul.f32 %v386, %v1892
        %v1895 = vmul.f32 %v387, %v1892
        %v1896 = vmul.f32 %v388, %v1892
        %v1897 = vadd.f32 %v1888, %v1893
        %v1898 = vadd.f32 %v1889, %v1894
        %v1899 = vadd.f32 %v1890, %v1895
        %v1900 = vadd.f32 %v1891, %v1896
        %v1901 = vstv %s1885
        %v1902 = vmul.f32 %v401, %v1901
        %v1903 = vmul.f32 %v402, %v1901
        %v1904 = vmul.f32 %v403, %v1901
        %v1905 = vmul.f32 %v404, %v1901
        %v1906 = vadd.f32 %v1897, %v1902
        %v1907 = vadd.f32 %v1898, %v1903
        %v1908 = vadd.f32 %v1899, %v1904
        %v1909 = vadd.f32 %v1900, %v1905
        %v1910 = vadd.f32 %v421, %v1906
        %v1911 = vadd.f32 %v422, %v1907
        %v1912 = vadd.f32 %v423, %v1908
        %v1913 = vadd.f32 %v424, %v1909
        %v1914 = vstv %s1886
        %v1915 = vadd.f32 %v1910, %v1914
        %v1916 = vadd.f32 %v1911, %v1914
        %v1917 = vadd.f32 %v1912, %v1914
        %v1918 = vadd.f32 %v1913, %v1914
        %v1919 = vmax.f32 %v1915, 0.0
        %v1920 = vmax.f32 %v1916, 0.0
        %v1921 = vmax.f32 %v1917, 0.0
        %v1922 = vmax.f32 %v1918, 0.0
        %v1923 = vrsqrt.pop %v1919
        %v1924 = vmul.f32 %v1923, %v1919
        %v1925 = vmul.f32 %v1924, %v1923
        %v1926 = vmul.f32 0.5, %v1925
        %v1927 = vsub.f32 1.5, %v1926
        %v1928 = vmul.f32 %v1923, %v1927
        %v1929 = vmul.f32 %v1919, %v1928
        %vm1930 = vcmp.eq.f32.partialorder %v1919, inf
        %v1931 = vsel %vm1930, %v1919, %v1929
        %vm1932 = vcmp.eq.f32.partialorder %v1919, 0.0
        %v1933 = vand.u32 %v1919, 2147483648
        %v1934 = vsel %vm1932, %v1933, %v1931
        %v1935 = vrsqrt.pop %v1920
        %v1936 = vmul.f32 %v1935, %v1920
        %v1937 = vmul.f32 %v1936, %v1935
        %v1938 = vmul.f32 0.5, %v1937
        %v1939 = vsub.f32 1.5, %v1938
        %v1940 = vmul.f32 %v1935, %v1939
        %v1941 = vmul.f32 %v1920, %v1940
        %vm1942 = vcmp.eq.f32.partialorder %v1920, inf
        %v1943 = vsel %vm1942, %v1920, %v1941
        %vm1944 = vcmp.eq.f32.partialorder %v1920, 0.0
        %v1945 = vand.u32 %v1920, 2147483648
        %v1946 = vsel %vm1944, %v1945, %v1943
        %v1947 = vrsqrt.pop %v1921
        %v1948 = vmul.f32 %v1947, %v1921
        %v1949 = vmul.f32 %v1948, %v1947
        %v1950 = vmul.f32 0.5, %v1949
        %v1951 = vsub.f32 1.5, %v1950
        %v1952 = vmul.f32 %v1947, %v1951
        %v1953 = vmul.f32 %v1921, %v1952
        %vm1954 = vcmp.eq.f32.partialorder %v1921, inf
        %v1955 = vsel %vm1954, %v1921, %v1953
        %vm1956 = vcmp.eq.f32.partialorder %v1921, 0.0
        %v1957 = vand.u32 %v1921, 2147483648
        %v1958 = vsel %vm1956, %v1957, %v1955
        %v1959 = vrsqrt.pop %v1922
        %v1960 = vmul.f32 %v1959, %v1922
        %v1961 = vmul.f32 %v1960, %v1959
        %v1962 = vmul.f32 0.5, %v1961
        %v1963 = vsub.f32 1.5, %v1962
        %v1964 = vmul.f32 %v1959, %v1963
        %v1965 = vmul.f32 %v1922, %v1964
        %vm1966 = vcmp.eq.f32.partialorder %v1922, inf
        %v1967 = vsel %vm1966, %v1922, %v1965
        %vm1968 = vcmp.eq.f32.partialorder %v1922, 0.0
        %v1969 = vand.u32 %v1922, 2147483648
        %v1970 = vsel %vm1968, %v1969, %v1967
        %v1971 = vmul.f32 %v1934, 10.0
        %v1972 = vmul.f32 %v1946, 10.0
        %v1973 = vmul.f32 %v1958, 10.0
        %v1974 = vmul.f32 %v1970, 10.0
        %v1975 = vsub.f32 1.0, %v1971
        %v1976 = vsub.f32 1.0, %v1972
        %v1977 = vsub.f32 1.0, %v1973
        %v1978 = vsub.f32 1.0, %v1974
        %v1979 = vmax.f32 %v1975, 0.0
        %v1980 = vmax.f32 %v1976, 0.0
        %v1981 = vmax.f32 %v1977, 0.0
        %v1982 = vmax.f32 %v1978, 0.0
        %v1983 = vmul.f32 %v433, %v1979
        %v1984 = vmul.f32 %v434, %v1980
        %v1985 = vmul.f32 %v435, %v1981
        %v1986 = vmul.f32 %v436, %v1982
        %v1987 = vadd.f32 %v1983, %v1985
        %v1988 = vrot.slane %v1987, 4
        %v1989 = vadd.f32 %v1987, %v1988
        %v1990 = vrot.slane %v1989, 2
        %v1991 = vadd.f32 %v1989, %v1990
        %v1992 = vrot.slane %v1991, 1
        %v1993 = vadd.f32 %v1991, %v1992
        %v1994 = vadd.f32 %v1984, %v1986
        %v1995 = vrot.slane %v1994, 4
        %v1996 = vadd.f32 %v1994, %v1995
        %v1997 = vrot.slane %v1996, 2
        %v1998 = vadd.f32 %v1996, %v1997
        %v1999 = vrot.slane %v1998, 1
        %v2000 = vadd.f32 %v1998, %v1999
        %v2003 = vrot.slane %v2000, 7
        %v2004 = vsel %vm572, %v1993, %v2003
        %s2006 = scalar_lea.vmem [#allocation2], 52
        %2007 = vst.msk [vmem:[%s2006] ss:$8 sm:$0x3] %vm578, %v2004
        %2008 = vst.msk [vmem:[%s2006] ss:$8 sm:$0x0] %vm578, %v2004
        %v2009 = vmul.f32 %v437, %v1979
        %v2010 = vmul.f32 %v438, %v1980
        %v2011 = vmul.f32 %v439, %v1981
        %v2012 = vmul.f32 %v440, %v1982
        %v2013 = vadd.f32 %v2009, %v2011
        %v2014 = vrot.slane %v2013, 4
        %v2015 = vadd.f32 %v2013, %v2014
        %v2016 = vrot.slane %v2015, 2
        %v2017 = vadd.f32 %v2015, %v2016
        %v2018 = vrot.slane %v2017, 1
        %v2019 = vadd.f32 %v2017, %v2018
        %v2020 = vadd.f32 %v2010, %v2012
        %v2021 = vrot.slane %v2020, 4
        %v2022 = vadd.f32 %v2020, %v2021
        %v2023 = vrot.slane %v2022, 2
        %v2024 = vadd.f32 %v2022, %v2023
        %v2025 = vrot.slane %v2024, 1
        %v2026 = vadd.f32 %v2024, %v2025
        %v2029 = vrot.slane %v2026, 7
        %v2030 = vsel %vm572, %v2019, %v2029
        %s2032 = scalar_lea.vmem [#allocation2], 53
        %2033 = vst.msk [vmem:[%s2032] ss:$8 sm:$0x3] %vm578, %v2030
        %2034 = vst.msk [vmem:[%s2032] ss:$8 sm:$0x0] %vm578, %v2030
        %v2035 = vmul.f32 %v441, %v1979
        %v2036 = vmul.f32 %v442, %v1980
        %v2037 = vmul.f32 %v443, %v1981
        %v2038 = vmul.f32 %v444, %v1982
        %v2039 = vadd.f32 %v2035, %v2037
        %v2040 = vrot.slane %v2039, 4
        %v2041 = vadd.f32 %v2039, %v2040
        %v2042 = vrot.slane %v2041, 2
        %v2043 = vadd.f32 %v2041, %v2042
        %v2044 = vrot.slane %v2043, 1
        %v2045 = vadd.f32 %v2043, %v2044
        %v2046 = vadd.f32 %v2036, %v2038
        %v2047 = vrot.slane %v2046, 4
        %v2048 = vadd.f32 %v2046, %v2047
        %v2049 = vrot.slane %v2048, 2
        %v2050 = vadd.f32 %v2048, %v2049
        %v2051 = vrot.slane %v2050, 1
        %v2052 = vadd.f32 %v2050, %v2051
        %v2055 = vrot.slane %v2052, 7
        %v2056 = vsel %vm572, %v2045, %v2055
        %s2058 = scalar_lea.vmem [#allocation2], 54
        %2059 = vst.msk [vmem:[%s2058] ss:$8 sm:$0x3] %vm578, %v2056
        %2060 = vst.msk [vmem:[%s2058] ss:$8 sm:$0x0] %vm578, %v2056
        %v2061 = vmul.f32 %v445, %v1979
        %v2062 = vmul.f32 %v446, %v1980
        %v2063 = vmul.f32 %v447, %v1981
        %v2064 = vmul.f32 %v448, %v1982
        %v2065 = vadd.f32 %v2061, %v2063
        %v2066 = vrot.slane %v2065, 4
        %v2067 = vadd.f32 %v2065, %v2066
        %v2068 = vrot.slane %v2067, 2
        %v2069 = vadd.f32 %v2067, %v2068
        %v2070 = vrot.slane %v2069, 1
        %v2071 = vadd.f32 %v2069, %v2070
        %v2072 = vadd.f32 %v2062, %v2064
        %v2073 = vrot.slane %v2072, 4
        %v2074 = vadd.f32 %v2072, %v2073
        %v2075 = vrot.slane %v2074, 2
        %v2076 = vadd.f32 %v2074, %v2075
        %v2077 = vrot.slane %v2076, 1
        %v2078 = vadd.f32 %v2076, %v2077
        %v2081 = vrot.slane %v2078, 7
        %v2082 = vsel %vm572, %v2071, %v2081
        %s2084 = scalar_lea.vmem [#allocation2], 55
        %2085 = vst.msk [vmem:[%s2084] ss:$8 sm:$0x3] %vm578, %v2082
        %2086 = vst.msk [vmem:[%s2084] ss:$8 sm:$0x0] %vm578, %v2082
        %s2087 = sld [smem:[#allocation3 + $0x8]]
        %s2088 = sld [smem:[#allocation3 + $0x88]]
        %s2089 = sld [smem:[#allocation3 + $0x108]]
        %s2090 = sld [smem:[#allocation3 + $0x188]]
        %v2091 = vstv %s2087
        %v2092 = vmul.f32 %v369, %v2091
        %v2093 = vmul.f32 %v370, %v2091
        %v2094 = vmul.f32 %v371, %v2091
        %v2095 = vmul.f32 %v372, %v2091
        %v2096 = vstv %s2088
        %v2097 = vmul.f32 %v385, %v2096
        %v2098 = vmul.f32 %v386, %v2096
        %v2099 = vmul.f32 %v387, %v2096
        %v2100 = vmul.f32 %v388, %v2096
        %v2101 = vadd.f32 %v2092, %v2097
        %v2102 = vadd.f32 %v2093, %v2098
        %v2103 = vadd.f32 %v2094, %v2099
        %v2104 = vadd.f32 %v2095, %v2100
        %v2105 = vstv %s2089
        %v2106 = vmul.f32 %v401, %v2105
        %v2107 = vmul.f32 %v402, %v2105
        %v2108 = vmul.f32 %v403, %v2105
        %v2109 = vmul.f32 %v404, %v2105
        %v2110 = vadd.f32 %v2101, %v2106
        %v2111 = vadd.f32 %v2102, %v2107
        %v2112 = vadd.f32 %v2103, %v2108
        %v2113 = vadd.f32 %v2104, %v2109
        %v2114 = vadd.f32 %v421, %v2110
        %v2115 = vadd.f32 %v422, %v2111
        %v2116 = vadd.f32 %v423, %v2112
        %v2117 = vadd.f32 %v424, %v2113
        %v2118 = vstv %s2090
        %v2119 = vadd.f32 %v2114, %v2118
        %v2120 = vadd.f32 %v2115, %v2118
        %v2121 = vadd.f32 %v2116, %v2118
        %v2122 = vadd.f32 %v2117, %v2118
        %v2123 = vmax.f32 %v2119, 0.0
        %v2124 = vmax.f32 %v2120, 0.0
        %v2125 = vmax.f32 %v2121, 0.0
        %v2126 = vmax.f32 %v2122, 0.0
        %v2127 = vrsqrt.pop %v2123
        %v2128 = vmul.f32 %v2127, %v2123
        %v2129 = vmul.f32 %v2128, %v2127
        %v2130 = vmul.f32 0.5, %v2129
        %v2131 = vsub.f32 1.5, %v2130
        %v2132 = vmul.f32 %v2127, %v2131
        %v2133 = vmul.f32 %v2123, %v2132
        %vm2134 = vcmp.eq.f32.partialorder %v2123, inf
        %v2135 = vsel %vm2134, %v2123, %v2133
        %vm2136 = vcmp.eq.f32.partialorder %v2123, 0.0
        %v2137 = vand.u32 %v2123, 2147483648
        %v2138 = vsel %vm2136, %v2137, %v2135
        %v2139 = vrsqrt.pop %v2124
        %v2140 = vmul.f32 %v2139, %v2124
        %v2141 = vmul.f32 %v2140, %v2139
        %v2142 = vmul.f32 0.5, %v2141
        %v2143 = vsub.f32 1.5, %v2142
        %v2144 = vmul.f32 %v2139, %v2143
        %v2145 = vmul.f32 %v2124, %v2144
        %vm2146 = vcmp.eq.f32.partialorder %v2124, inf
        %v2147 = vsel %vm2146, %v2124, %v2145
        %vm2148 = vcmp.eq.f32.partialorder %v2124, 0.0
        %v2149 = vand.u32 %v2124, 2147483648
        %v2150 = vsel %vm2148, %v2149, %v2147
        %v2151 = vrsqrt.pop %v2125
        %v2152 = vmul.f32 %v2151, %v2125
        %v2153 = vmul.f32 %v2152, %v2151
        %v2154 = vmul.f32 0.5, %v2153
        %v2155 = vsub.f32 1.5, %v2154
        %v2156 = vmul.f32 %v2151, %v2155
        %v2157 = vmul.f32 %v2125, %v2156
        %vm2158 = vcmp.eq.f32.partialorder %v2125, inf
        %v2159 = vsel %vm2158, %v2125, %v2157
        %vm2160 = vcmp.eq.f32.partialorder %v2125, 0.0
        %v2161 = vand.u32 %v2125, 2147483648
        %v2162 = vsel %vm2160, %v2161, %v2159
        %v2163 = vrsqrt.pop %v2126
        %v2164 = vmul.f32 %v2163, %v2126
        %v2165 = vmul.f32 %v2164, %v2163
        %v2166 = vmul.f32 0.5, %v2165
        %v2167 = vsub.f32 1.5, %v2166
        %v2168 = vmul.f32 %v2163, %v2167
        %v2169 = vmul.f32 %v2126, %v2168
        %vm2170 = vcmp.eq.f32.partialorder %v2126, inf
        %v2171 = vsel %vm2170, %v2126, %v2169
        %vm2172 = vcmp.eq.f32.partialorder %v2126, 0.0
        %v2173 = vand.u32 %v2126, 2147483648
        %v2174 = vsel %vm2172, %v2173, %v2171
        %v2175 = vmul.f32 %v2138, 10.0
        %v2176 = vmul.f32 %v2150, 10.0
        %v2177 = vmul.f32 %v2162, 10.0
        %v2178 = vmul.f32 %v2174, 10.0
        %v2179 = vsub.f32 1.0, %v2175
        %v2180 = vsub.f32 1.0, %v2176
        %v2181 = vsub.f32 1.0, %v2177
        %v2182 = vsub.f32 1.0, %v2178
        %v2183 = vmax.f32 %v2179, 0.0
        %v2184 = vmax.f32 %v2180, 0.0
        %v2185 = vmax.f32 %v2181, 0.0
        %v2186 = vmax.f32 %v2182, 0.0
        %v2187 = vmul.f32 %v433, %v2183
        %v2188 = vmul.f32 %v434, %v2184
        %v2189 = vmul.f32 %v435, %v2185
        %v2190 = vmul.f32 %v436, %v2186
        %v2191 = vadd.f32 %v2187, %v2189
        %v2192 = vrot.slane %v2191, 4
        %v2193 = vadd.f32 %v2191, %v2192
        %v2194 = vrot.slane %v2193, 2
        %v2195 = vadd.f32 %v2193, %v2194
        %v2196 = vrot.slane %v2195, 1
        %v2197 = vadd.f32 %v2195, %v2196
        %v2198 = vadd.f32 %v2188, %v2190
        %v2199 = vrot.slane %v2198, 4
        %v2200 = vadd.f32 %v2198, %v2199
        %v2201 = vrot.slane %v2200, 2
        %v2202 = vadd.f32 %v2200, %v2201
        %v2203 = vrot.slane %v2202, 1
        %v2204 = vadd.f32 %v2202, %v2203
        %v2207 = vrot.slane %v2204, 7
        %v2208 = vsel %vm572, %v2197, %v2207
        %s2210 = scalar_lea.vmem [#allocation2], 64
        %2211 = vst.msk [vmem:[%s2210] ss:$8 sm:$0x3] %vm578, %v2208
        %2212 = vst.msk [vmem:[%s2210] ss:$8 sm:$0x0] %vm578, %v2208
        %v2213 = vmul.f32 %v437, %v2183
        %v2214 = vmul.f32 %v438, %v2184
        %v2215 = vmul.f32 %v439, %v2185
        %v2216 = vmul.f32 %v440, %v2186
        %v2217 = vadd.f32 %v2213, %v2215
        %v2218 = vrot.slane %v2217, 4
        %v2219 = vadd.f32 %v2217, %v2218
        %v2220 = vrot.slane %v2219, 2
        %v2221 = vadd.f32 %v2219, %v2220
        %v2222 = vrot.slane %v2221, 1
        %v2223 = vadd.f32 %v2221, %v2222
        %v2224 = vadd.f32 %v2214, %v2216
        %v2225 = vrot.slane %v2224, 4
        %v2226 = vadd.f32 %v2224, %v2225
        %v2227 = vrot.slane %v2226, 2
        %v2228 = vadd.f32 %v2226, %v2227
        %v2229 = vrot.slane %v2228, 1
        %v2230 = vadd.f32 %v2228, %v2229
        %v2233 = vrot.slane %v2230, 7
        %v2234 = vsel %vm572, %v2223, %v2233
        %s2236 = scalar_lea.vmem [#allocation2], 65
        %2237 = vst.msk [vmem:[%s2236] ss:$8 sm:$0x3] %vm578, %v2234
        %2238 = vst.msk [vmem:[%s2236] ss:$8 sm:$0x0] %vm578, %v2234
        %v2239 = vmul.f32 %v441, %v2183
        %v2240 = vmul.f32 %v442, %v2184
        %v2241 = vmul.f32 %v443, %v2185
        %v2242 = vmul.f32 %v444, %v2186
        %v2243 = vadd.f32 %v2239, %v2241
        %v2244 = vrot.slane %v2243, 4
        %v2245 = vadd.f32 %v2243, %v2244
        %v2246 = vrot.slane %v2245, 2
        %v2247 = vadd.f32 %v2245, %v2246
        %v2248 = vrot.slane %v2247, 1
        %v2249 = vadd.f32 %v2247, %v2248
        %v2250 = vadd.f32 %v2240, %v2242
        %v2251 = vrot.slane %v2250, 4
        %v2252 = vadd.f32 %v2250, %v2251
        %v2253 = vrot.slane %v2252, 2
        %v2254 = vadd.f32 %v2252, %v2253
        %v2255 = vrot.slane %v2254, 1
        %v2256 = vadd.f32 %v2254, %v2255
        %v2259 = vrot.slane %v2256, 7
        %v2260 = vsel %vm572, %v2249, %v2259
        %s2262 = scalar_lea.vmem [#allocation2], 66
        %2263 = vst.msk [vmem:[%s2262] ss:$8 sm:$0x3] %vm578, %v2260
        %2264 = vst.msk [vmem:[%s2262] ss:$8 sm:$0x0] %vm578, %v2260
        %v2265 = vmul.f32 %v445, %v2183
        %v2266 = vmul.f32 %v446, %v2184
        %v2267 = vmul.f32 %v447, %v2185
        %v2268 = vmul.f32 %v448, %v2186
        %v2269 = vadd.f32 %v2265, %v2267
        %v2270 = vrot.slane %v2269, 4
        %v2271 = vadd.f32 %v2269, %v2270
        %v2272 = vrot.slane %v2271, 2
        %v2273 = vadd.f32 %v2271, %v2272
        %v2274 = vrot.slane %v2273, 1
        %v2275 = vadd.f32 %v2273, %v2274
        %v2276 = vadd.f32 %v2266, %v2268
        %v2277 = vrot.slane %v2276, 4
        %v2278 = vadd.f32 %v2276, %v2277
        %v2279 = vrot.slane %v2278, 2
        %v2280 = vadd.f32 %v2278, %v2279
        %v2281 = vrot.slane %v2280, 1
        %v2282 = vadd.f32 %v2280, %v2281
        %v2285 = vrot.slane %v2282, 7
        %v2286 = vsel %vm572, %v2275, %v2285
        %s2288 = scalar_lea.vmem [#allocation2], 67
        %2289 = vst.msk [vmem:[%s2288] ss:$8 sm:$0x3] %vm578, %v2286
        %2290 = vst.msk [vmem:[%s2288] ss:$8 sm:$0x0] %vm578, %v2286
        %s2291 = sld [smem:[#allocation3 + $0x9]]
        %s2292 = sld [smem:[#allocation3 + $0x89]]
        %s2293 = sld [smem:[#allocation3 + $0x109]]
        %s2294 = sld [smem:[#allocation3 + $0x189]]
        %v2295 = vstv %s2291
        %v2296 = vmul.f32 %v369, %v2295
        %v2297 = vmul.f32 %v370, %v2295
        %v2298 = vmul.f32 %v371, %v2295
        %v2299 = vmul.f32 %v372, %v2295
        %v2300 = vstv %s2292
        %v2301 = vmul.f32 %v385, %v2300
        %v2302 = vmul.f32 %v386, %v2300
        %v2303 = vmul.f32 %v387, %v2300
        %v2304 = vmul.f32 %v388, %v2300
        %v2305 = vadd.f32 %v2296, %v2301
        %v2306 = vadd.f32 %v2297, %v2302
        %v2307 = vadd.f32 %v2298, %v2303
        %v2308 = vadd.f32 %v2299, %v2304
        %v2309 = vstv %s2293
        %v2310 = vmul.f32 %v401, %v2309
        %v2311 = vmul.f32 %v402, %v2309
        %v2312 = vmul.f32 %v403, %v2309
        %v2313 = vmul.f32 %v404, %v2309
        %v2314 = vadd.f32 %v2305, %v2310
        %v2315 = vadd.f32 %v2306, %v2311
        %v2316 = vadd.f32 %v2307, %v2312
        %v2317 = vadd.f32 %v2308, %v2313
        %v2318 = vadd.f32 %v421, %v2314
        %v2319 = vadd.f32 %v422, %v2315
        %v2320 = vadd.f32 %v423, %v2316
        %v2321 = vadd.f32 %v424, %v2317
        %v2322 = vstv %s2294
        %v2323 = vadd.f32 %v2318, %v2322
        %v2324 = vadd.f32 %v2319, %v2322
        %v2325 = vadd.f32 %v2320, %v2322
        %v2326 = vadd.f32 %v2321, %v2322
        %v2327 = vmax.f32 %v2323, 0.0
        %v2328 = vmax.f32 %v2324, 0.0
        %v2329 = vmax.f32 %v2325, 0.0
        %v2330 = vmax.f32 %v2326, 0.0
        %v2331 = vrsqrt.pop %v2327
        %v2332 = vmul.f32 %v2331, %v2327
        %v2333 = vmul.f32 %v2332, %v2331
        %v2334 = vmul.f32 0.5, %v2333
        %v2335 = vsub.f32 1.5, %v2334
        %v2336 = vmul.f32 %v2331, %v2335
        %v2337 = vmul.f32 %v2327, %v2336
        %vm2338 = vcmp.eq.f32.partialorder %v2327, inf
        %v2339 = vsel %vm2338, %v2327, %v2337
        %vm2340 = vcmp.eq.f32.partialorder %v2327, 0.0
        %v2341 = vand.u32 %v2327, 2147483648
        %v2342 = vsel %vm2340, %v2341, %v2339
        %v2343 = vrsqrt.pop %v2328
        %v2344 = vmul.f32 %v2343, %v2328
        %v2345 = vmul.f32 %v2344, %v2343
        %v2346 = vmul.f32 0.5, %v2345
        %v2347 = vsub.f32 1.5, %v2346
        %v2348 = vmul.f32 %v2343, %v2347
        %v2349 = vmul.f32 %v2328, %v2348
        %vm2350 = vcmp.eq.f32.partialorder %v2328, inf
        %v2351 = vsel %vm2350, %v2328, %v2349
        %vm2352 = vcmp.eq.f32.partialorder %v2328, 0.0
        %v2353 = vand.u32 %v2328, 2147483648
        %v2354 = vsel %vm2352, %v2353, %v2351
        %v2355 = vrsqrt.pop %v2329
        %v2356 = vmul.f32 %v2355, %v2329
        %v2357 = vmul.f32 %v2356, %v2355
        %v2358 = vmul.f32 0.5, %v2357
        %v2359 = vsub.f32 1.5, %v2358
        %v2360 = vmul.f32 %v2355, %v2359
        %v2361 = vmul.f32 %v2329, %v2360
        %vm2362 = vcmp.eq.f32.partialorder %v2329, inf
        %v2363 = vsel %vm2362, %v2329, %v2361
        %vm2364 = vcmp.eq.f32.partialorder %v2329, 0.0
        %v2365 = vand.u32 %v2329, 2147483648
        %v2366 = vsel %vm2364, %v2365, %v2363
        %v2367 = vrsqrt.pop %v2330
        %v2368 = vmul.f32 %v2367, %v2330
        %v2369 = vmul.f32 %v2368, %v2367
        %v2370 = vmul.f32 0.5, %v2369
        %v2371 = vsub.f32 1.5, %v2370
        %v2372 = vmul.f32 %v2367, %v2371
        %v2373 = vmul.f32 %v2330, %v2372
        %vm2374 = vcmp.eq.f32.partialorder %v2330, inf
        %v2375 = vsel %vm2374, %v2330, %v2373
        %vm2376 = vcmp.eq.f32.partialorder %v2330, 0.0
        %v2377 = vand.u32 %v2330, 2147483648
        %v2378 = vsel %vm2376, %v2377, %v2375
        %v2379 = vmul.f32 %v2342, 10.0
        %v2380 = vmul.f32 %v2354, 10.0
        %v2381 = vmul.f32 %v2366, 10.0
        %v2382 = vmul.f32 %v2378, 10.0
        %v2383 = vsub.f32 1.0, %v2379
        %v2384 = vsub.f32 1.0, %v2380
        %v2385 = vsub.f32 1.0, %v2381
        %v2386 = vsub.f32 1.0, %v2382
        %v2387 = vmax.f32 %v2383, 0.0
        %v2388 = vmax.f32 %v2384, 0.0
        %v2389 = vmax.f32 %v2385, 0.0
        %v2390 = vmax.f32 %v2386, 0.0
        %v2391 = vmul.f32 %v433, %v2387
        %v2392 = vmul.f32 %v434, %v2388
        %v2393 = vmul.f32 %v435, %v2389
        %v2394 = vmul.f32 %v436, %v2390
        %v2395 = vadd.f32 %v2391, %v2393
        %v2396 = vrot.slane %v2395, 4
        %v2397 = vadd.f32 %v2395, %v2396
        %v2398 = vrot.slane %v2397, 2
        %v2399 = vadd.f32 %v2397, %v2398
        %v2400 = vrot.slane %v2399, 1
        %v2401 = vadd.f32 %v2399, %v2400
        %v2402 = vadd.f32 %v2392, %v2394
        %v2403 = vrot.slane %v2402, 4
        %v2404 = vadd.f32 %v2402, %v2403
        %v2405 = vrot.slane %v2404, 2
        %v2406 = vadd.f32 %v2404, %v2405
        %v2407 = vrot.slane %v2406, 1
        %v2408 = vadd.f32 %v2406, %v2407
        %v2411 = vrot.slane %v2408, 7
        %v2412 = vsel %vm572, %v2401, %v2411
        %s2414 = scalar_lea.vmem [#allocation2], 68
        %2415 = vst.msk [vmem:[%s2414] ss:$8 sm:$0x3] %vm578, %v2412
        %2416 = vst.msk [vmem:[%s2414] ss:$8 sm:$0x0] %vm578, %v2412
        %v2417 = vmul.f32 %v437, %v2387
        %v2418 = vmul.f32 %v438, %v2388
        %v2419 = vmul.f32 %v439, %v2389
        %v2420 = vmul.f32 %v440, %v2390
        %v2421 = vadd.f32 %v2417, %v2419
        %v2422 = vrot.slane %v2421, 4
        %v2423 = vadd.f32 %v2421, %v2422
        %v2424 = vrot.slane %v2423, 2
        %v2425 = vadd.f32 %v2423, %v2424
        %v2426 = vrot.slane %v2425, 1
        %v2427 = vadd.f32 %v2425, %v2426
        %v2428 = vadd.f32 %v2418, %v2420
        %v2429 = vrot.slane %v2428, 4
        %v2430 = vadd.f32 %v2428, %v2429
        %v2431 = vrot.slane %v2430, 2
        %v2432 = vadd.f32 %v2430, %v2431
        %v2433 = vrot.slane %v2432, 1
        %v2434 = vadd.f32 %v2432, %v2433
        %v2437 = vrot.slane %v2434, 7
        %v2438 = vsel %vm572, %v2427, %v2437
        %s2440 = scalar_lea.vmem [#allocation2], 69
        %2441 = vst.msk [vmem:[%s2440] ss:$8 sm:$0x3] %vm578, %v2438
        %2442 = vst.msk [vmem:[%s2440] ss:$8 sm:$0x0] %vm578, %v2438
        %v2443 = vmul.f32 %v441, %v2387
        %v2444 = vmul.f32 %v442, %v2388
        %v2445 = vmul.f32 %v443, %v2389
        %v2446 = vmul.f32 %v444, %v2390
        %v2447 = vadd.f32 %v2443, %v2445
        %v2448 = vrot.slane %v2447, 4
        %v2449 = vadd.f32 %v2447, %v2448
        %v2450 = vrot.slane %v2449, 2
        %v2451 = vadd.f32 %v2449, %v2450
        %v2452 = vrot.slane %v2451, 1
        %v2453 = vadd.f32 %v2451, %v2452
        %v2454 = vadd.f32 %v2444, %v2446
        %v2455 = vrot.slane %v2454, 4
        %v2456 = vadd.f32 %v2454, %v2455
        %v2457 = vrot.slane %v2456, 2
        %v2458 = vadd.f32 %v2456, %v2457
        %v2459 = vrot.slane %v2458, 1
        %v2460 = vadd.f32 %v2458, %v2459
        %v2463 = vrot.slane %v2460, 7
        %v2464 = vsel %vm572, %v2453, %v2463
        %s2466 = scalar_lea.vmem [#allocation2], 70
        %2467 = vst.msk [vmem:[%s2466] ss:$8 sm:$0x3] %vm578, %v2464
        %2468 = vst.msk [vmem:[%s2466] ss:$8 sm:$0x0] %vm578, %v2464
        %v2469 = vmul.f32 %v445, %v2387
        %v2470 = vmul.f32 %v446, %v2388
        %v2471 = vmul.f32 %v447, %v2389
        %v2472 = vmul.f32 %v448, %v2390
        %v2473 = vadd.f32 %v2469, %v2471
        %v2474 = vrot.slane %v2473, 4
        %v2475 = vadd.f32 %v2473, %v2474
        %v2476 = vrot.slane %v2475, 2
        %v2477 = vadd.f32 %v2475, %v2476
        %v2478 = vrot.slane %v2477, 1
        %v2479 = vadd.f32 %v2477, %v2478
        %v2480 = vadd.f32 %v2470, %v2472
        %v2481 = vrot.slane %v2480, 4
        %v2482 = vadd.f32 %v2480, %v2481
        %v2483 = vrot.slane %v2482, 2
        %v2484 = vadd.f32 %v2482, %v2483
        %v2485 = vrot.slane %v2484, 1
        %v2486 = vadd.f32 %v2484, %v2485
        %v2489 = vrot.slane %v2486, 7
        %v2490 = vsel %vm572, %v2479, %v2489
        %s2492 = scalar_lea.vmem [#allocation2], 71
        %2493 = vst.msk [vmem:[%s2492] ss:$8 sm:$0x3] %vm578, %v2490
        %2494 = vst.msk [vmem:[%s2492] ss:$8 sm:$0x0] %vm578, %v2490
        %s2495 = sld [smem:[#allocation3 + $0xa]]
        %s2496 = sld [smem:[#allocation3 + $0x8a]]
        %s2497 = sld [smem:[#allocation3 + $0x10a]]
        %s2498 = sld [smem:[#allocation3 + $0x18a]]
        %v2499 = vstv %s2495
        %v2500 = vmul.f32 %v369, %v2499
        %v2501 = vmul.f32 %v370, %v2499
        %v2502 = vmul.f32 %v371, %v2499
        %v2503 = vmul.f32 %v372, %v2499
        %v2504 = vstv %s2496
        %v2505 = vmul.f32 %v385, %v2504
        %v2506 = vmul.f32 %v386, %v2504
        %v2507 = vmul.f32 %v387, %v2504
        %v2508 = vmul.f32 %v388, %v2504
        %v2509 = vadd.f32 %v2500, %v2505
        %v2510 = vadd.f32 %v2501, %v2506
        %v2511 = vadd.f32 %v2502, %v2507
        %v2512 = vadd.f32 %v2503, %v2508
        %v2513 = vstv %s2497
        %v2514 = vmul.f32 %v401, %v2513
        %v2515 = vmul.f32 %v402, %v2513
        %v2516 = vmul.f32 %v403, %v2513
        %v2517 = vmul.f32 %v404, %v2513
        %v2518 = vadd.f32 %v2509, %v2514
        %v2519 = vadd.f32 %v2510, %v2515
        %v2520 = vadd.f32 %v2511, %v2516
        %v2521 = vadd.f32 %v2512, %v2517
        %v2522 = vadd.f32 %v421, %v2518
        %v2523 = vadd.f32 %v422, %v2519
        %v2524 = vadd.f32 %v423, %v2520
        %v2525 = vadd.f32 %v424, %v2521
        %v2526 = vstv %s2498
        %v2527 = vadd.f32 %v2522, %v2526
        %v2528 = vadd.f32 %v2523, %v2526
        %v2529 = vadd.f32 %v2524, %v2526
        %v2530 = vadd.f32 %v2525, %v2526
        %v2531 = vmax.f32 %v2527, 0.0
        %v2532 = vmax.f32 %v2528, 0.0
        %v2533 = vmax.f32 %v2529, 0.0
        %v2534 = vmax.f32 %v2530, 0.0
        %v2535 = vrsqrt.pop %v2531
        %v2536 = vmul.f32 %v2535, %v2531
        %v2537 = vmul.f32 %v2536, %v2535
        %v2538 = vmul.f32 0.5, %v2537
        %v2539 = vsub.f32 1.5, %v2538
        %v2540 = vmul.f32 %v2535, %v2539
        %v2541 = vmul.f32 %v2531, %v2540
        %vm2542 = vcmp.eq.f32.partialorder %v2531, inf
        %v2543 = vsel %vm2542, %v2531, %v2541
        %vm2544 = vcmp.eq.f32.partialorder %v2531, 0.0
        %v2545 = vand.u32 %v2531, 2147483648
        %v2546 = vsel %vm2544, %v2545, %v2543
        %v2547 = vrsqrt.pop %v2532
        %v2548 = vmul.f32 %v2547, %v2532
        %v2549 = vmul.f32 %v2548, %v2547
        %v2550 = vmul.f32 0.5, %v2549
        %v2551 = vsub.f32 1.5, %v2550
        %v2552 = vmul.f32 %v2547, %v2551
        %v2553 = vmul.f32 %v2532, %v2552
        %vm2554 = vcmp.eq.f32.partialorder %v2532, inf
        %v2555 = vsel %vm2554, %v2532, %v2553
        %vm2556 = vcmp.eq.f32.partialorder %v2532, 0.0
        %v2557 = vand.u32 %v2532, 2147483648
        %v2558 = vsel %vm2556, %v2557, %v2555
        %v2559 = vrsqrt.pop %v2533
        %v2560 = vmul.f32 %v2559, %v2533
        %v2561 = vmul.f32 %v2560, %v2559
        %v2562 = vmul.f32 0.5, %v2561
        %v2563 = vsub.f32 1.5, %v2562
        %v2564 = vmul.f32 %v2559, %v2563
        %v2565 = vmul.f32 %v2533, %v2564
        %vm2566 = vcmp.eq.f32.partialorder %v2533, inf
        %v2567 = vsel %vm2566, %v2533, %v2565
        %vm2568 = vcmp.eq.f32.partialorder %v2533, 0.0
        %v2569 = vand.u32 %v2533, 2147483648
        %v2570 = vsel %vm2568, %v2569, %v2567
        %v2571 = vrsqrt.pop %v2534
        %v2572 = vmul.f32 %v2571, %v2534
        %v2573 = vmul.f32 %v2572, %v2571
        %v2574 = vmul.f32 0.5, %v2573
        %v2575 = vsub.f32 1.5, %v2574
        %v2576 = vmul.f32 %v2571, %v2575
        %v2577 = vmul.f32 %v2534, %v2576
        %vm2578 = vcmp.eq.f32.partialorder %v2534, inf
        %v2579 = vsel %vm2578, %v2534, %v2577
        %vm2580 = vcmp.eq.f32.partialorder %v2534, 0.0
        %v2581 = vand.u32 %v2534, 2147483648
        %v2582 = vsel %vm2580, %v2581, %v2579
        %v2583 = vmul.f32 %v2546, 10.0
        %v2584 = vmul.f32 %v2558, 10.0
        %v2585 = vmul.f32 %v2570, 10.0
        %v2586 = vmul.f32 %v2582, 10.0
        %v2587 = vsub.f32 1.0, %v2583
        %v2588 = vsub.f32 1.0, %v2584
        %v2589 = vsub.f32 1.0, %v2585
        %v2590 = vsub.f32 1.0, %v2586
        %v2591 = vmax.f32 %v2587, 0.0
        %v2592 = vmax.f32 %v2588, 0.0
        %v2593 = vmax.f32 %v2589, 0.0
        %v2594 = vmax.f32 %v2590, 0.0
        %v2595 = vmul.f32 %v433, %v2591
        %v2596 = vmul.f32 %v434, %v2592
        %v2597 = vmul.f32 %v435, %v2593
        %v2598 = vmul.f32 %v436, %v2594
        %v2599 = vadd.f32 %v2595, %v2597
        %v2600 = vrot.slane %v2599, 4
        %v2601 = vadd.f32 %v2599, %v2600
        %v2602 = vrot.slane %v2601, 2
        %v2603 = vadd.f32 %v2601, %v2602
        %v2604 = vrot.slane %v2603, 1
        %v2605 = vadd.f32 %v2603, %v2604
        %v2606 = vadd.f32 %v2596, %v2598
        %v2607 = vrot.slane %v2606, 4
        %v2608 = vadd.f32 %v2606, %v2607
        %v2609 = vrot.slane %v2608, 2
        %v2610 = vadd.f32 %v2608, %v2609
        %v2611 = vrot.slane %v2610, 1
        %v2612 = vadd.f32 %v2610, %v2611
        %v2615 = vrot.slane %v2612, 7
        %v2616 = vsel %vm572, %v2605, %v2615
        %s2618 = scalar_lea.vmem [#allocation2], 80
        %2619 = vst.msk [vmem:[%s2618] ss:$8 sm:$0x3] %vm578, %v2616
        %2620 = vst.msk [vmem:[%s2618] ss:$8 sm:$0x0] %vm578, %v2616
        %v2621 = vmul.f32 %v437, %v2591
        %v2622 = vmul.f32 %v438, %v2592
        %v2623 = vmul.f32 %v439, %v2593
        %v2624 = vmul.f32 %v440, %v2594
        %v2625 = vadd.f32 %v2621, %v2623
        %v2626 = vrot.slane %v2625, 4
        %v2627 = vadd.f32 %v2625, %v2626
        %v2628 = vrot.slane %v2627, 2
        %v2629 = vadd.f32 %v2627, %v2628
        %v2630 = vrot.slane %v2629, 1
        %v2631 = vadd.f32 %v2629, %v2630
        %v2632 = vadd.f32 %v2622, %v2624
        %v2633 = vrot.slane %v2632, 4
        %v2634 = vadd.f32 %v2632, %v2633
        %v2635 = vrot.slane %v2634, 2
        %v2636 = vadd.f32 %v2634, %v2635
        %v2637 = vrot.slane %v2636, 1
        %v2638 = vadd.f32 %v2636, %v2637
        %v2641 = vrot.slane %v2638, 7
        %v2642 = vsel %vm572, %v2631, %v2641
        %s2644 = scalar_lea.vmem [#allocation2], 81
        %2645 = vst.msk [vmem:[%s2644] ss:$8 sm:$0x3] %vm578, %v2642
        %2646 = vst.msk [vmem:[%s2644] ss:$8 sm:$0x0] %vm578, %v2642
        %v2647 = vmul.f32 %v441, %v2591
        %v2648 = vmul.f32 %v442, %v2592
        %v2649 = vmul.f32 %v443, %v2593
        %v2650 = vmul.f32 %v444, %v2594
        %v2651 = vadd.f32 %v2647, %v2649
        %v2652 = vrot.slane %v2651, 4
        %v2653 = vadd.f32 %v2651, %v2652
        %v2654 = vrot.slane %v2653, 2
        %v2655 = vadd.f32 %v2653, %v2654
        %v2656 = vrot.slane %v2655, 1
        %v2657 = vadd.f32 %v2655, %v2656
        %v2658 = vadd.f32 %v2648, %v2650
        %v2659 = vrot.slane %v2658, 4
        %v2660 = vadd.f32 %v2658, %v2659
        %v2661 = vrot.slane %v2660, 2
        %v2662 = vadd.f32 %v2660, %v2661
        %v2663 = vrot.slane %v2662, 1
        %v2664 = vadd.f32 %v2662, %v2663
        %v2667 = vrot.slane %v2664, 7
        %v2668 = vsel %vm572, %v2657, %v2667
        %s2670 = scalar_lea.vmem [#allocation2], 82
        %2671 = vst.msk [vmem:[%s2670] ss:$8 sm:$0x3] %vm578, %v2668
        %2672 = vst.msk [vmem:[%s2670] ss:$8 sm:$0x0] %vm578, %v2668
        %v2673 = vmul.f32 %v445, %v2591
        %v2674 = vmul.f32 %v446, %v2592
        %v2675 = vmul.f32 %v447, %v2593
        %v2676 = vmul.f32 %v448, %v2594
        %v2677 = vadd.f32 %v2673, %v2675
        %v2678 = vrot.slane %v2677, 4
        %v2679 = vadd.f32 %v2677, %v2678
        %v2680 = vrot.slane %v2679, 2
        %v2681 = vadd.f32 %v2679, %v2680
        %v2682 = vrot.slane %v2681, 1
        %v2683 = vadd.f32 %v2681, %v2682
        %v2684 = vadd.f32 %v2674, %v2676
        %v2685 = vrot.slane %v2684, 4
        %v2686 = vadd.f32 %v2684, %v2685
        %v2687 = vrot.slane %v2686, 2
        %v2688 = vadd.f32 %v2686, %v2687
        %v2689 = vrot.slane %v2688, 1
        %v2690 = vadd.f32 %v2688, %v2689
        %v2693 = vrot.slane %v2690, 7
        %v2694 = vsel %vm572, %v2683, %v2693
        %s2696 = scalar_lea.vmem [#allocation2], 83
        %2697 = vst.msk [vmem:[%s2696] ss:$8 sm:$0x3] %vm578, %v2694
        %2698 = vst.msk [vmem:[%s2696] ss:$8 sm:$0x0] %vm578, %v2694
        %s2699 = sld [smem:[#allocation3 + $0xb]]
        %s2700 = sld [smem:[#allocation3 + $0x8b]]
        %s2701 = sld [smem:[#allocation3 + $0x10b]]
        %s2702 = sld [smem:[#allocation3 + $0x18b]]
        %v2703 = vstv %s2699
        %v2704 = vmul.f32 %v369, %v2703
        %v2705 = vmul.f32 %v370, %v2703
        %v2706 = vmul.f32 %v371, %v2703
        %v2707 = vmul.f32 %v372, %v2703
        %v2708 = vstv %s2700
        %v2709 = vmul.f32 %v385, %v2708
        %v2710 = vmul.f32 %v386, %v2708
        %v2711 = vmul.f32 %v387, %v2708
        %v2712 = vmul.f32 %v388, %v2708
        %v2713 = vadd.f32 %v2704, %v2709
        %v2714 = vadd.f32 %v2705, %v2710
        %v2715 = vadd.f32 %v2706, %v2711
        %v2716 = vadd.f32 %v2707, %v2712
        %v2717 = vstv %s2701
        %v2718 = vmul.f32 %v401, %v2717
        %v2719 = vmul.f32 %v402, %v2717
        %v2720 = vmul.f32 %v403, %v2717
        %v2721 = vmul.f32 %v404, %v2717
        %v2722 = vadd.f32 %v2713, %v2718
        %v2723 = vadd.f32 %v2714, %v2719
        %v2724 = vadd.f32 %v2715, %v2720
        %v2725 = vadd.f32 %v2716, %v2721
        %v2726 = vadd.f32 %v421, %v2722
        %v2727 = vadd.f32 %v422, %v2723
        %v2728 = vadd.f32 %v423, %v2724
        %v2729 = vadd.f32 %v424, %v2725
        %v2730 = vstv %s2702
        %v2731 = vadd.f32 %v2726, %v2730
        %v2732 = vadd.f32 %v2727, %v2730
        %v2733 = vadd.f32 %v2728, %v2730
        %v2734 = vadd.f32 %v2729, %v2730
        %v2735 = vmax.f32 %v2731, 0.0
        %v2736 = vmax.f32 %v2732, 0.0
        %v2737 = vmax.f32 %v2733, 0.0
        %v2738 = vmax.f32 %v2734, 0.0
        %v2739 = vrsqrt.pop %v2735
        %v2740 = vmul.f32 %v2739, %v2735
        %v2741 = vmul.f32 %v2740, %v2739
        %v2742 = vmul.f32 0.5, %v2741
        %v2743 = vsub.f32 1.5, %v2742
        %v2744 = vmul.f32 %v2739, %v2743
        %v2745 = vmul.f32 %v2735, %v2744
        %vm2746 = vcmp.eq.f32.partialorder %v2735, inf
        %v2747 = vsel %vm2746, %v2735, %v2745
        %vm2748 = vcmp.eq.f32.partialorder %v2735, 0.0
        %v2749 = vand.u32 %v2735, 2147483648
        %v2750 = vsel %vm2748, %v2749, %v2747
        %v2751 = vrsqrt.pop %v2736
        %v2752 = vmul.f32 %v2751, %v2736
        %v2753 = vmul.f32 %v2752, %v2751
        %v2754 = vmul.f32 0.5, %v2753
        %v2755 = vsub.f32 1.5, %v2754
        %v2756 = vmul.f32 %v2751, %v2755
        %v2757 = vmul.f32 %v2736, %v2756
        %vm2758 = vcmp.eq.f32.partialorder %v2736, inf
        %v2759 = vsel %vm2758, %v2736, %v2757
        %vm2760 = vcmp.eq.f32.partialorder %v2736, 0.0
        %v2761 = vand.u32 %v2736, 2147483648
        %v2762 = vsel %vm2760, %v2761, %v2759
        %v2763 = vrsqrt.pop %v2737
        %v2764 = vmul.f32 %v2763, %v2737
        %v2765 = vmul.f32 %v2764, %v2763
        %v2766 = vmul.f32 0.5, %v2765
        %v2767 = vsub.f32 1.5, %v2766
        %v2768 = vmul.f32 %v2763, %v2767
        %v2769 = vmul.f32 %v2737, %v2768
        %vm2770 = vcmp.eq.f32.partialorder %v2737, inf
        %v2771 = vsel %vm2770, %v2737, %v2769
        %vm2772 = vcmp.eq.f32.partialorder %v2737, 0.0
        %v2773 = vand.u32 %v2737, 2147483648
        %v2774 = vsel %vm2772, %v2773, %v2771
        %v2775 = vrsqrt.pop %v2738
        %v2776 = vmul.f32 %v2775, %v2738
        %v2777 = vmul.f32 %v2776, %v2775
        %v2778 = vmul.f32 0.5, %v2777
        %v2779 = vsub.f32 1.5, %v2778
        %v2780 = vmul.f32 %v2775, %v2779
        %v2781 = vmul.f32 %v2738, %v2780
        %vm2782 = vcmp.eq.f32.partialorder %v2738, inf
        %v2783 = vsel %vm2782, %v2738, %v2781
        %vm2784 = vcmp.eq.f32.partialorder %v2738, 0.0
        %v2785 = vand.u32 %v2738, 2147483648
        %v2786 = vsel %vm2784, %v2785, %v2783
        %v2787 = vmul.f32 %v2750, 10.0
        %v2788 = vmul.f32 %v2762, 10.0
        %v2789 = vmul.f32 %v2774, 10.0
        %v2790 = vmul.f32 %v2786, 10.0
        %v2791 = vsub.f32 1.0, %v2787
        %v2792 = vsub.f32 1.0, %v2788
        %v2793 = vsub.f32 1.0, %v2789
        %v2794 = vsub.f32 1.0, %v2790
        %v2795 = vmax.f32 %v2791, 0.0
        %v2796 = vmax.f32 %v2792, 0.0
        %v2797 = vmax.f32 %v2793, 0.0
        %v2798 = vmax.f32 %v2794, 0.0
        %v2799 = vmul.f32 %v433, %v2795
        %v2800 = vmul.f32 %v434, %v2796
        %v2801 = vmul.f32 %v435, %v2797
        %v2802 = vmul.f32 %v436, %v2798
        %v2803 = vadd.f32 %v2799, %v2801
        %v2804 = vrot.slane %v2803, 4
        %v2805 = vadd.f32 %v2803, %v2804
        %v2806 = vrot.slane %v2805, 2
        %v2807 = vadd.f32 %v2805, %v2806
        %v2808 = vrot.slane %v2807, 1
        %v2809 = vadd.f32 %v2807, %v2808
        %v2810 = vadd.f32 %v2800, %v2802
        %v2811 = vrot.slane %v2810, 4
        %v2812 = vadd.f32 %v2810, %v2811
        %v2813 = vrot.slane %v2812, 2
        %v2814 = vadd.f32 %v2812, %v2813
        %v2815 = vrot.slane %v2814, 1
        %v2816 = vadd.f32 %v2814, %v2815
        %v2819 = vrot.slane %v2816, 7
        %v2820 = vsel %vm572, %v2809, %v2819
        %s2822 = scalar_lea.vmem [#allocation2], 84
        %2823 = vst.msk [vmem:[%s2822] ss:$8 sm:$0x3] %vm578, %v2820
        %2824 = vst.msk [vmem:[%s2822] ss:$8 sm:$0x0] %vm578, %v2820
        %v2825 = vmul.f32 %v437, %v2795
        %v2826 = vmul.f32 %v438, %v2796
        %v2827 = vmul.f32 %v439, %v2797
        %v2828 = vmul.f32 %v440, %v2798
        %v2829 = vadd.f32 %v2825, %v2827
        %v2830 = vrot.slane %v2829, 4
        %v2831 = vadd.f32 %v2829, %v2830
        %v2832 = vrot.slane %v2831, 2
        %v2833 = vadd.f32 %v2831, %v2832
        %v2834 = vrot.slane %v2833, 1
        %v2835 = vadd.f32 %v2833, %v2834
        %v2836 = vadd.f32 %v2826, %v2828
        %v2837 = vrot.slane %v2836, 4
        %v2838 = vadd.f32 %v2836, %v2837
        %v2839 = vrot.slane %v2838, 2
        %v2840 = vadd.f32 %v2838, %v2839
        %v2841 = vrot.slane %v2840, 1
        %v2842 = vadd.f32 %v2840, %v2841
        %v2845 = vrot.slane %v2842, 7
        %v2846 = vsel %vm572, %v2835, %v2845
        %s2848 = scalar_lea.vmem [#allocation2], 85
        %2849 = vst.msk [vmem:[%s2848] ss:$8 sm:$0x3] %vm578, %v2846
        %2850 = vst.msk [vmem:[%s2848] ss:$8 sm:$0x0] %vm578, %v2846
        %v2851 = vmul.f32 %v441, %v2795
        %v2852 = vmul.f32 %v442, %v2796
        %v2853 = vmul.f32 %v443, %v2797
        %v2854 = vmul.f32 %v444, %v2798
        %v2855 = vadd.f32 %v2851, %v2853
        %v2856 = vrot.slane %v2855, 4
        %v2857 = vadd.f32 %v2855, %v2856
        %v2858 = vrot.slane %v2857, 2
        %v2859 = vadd.f32 %v2857, %v2858
        %v2860 = vrot.slane %v2859, 1
        %v2861 = vadd.f32 %v2859, %v2860
        %v2862 = vadd.f32 %v2852, %v2854
        %v2863 = vrot.slane %v2862, 4
        %v2864 = vadd.f32 %v2862, %v2863
        %v2865 = vrot.slane %v2864, 2
        %v2866 = vadd.f32 %v2864, %v2865
        %v2867 = vrot.slane %v2866, 1
        %v2868 = vadd.f32 %v2866, %v2867
        %v2871 = vrot.slane %v2868, 7
        %v2872 = vsel %vm572, %v2861, %v2871
        %s2874 = scalar_lea.vmem [#allocation2], 86
        %2875 = vst.msk [vmem:[%s2874] ss:$8 sm:$0x3] %vm578, %v2872
        %2876 = vst.msk [vmem:[%s2874] ss:$8 sm:$0x0] %vm578, %v2872
        %v2877 = vmul.f32 %v445, %v2795
        %v2878 = vmul.f32 %v446, %v2796
        %v2879 = vmul.f32 %v447, %v2797
        %v2880 = vmul.f32 %v448, %v2798
        %v2881 = vadd.f32 %v2877, %v2879
        %v2882 = vrot.slane %v2881, 4
        %v2883 = vadd.f32 %v2881, %v2882
        %v2884 = vrot.slane %v2883, 2
        %v2885 = vadd.f32 %v2883, %v2884
        %v2886 = vrot.slane %v2885, 1
        %v2887 = vadd.f32 %v2885, %v2886
        %v2888 = vadd.f32 %v2878, %v2880
        %v2889 = vrot.slane %v2888, 4
        %v2890 = vadd.f32 %v2888, %v2889
        %v2891 = vrot.slane %v2890, 2
        %v2892 = vadd.f32 %v2890, %v2891
        %v2893 = vrot.slane %v2892, 1
        %v2894 = vadd.f32 %v2892, %v2893
        %v2897 = vrot.slane %v2894, 7
        %v2898 = vsel %vm572, %v2887, %v2897
        %s2900 = scalar_lea.vmem [#allocation2], 87
        %2901 = vst.msk [vmem:[%s2900] ss:$8 sm:$0x3] %vm578, %v2898
        %2902 = vst.msk [vmem:[%s2900] ss:$8 sm:$0x0] %vm578, %v2898
        %s2903 = sld [smem:[#allocation3 + $0xc]]
        %s2904 = sld [smem:[#allocation3 + $0x8c]]
        %s2905 = sld [smem:[#allocation3 + $0x10c]]
        %s2906 = sld [smem:[#allocation3 + $0x18c]]
        %v2907 = vstv %s2903
        %v2908 = vmul.f32 %v369, %v2907
        %v2909 = vmul.f32 %v370, %v2907
        %v2910 = vmul.f32 %v371, %v2907
        %v2911 = vmul.f32 %v372, %v2907
        %v2912 = vstv %s2904
        %v2913 = vmul.f32 %v385, %v2912
        %v2914 = vmul.f32 %v386, %v2912
        %v2915 = vmul.f32 %v387, %v2912
        %v2916 = vmul.f32 %v388, %v2912
        %v2917 = vadd.f32 %v2908, %v2913
        %v2918 = vadd.f32 %v2909, %v2914
        %v2919 = vadd.f32 %v2910, %v2915
        %v2920 = vadd.f32 %v2911, %v2916
        %v2921 = vstv %s2905
        %v2922 = vmul.f32 %v401, %v2921
        %v2923 = vmul.f32 %v402, %v2921
        %v2924 = vmul.f32 %v403, %v2921
        %v2925 = vmul.f32 %v404, %v2921
        %v2926 = vadd.f32 %v2917, %v2922
        %v2927 = vadd.f32 %v2918, %v2923
        %v2928 = vadd.f32 %v2919, %v2924
        %v2929 = vadd.f32 %v2920, %v2925
        %v2930 = vadd.f32 %v421, %v2926
        %v2931 = vadd.f32 %v422, %v2927
        %v2932 = vadd.f32 %v423, %v2928
        %v2933 = vadd.f32 %v424, %v2929
        %v2934 = vstv %s2906
        %v2935 = vadd.f32 %v2930, %v2934
        %v2936 = vadd.f32 %v2931, %v2934
        %v2937 = vadd.f32 %v2932, %v2934
        %v2938 = vadd.f32 %v2933, %v2934
        %v2939 = vmax.f32 %v2935, 0.0
        %v2940 = vmax.f32 %v2936, 0.0
        %v2941 = vmax.f32 %v2937, 0.0
        %v2942 = vmax.f32 %v2938, 0.0
        %v2943 = vrsqrt.pop %v2939
        %v2944 = vmul.f32 %v2943, %v2939
        %v2945 = vmul.f32 %v2944, %v2943
        %v2946 = vmul.f32 0.5, %v2945
        %v2947 = vsub.f32 1.5, %v2946
        %v2948 = vmul.f32 %v2943, %v2947
        %v2949 = vmul.f32 %v2939, %v2948
        %vm2950 = vcmp.eq.f32.partialorder %v2939, inf
        %v2951 = vsel %vm2950, %v2939, %v2949
        %vm2952 = vcmp.eq.f32.partialorder %v2939, 0.0
        %v2953 = vand.u32 %v2939, 2147483648
        %v2954 = vsel %vm2952, %v2953, %v2951
        %v2955 = vrsqrt.pop %v2940
        %v2956 = vmul.f32 %v2955, %v2940
        %v2957 = vmul.f32 %v2956, %v2955
        %v2958 = vmul.f32 0.5, %v2957
        %v2959 = vsub.f32 1.5, %v2958
        %v2960 = vmul.f32 %v2955, %v2959
        %v2961 = vmul.f32 %v2940, %v2960
        %vm2962 = vcmp.eq.f32.partialorder %v2940, inf
        %v2963 = vsel %vm2962, %v2940, %v2961
        %vm2964 = vcmp.eq.f32.partialorder %v2940, 0.0
        %v2965 = vand.u32 %v2940, 2147483648
        %v2966 = vsel %vm2964, %v2965, %v2963
        %v2967 = vrsqrt.pop %v2941
        %v2968 = vmul.f32 %v2967, %v2941
        %v2969 = vmul.f32 %v2968, %v2967
        %v2970 = vmul.f32 0.5, %v2969
        %v2971 = vsub.f32 1.5, %v2970
        %v2972 = vmul.f32 %v2967, %v2971
        %v2973 = vmul.f32 %v2941, %v2972
        %vm2974 = vcmp.eq.f32.partialorder %v2941, inf
        %v2975 = vsel %vm2974, %v2941, %v2973
        %vm2976 = vcmp.eq.f32.partialorder %v2941, 0.0
        %v2977 = vand.u32 %v2941, 2147483648
        %v2978 = vsel %vm2976, %v2977, %v2975
        %v2979 = vrsqrt.pop %v2942
        %v2980 = vmul.f32 %v2979, %v2942
        %v2981 = vmul.f32 %v2980, %v2979
        %v2982 = vmul.f32 0.5, %v2981
        %v2983 = vsub.f32 1.5, %v2982
        %v2984 = vmul.f32 %v2979, %v2983
        %v2985 = vmul.f32 %v2942, %v2984
        %vm2986 = vcmp.eq.f32.partialorder %v2942, inf
        %v2987 = vsel %vm2986, %v2942, %v2985
        %vm2988 = vcmp.eq.f32.partialorder %v2942, 0.0
        %v2989 = vand.u32 %v2942, 2147483648
        %v2990 = vsel %vm2988, %v2989, %v2987
        %v2991 = vmul.f32 %v2954, 10.0
        %v2992 = vmul.f32 %v2966, 10.0
        %v2993 = vmul.f32 %v2978, 10.0
        %v2994 = vmul.f32 %v2990, 10.0
        %v2995 = vsub.f32 1.0, %v2991
        %v2996 = vsub.f32 1.0, %v2992
        %v2997 = vsub.f32 1.0, %v2993
        %v2998 = vsub.f32 1.0, %v2994
        %v2999 = vmax.f32 %v2995, 0.0
        %v3000 = vmax.f32 %v2996, 0.0
        %v3001 = vmax.f32 %v2997, 0.0
        %v3002 = vmax.f32 %v2998, 0.0
        %v3003 = vmul.f32 %v433, %v2999
        %v3004 = vmul.f32 %v434, %v3000
        %v3005 = vmul.f32 %v435, %v3001
        %v3006 = vmul.f32 %v436, %v3002
        %v3007 = vadd.f32 %v3003, %v3005
        %v3008 = vrot.slane %v3007, 4
        %v3009 = vadd.f32 %v3007, %v3008
        %v3010 = vrot.slane %v3009, 2
        %v3011 = vadd.f32 %v3009, %v3010
        %v3012 = vrot.slane %v3011, 1
        %v3013 = vadd.f32 %v3011, %v3012
        %v3014 = vadd.f32 %v3004, %v3006
        %v3015 = vrot.slane %v3014, 4
        %v3016 = vadd.f32 %v3014, %v3015
        %v3017 = vrot.slane %v3016, 2
        %v3018 = vadd.f32 %v3016, %v3017
        %v3019 = vrot.slane %v3018, 1
        %v3020 = vadd.f32 %v3018, %v3019
        %v3023 = vrot.slane %v3020, 7
        %v3024 = vsel %vm572, %v3013, %v3023
        %s3026 = scalar_lea.vmem [#allocation2], 96
        %3027 = vst.msk [vmem:[%s3026] ss:$8 sm:$0x3] %vm578, %v3024
        %3028 = vst.msk [vmem:[%s3026] ss:$8 sm:$0x0] %vm578, %v3024
        %v3029 = vmul.f32 %v437, %v2999
        %v3030 = vmul.f32 %v438, %v3000
        %v3031 = vmul.f32 %v439, %v3001
        %v3032 = vmul.f32 %v440, %v3002
        %v3033 = vadd.f32 %v3029, %v3031
        %v3034 = vrot.slane %v3033, 4
        %v3035 = vadd.f32 %v3033, %v3034
        %v3036 = vrot.slane %v3035, 2
        %v3037 = vadd.f32 %v3035, %v3036
        %v3038 = vrot.slane %v3037, 1
        %v3039 = vadd.f32 %v3037, %v3038
        %v3040 = vadd.f32 %v3030, %v3032
        %v3041 = vrot.slane %v3040, 4
        %v3042 = vadd.f32 %v3040, %v3041
        %v3043 = vrot.slane %v3042, 2
        %v3044 = vadd.f32 %v3042, %v3043
        %v3045 = vrot.slane %v3044, 1
        %v3046 = vadd.f32 %v3044, %v3045
        %v3049 = vrot.slane %v3046, 7
        %v3050 = vsel %vm572, %v3039, %v3049
        %s3052 = scalar_lea.vmem [#allocation2], 97
        %3053 = vst.msk [vmem:[%s3052] ss:$8 sm:$0x3] %vm578, %v3050
        %3054 = vst.msk [vmem:[%s3052] ss:$8 sm:$0x0] %vm578, %v3050
        %v3055 = vmul.f32 %v441, %v2999
        %v3056 = vmul.f32 %v442, %v3000
        %v3057 = vmul.f32 %v443, %v3001
        %v3058 = vmul.f32 %v444, %v3002
        %v3059 = vadd.f32 %v3055, %v3057
        %v3060 = vrot.slane %v3059, 4
        %v3061 = vadd.f32 %v3059, %v3060
        %v3062 = vrot.slane %v3061, 2
        %v3063 = vadd.f32 %v3061, %v3062
        %v3064 = vrot.slane %v3063, 1
        %v3065 = vadd.f32 %v3063, %v3064
        %v3066 = vadd.f32 %v3056, %v3058
        %v3067 = vrot.slane %v3066, 4
        %v3068 = vadd.f32 %v3066, %v3067
        %v3069 = vrot.slane %v3068, 2
        %v3070 = vadd.f32 %v3068, %v3069
        %v3071 = vrot.slane %v3070, 1
        %v3072 = vadd.f32 %v3070, %v3071
        %v3075 = vrot.slane %v3072, 7
        %v3076 = vsel %vm572, %v3065, %v3075
        %s3078 = scalar_lea.vmem [#allocation2], 98
        %3079 = vst.msk [vmem:[%s3078] ss:$8 sm:$0x3] %vm578, %v3076
        %3080 = vst.msk [vmem:[%s3078] ss:$8 sm:$0x0] %vm578, %v3076
        %v3081 = vmul.f32 %v445, %v2999
        %v3082 = vmul.f32 %v446, %v3000
        %v3083 = vmul.f32 %v447, %v3001
        %v3084 = vmul.f32 %v448, %v3002
        %v3085 = vadd.f32 %v3081, %v3083
        %v3086 = vrot.slane %v3085, 4
        %v3087 = vadd.f32 %v3085, %v3086
        %v3088 = vrot.slane %v3087, 2
        %v3089 = vadd.f32 %v3087, %v3088
        %v3090 = vrot.slane %v3089, 1
        %v3091 = vadd.f32 %v3089, %v3090
        %v3092 = vadd.f32 %v3082, %v3084
        %v3093 = vrot.slane %v3092, 4
        %v3094 = vadd.f32 %v3092, %v3093
        %v3095 = vrot.slane %v3094, 2
        %v3096 = vadd.f32 %v3094, %v3095
        %v3097 = vrot.slane %v3096, 1
        %v3098 = vadd.f32 %v3096, %v3097
        %v3101 = vrot.slane %v3098, 7
        %v3102 = vsel %vm572, %v3091, %v3101
        %s3104 = scalar_lea.vmem [#allocation2], 99
        %3105 = vst.msk [vmem:[%s3104] ss:$8 sm:$0x3] %vm578, %v3102
        %3106 = vst.msk [vmem:[%s3104] ss:$8 sm:$0x0] %vm578, %v3102
        %s3107 = sld [smem:[#allocation3 + $0xd]]
        %s3108 = sld [smem:[#allocation3 + $0x8d]]
        %s3109 = sld [smem:[#allocation3 + $0x10d]]
        %s3110 = sld [smem:[#allocation3 + $0x18d]]
        %v3111 = vstv %s3107
        %v3112 = vmul.f32 %v369, %v3111
        %v3113 = vmul.f32 %v370, %v3111
        %v3114 = vmul.f32 %v371, %v3111
        %v3115 = vmul.f32 %v372, %v3111
        %v3116 = vstv %s3108
        %v3117 = vmul.f32 %v385, %v3116
        %v3118 = vmul.f32 %v386, %v3116
        %v3119 = vmul.f32 %v387, %v3116
        %v3120 = vmul.f32 %v388, %v3116
        %v3121 = vadd.f32 %v3112, %v3117
        %v3122 = vadd.f32 %v3113, %v3118
        %v3123 = vadd.f32 %v3114, %v3119
        %v3124 = vadd.f32 %v3115, %v3120
        %v3125 = vstv %s3109
        %v3126 = vmul.f32 %v401, %v3125
        %v3127 = vmul.f32 %v402, %v3125
        %v3128 = vmul.f32 %v403, %v3125
        %v3129 = vmul.f32 %v404, %v3125
        %v3130 = vadd.f32 %v3121, %v3126
        %v3131 = vadd.f32 %v3122, %v3127
        %v3132 = vadd.f32 %v3123, %v3128
        %v3133 = vadd.f32 %v3124, %v3129
        %v3134 = vadd.f32 %v421, %v3130
        %v3135 = vadd.f32 %v422, %v3131
        %v3136 = vadd.f32 %v423, %v3132
        %v3137 = vadd.f32 %v424, %v3133
        %v3138 = vstv %s3110
        %v3139 = vadd.f32 %v3134, %v3138
        %v3140 = vadd.f32 %v3135, %v3138
        %v3141 = vadd.f32 %v3136, %v3138
        %v3142 = vadd.f32 %v3137, %v3138
        %v3143 = vmax.f32 %v3139, 0.0
        %v3144 = vmax.f32 %v3140, 0.0
        %v3145 = vmax.f32 %v3141, 0.0
        %v3146 = vmax.f32 %v3142, 0.0
        %v3147 = vrsqrt.pop %v3143
        %v3148 = vmul.f32 %v3147, %v3143
        %v3149 = vmul.f32 %v3148, %v3147
        %v3150 = vmul.f32 0.5, %v3149
        %v3151 = vsub.f32 1.5, %v3150
        %v3152 = vmul.f32 %v3147, %v3151
        %v3153 = vmul.f32 %v3143, %v3152
        %vm3154 = vcmp.eq.f32.partialorder %v3143, inf
        %v3155 = vsel %vm3154, %v3143, %v3153
        %vm3156 = vcmp.eq.f32.partialorder %v3143, 0.0
        %v3157 = vand.u32 %v3143, 2147483648
        %v3158 = vsel %vm3156, %v3157, %v3155
        %v3159 = vrsqrt.pop %v3144
        %v3160 = vmul.f32 %v3159, %v3144
        %v3161 = vmul.f32 %v3160, %v3159
        %v3162 = vmul.f32 0.5, %v3161
        %v3163 = vsub.f32 1.5, %v3162
        %v3164 = vmul.f32 %v3159, %v3163
        %v3165 = vmul.f32 %v3144, %v3164
        %vm3166 = vcmp.eq.f32.partialorder %v3144, inf
        %v3167 = vsel %vm3166, %v3144, %v3165
        %vm3168 = vcmp.eq.f32.partialorder %v3144, 0.0
        %v3169 = vand.u32 %v3144, 2147483648
        %v3170 = vsel %vm3168, %v3169, %v3167
        %v3171 = vrsqrt.pop %v3145
        %v3172 = vmul.f32 %v3171, %v3145
        %v3173 = vmul.f32 %v3172, %v3171
        %v3174 = vmul.f32 0.5, %v3173
        %v3175 = vsub.f32 1.5, %v3174
        %v3176 = vmul.f32 %v3171, %v3175
        %v3177 = vmul.f32 %v3145, %v3176
        %vm3178 = vcmp.eq.f32.partialorder %v3145, inf
        %v3179 = vsel %vm3178, %v3145, %v3177
        %vm3180 = vcmp.eq.f32.partialorder %v3145, 0.0
        %v3181 = vand.u32 %v3145, 2147483648
        %v3182 = vsel %vm3180, %v3181, %v3179
        %v3183 = vrsqrt.pop %v3146
        %v3184 = vmul.f32 %v3183, %v3146
        %v3185 = vmul.f32 %v3184, %v3183
        %v3186 = vmul.f32 0.5, %v3185
        %v3187 = vsub.f32 1.5, %v3186
        %v3188 = vmul.f32 %v3183, %v3187
        %v3189 = vmul.f32 %v3146, %v3188
        %vm3190 = vcmp.eq.f32.partialorder %v3146, inf
        %v3191 = vsel %vm3190, %v3146, %v3189
        %vm3192 = vcmp.eq.f32.partialorder %v3146, 0.0
        %v3193 = vand.u32 %v3146, 2147483648
        %v3194 = vsel %vm3192, %v3193, %v3191
        %v3195 = vmul.f32 %v3158, 10.0
        %v3196 = vmul.f32 %v3170, 10.0
        %v3197 = vmul.f32 %v3182, 10.0
        %v3198 = vmul.f32 %v3194, 10.0
        %v3199 = vsub.f32 1.0, %v3195
        %v3200 = vsub.f32 1.0, %v3196
        %v3201 = vsub.f32 1.0, %v3197
        %v3202 = vsub.f32 1.0, %v3198
        %v3203 = vmax.f32 %v3199, 0.0
        %v3204 = vmax.f32 %v3200, 0.0
        %v3205 = vmax.f32 %v3201, 0.0
        %v3206 = vmax.f32 %v3202, 0.0
        %v3207 = vmul.f32 %v433, %v3203
        %v3208 = vmul.f32 %v434, %v3204
        %v3209 = vmul.f32 %v435, %v3205
        %v3210 = vmul.f32 %v436, %v3206
        %v3211 = vadd.f32 %v3207, %v3209
        %v3212 = vrot.slane %v3211, 4
        %v3213 = vadd.f32 %v3211, %v3212
        %v3214 = vrot.slane %v3213, 2
        %v3215 = vadd.f32 %v3213, %v3214
        %v3216 = vrot.slane %v3215, 1
        %v3217 = vadd.f32 %v3215, %v3216
        %v3218 = vadd.f32 %v3208, %v3210
        %v3219 = vrot.slane %v3218, 4
        %v3220 = vadd.f32 %v3218, %v3219
        %v3221 = vrot.slane %v3220, 2
        %v3222 = vadd.f32 %v3220, %v3221
        %v3223 = vrot.slane %v3222, 1
        %v3224 = vadd.f32 %v3222, %v3223
        %v3227 = vrot.slane %v3224, 7
        %v3228 = vsel %vm572, %v3217, %v3227
        %s3230 = scalar_lea.vmem [#allocation2], 100
        %3231 = vst.msk [vmem:[%s3230] ss:$8 sm:$0x3] %vm578, %v3228
        %3232 = vst.msk [vmem:[%s3230] ss:$8 sm:$0x0] %vm578, %v3228
        %v3233 = vmul.f32 %v437, %v3203
        %v3234 = vmul.f32 %v438, %v3204
        %v3235 = vmul.f32 %v439, %v3205
        %v3236 = vmul.f32 %v440, %v3206
        %v3237 = vadd.f32 %v3233, %v3235
        %v3238 = vrot.slane %v3237, 4
        %v3239 = vadd.f32 %v3237, %v3238
        %v3240 = vrot.slane %v3239, 2
        %v3241 = vadd.f32 %v3239, %v3240
        %v3242 = vrot.slane %v3241, 1
        %v3243 = vadd.f32 %v3241, %v3242
        %v3244 = vadd.f32 %v3234, %v3236
        %v3245 = vrot.slane %v3244, 4
        %v3246 = vadd.f32 %v3244, %v3245
        %v3247 = vrot.slane %v3246, 2
        %v3248 = vadd.f32 %v3246, %v3247
        %v3249 = vrot.slane %v3248, 1
        %v3250 = vadd.f32 %v3248, %v3249
        %v3253 = vrot.slane %v3250, 7
        %v3254 = vsel %vm572, %v3243, %v3253
        %s3256 = scalar_lea.vmem [#allocation2], 101
        %3257 = vst.msk [vmem:[%s3256] ss:$8 sm:$0x3] %vm578, %v3254
        %3258 = vst.msk [vmem:[%s3256] ss:$8 sm:$0x0] %vm578, %v3254
        %v3259 = vmul.f32 %v441, %v3203
        %v3260 = vmul.f32 %v442, %v3204
        %v3261 = vmul.f32 %v443, %v3205
        %v3262 = vmul.f32 %v444, %v3206
        %v3263 = vadd.f32 %v3259, %v3261
        %v3264 = vrot.slane %v3263, 4
        %v3265 = vadd.f32 %v3263, %v3264
        %v3266 = vrot.slane %v3265, 2
        %v3267 = vadd.f32 %v3265, %v3266
        %v3268 = vrot.slane %v3267, 1
        %v3269 = vadd.f32 %v3267, %v3268
        %v3270 = vadd.f32 %v3260, %v3262
        %v3271 = vrot.slane %v3270, 4
        %v3272 = vadd.f32 %v3270, %v3271
        %v3273 = vrot.slane %v3272, 2
        %v3274 = vadd.f32 %v3272, %v3273
        %v3275 = vrot.slane %v3274, 1
        %v3276 = vadd.f32 %v3274, %v3275
        %v3279 = vrot.slane %v3276, 7
        %v3280 = vsel %vm572, %v3269, %v3279
        %s3282 = scalar_lea.vmem [#allocation2], 102
        %3283 = vst.msk [vmem:[%s3282] ss:$8 sm:$0x3] %vm578, %v3280
        %3284 = vst.msk [vmem:[%s3282] ss:$8 sm:$0x0] %vm578, %v3280
        %v3285 = vmul.f32 %v445, %v3203
        %v3286 = vmul.f32 %v446, %v3204
        %v3287 = vmul.f32 %v447, %v3205
        %v3288 = vmul.f32 %v448, %v3206
        %v3289 = vadd.f32 %v3285, %v3287
        %v3290 = vrot.slane %v3289, 4
        %v3291 = vadd.f32 %v3289, %v3290
        %v3292 = vrot.slane %v3291, 2
        %v3293 = vadd.f32 %v3291, %v3292
        %v3294 = vrot.slane %v3293, 1
        %v3295 = vadd.f32 %v3293, %v3294
        %v3296 = vadd.f32 %v3286, %v3288
        %v3297 = vrot.slane %v3296, 4
        %v3298 = vadd.f32 %v3296, %v3297
        %v3299 = vrot.slane %v3298, 2
        %v3300 = vadd.f32 %v3298, %v3299
        %v3301 = vrot.slane %v3300, 1
        %v3302 = vadd.f32 %v3300, %v3301
        %v3305 = vrot.slane %v3302, 7
        %v3306 = vsel %vm572, %v3295, %v3305
        %s3308 = scalar_lea.vmem [#allocation2], 103
        %3309 = vst.msk [vmem:[%s3308] ss:$8 sm:$0x3] %vm578, %v3306
        %3310 = vst.msk [vmem:[%s3308] ss:$8 sm:$0x0] %vm578, %v3306
        %s3311 = sld [smem:[#allocation3 + $0xe]]
        %s3312 = sld [smem:[#allocation3 + $0x8e]]
        %s3313 = sld [smem:[#allocation3 + $0x10e]]
        %s3314 = sld [smem:[#allocation3 + $0x18e]]
        %v3315 = vstv %s3311
        %v3316 = vmul.f32 %v369, %v3315
        %v3317 = vmul.f32 %v370, %v3315
        %v3318 = vmul.f32 %v371, %v3315
        %v3319 = vmul.f32 %v372, %v3315
        %v3320 = vstv %s3312
        %v3321 = vmul.f32 %v385, %v3320
        %v3322 = vmul.f32 %v386, %v3320
        %v3323 = vmul.f32 %v387, %v3320
        %v3324 = vmul.f32 %v388, %v3320
        %v3325 = vadd.f32 %v3316, %v3321
        %v3326 = vadd.f32 %v3317, %v3322
        %v3327 = vadd.f32 %v3318, %v3323
        %v3328 = vadd.f32 %v3319, %v3324
        %v3329 = vstv %s3313
        %v3330 = vmul.f32 %v401, %v3329
        %v3331 = vmul.f32 %v402, %v3329
        %v3332 = vmul.f32 %v403, %v3329
        %v3333 = vmul.f32 %v404, %v3329
        %v3334 = vadd.f32 %v3325, %v3330
        %v3335 = vadd.f32 %v3326, %v3331
        %v3336 = vadd.f32 %v3327, %v3332
        %v3337 = vadd.f32 %v3328, %v3333
        %v3338 = vadd.f32 %v421, %v3334
        %v3339 = vadd.f32 %v422, %v3335
        %v3340 = vadd.f32 %v423, %v3336
        %v3341 = vadd.f32 %v424, %v3337
        %v3342 = vstv %s3314
        %v3343 = vadd.f32 %v3338, %v3342
        %v3344 = vadd.f32 %v3339, %v3342
        %v3345 = vadd.f32 %v3340, %v3342
        %v3346 = vadd.f32 %v3341, %v3342
        %v3347 = vmax.f32 %v3343, 0.0
        %v3348 = vmax.f32 %v3344, 0.0
        %v3349 = vmax.f32 %v3345, 0.0
        %v3350 = vmax.f32 %v3346, 0.0
        %v3351 = vrsqrt.pop %v3347
        %v3352 = vmul.f32 %v3351, %v3347
        %v3353 = vmul.f32 %v3352, %v3351
        %v3354 = vmul.f32 0.5, %v3353
        %v3355 = vsub.f32 1.5, %v3354
        %v3356 = vmul.f32 %v3351, %v3355
        %v3357 = vmul.f32 %v3347, %v3356
        %vm3358 = vcmp.eq.f32.partialorder %v3347, inf
        %v3359 = vsel %vm3358, %v3347, %v3357
        %vm3360 = vcmp.eq.f32.partialorder %v3347, 0.0
        %v3361 = vand.u32 %v3347, 2147483648
        %v3362 = vsel %vm3360, %v3361, %v3359
        %v3363 = vrsqrt.pop %v3348
        %v3364 = vmul.f32 %v3363, %v3348
        %v3365 = vmul.f32 %v3364, %v3363
        %v3366 = vmul.f32 0.5, %v3365
        %v3367 = vsub.f32 1.5, %v3366
        %v3368 = vmul.f32 %v3363, %v3367
        %v3369 = vmul.f32 %v3348, %v3368
        %vm3370 = vcmp.eq.f32.partialorder %v3348, inf
        %v3371 = vsel %vm3370, %v3348, %v3369
        %vm3372 = vcmp.eq.f32.partialorder %v3348, 0.0
        %v3373 = vand.u32 %v3348, 2147483648
        %v3374 = vsel %vm3372, %v3373, %v3371
        %v3375 = vrsqrt.pop %v3349
        %v3376 = vmul.f32 %v3375, %v3349
        %v3377 = vmul.f32 %v3376, %v3375
        %v3378 = vmul.f32 0.5, %v3377
        %v3379 = vsub.f32 1.5, %v3378
        %v3380 = vmul.f32 %v3375, %v3379
        %v3381 = vmul.f32 %v3349, %v3380
        %vm3382 = vcmp.eq.f32.partialorder %v3349, inf
        %v3383 = vsel %vm3382, %v3349, %v3381
        %vm3384 = vcmp.eq.f32.partialorder %v3349, 0.0
        %v3385 = vand.u32 %v3349, 2147483648
        %v3386 = vsel %vm3384, %v3385, %v3383
        %v3387 = vrsqrt.pop %v3350
        %v3388 = vmul.f32 %v3387, %v3350
        %v3389 = vmul.f32 %v3388, %v3387
        %v3390 = vmul.f32 0.5, %v3389
        %v3391 = vsub.f32 1.5, %v3390
        %v3392 = vmul.f32 %v3387, %v3391
        %v3393 = vmul.f32 %v3350, %v3392
        %vm3394 = vcmp.eq.f32.partialorder %v3350, inf
        %v3395 = vsel %vm3394, %v3350, %v3393
        %vm3396 = vcmp.eq.f32.partialorder %v3350, 0.0
        %v3397 = vand.u32 %v3350, 2147483648
        %v3398 = vsel %vm3396, %v3397, %v3395
        %v3399 = vmul.f32 %v3362, 10.0
        %v3400 = vmul.f32 %v3374, 10.0
        %v3401 = vmul.f32 %v3386, 10.0
        %v3402 = vmul.f32 %v3398, 10.0
        %v3403 = vsub.f32 1.0, %v3399
        %v3404 = vsub.f32 1.0, %v3400
        %v3405 = vsub.f32 1.0, %v3401
        %v3406 = vsub.f32 1.0, %v3402
        %v3407 = vmax.f32 %v3403, 0.0
        %v3408 = vmax.f32 %v3404, 0.0
        %v3409 = vmax.f32 %v3405, 0.0
        %v3410 = vmax.f32 %v3406, 0.0
        %v3411 = vmul.f32 %v433, %v3407
        %v3412 = vmul.f32 %v434, %v3408
        %v3413 = vmul.f32 %v435, %v3409
        %v3414 = vmul.f32 %v436, %v3410
        %v3415 = vadd.f32 %v3411, %v3413
        %v3416 = vrot.slane %v3415, 4
        %v3417 = vadd.f32 %v3415, %v3416
        %v3418 = vrot.slane %v3417, 2
        %v3419 = vadd.f32 %v3417, %v3418
        %v3420 = vrot.slane %v3419, 1
        %v3421 = vadd.f32 %v3419, %v3420
        %v3422 = vadd.f32 %v3412, %v3414
        %v3423 = vrot.slane %v3422, 4
        %v3424 = vadd.f32 %v3422, %v3423
        %v3425 = vrot.slane %v3424, 2
        %v3426 = vadd.f32 %v3424, %v3425
        %v3427 = vrot.slane %v3426, 1
        %v3428 = vadd.f32 %v3426, %v3427
        %v3431 = vrot.slane %v3428, 7
        %v3432 = vsel %vm572, %v3421, %v3431
        %s3434 = scalar_lea.vmem [#allocation2], 112
        %3435 = vst.msk [vmem:[%s3434] ss:$8 sm:$0x3] %vm578, %v3432
        %3436 = vst.msk [vmem:[%s3434] ss:$8 sm:$0x0] %vm578, %v3432
        %v3437 = vmul.f32 %v437, %v3407
        %v3438 = vmul.f32 %v438, %v3408
        %v3439 = vmul.f32 %v439, %v3409
        %v3440 = vmul.f32 %v440, %v3410
        %v3441 = vadd.f32 %v3437, %v3439
        %v3442 = vrot.slane %v3441, 4
        %v3443 = vadd.f32 %v3441, %v3442
        %v3444 = vrot.slane %v3443, 2
        %v3445 = vadd.f32 %v3443, %v3444
        %v3446 = vrot.slane %v3445, 1
        %v3447 = vadd.f32 %v3445, %v3446
        %v3448 = vadd.f32 %v3438, %v3440
        %v3449 = vrot.slane %v3448, 4
        %v3450 = vadd.f32 %v3448, %v3449
        %v3451 = vrot.slane %v3450, 2
        %v3452 = vadd.f32 %v3450, %v3451
        %v3453 = vrot.slane %v3452, 1
        %v3454 = vadd.f32 %v3452, %v3453
        %v3457 = vrot.slane %v3454, 7
        %v3458 = vsel %vm572, %v3447, %v3457
        %s3460 = scalar_lea.vmem [#allocation2], 113
        %3461 = vst.msk [vmem:[%s3460] ss:$8 sm:$0x3] %vm578, %v3458
        %3462 = vst.msk [vmem:[%s3460] ss:$8 sm:$0x0] %vm578, %v3458
        %v3463 = vmul.f32 %v441, %v3407
        %v3464 = vmul.f32 %v442, %v3408
        %v3465 = vmul.f32 %v443, %v3409
        %v3466 = vmul.f32 %v444, %v3410
        %v3467 = vadd.f32 %v3463, %v3465
        %v3468 = vrot.slane %v3467, 4
        %v3469 = vadd.f32 %v3467, %v3468
        %v3470 = vrot.slane %v3469, 2
        %v3471 = vadd.f32 %v3469, %v3470
        %v3472 = vrot.slane %v3471, 1
        %v3473 = vadd.f32 %v3471, %v3472
        %v3474 = vadd.f32 %v3464, %v3466
        %v3475 = vrot.slane %v3474, 4
        %v3476 = vadd.f32 %v3474, %v3475
        %v3477 = vrot.slane %v3476, 2
        %v3478 = vadd.f32 %v3476, %v3477
        %v3479 = vrot.slane %v3478, 1
        %v3480 = vadd.f32 %v3478, %v3479
        %v3483 = vrot.slane %v3480, 7
        %v3484 = vsel %vm572, %v3473, %v3483
        %s3486 = scalar_lea.vmem [#allocation2], 114
        %3487 = vst.msk [vmem:[%s3486] ss:$8 sm:$0x3] %vm578, %v3484
        %3488 = vst.msk [vmem:[%s3486] ss:$8 sm:$0x0] %vm578, %v3484
        %v3489 = vmul.f32 %v445, %v3407
        %v3490 = vmul.f32 %v446, %v3408
        %v3491 = vmul.f32 %v447, %v3409
        %v3492 = vmul.f32 %v448, %v3410
        %v3493 = vadd.f32 %v3489, %v3491
        %v3494 = vrot.slane %v3493, 4
        %v3495 = vadd.f32 %v3493, %v3494
        %v3496 = vrot.slane %v3495, 2
        %v3497 = vadd.f32 %v3495, %v3496
        %v3498 = vrot.slane %v3497, 1
        %v3499 = vadd.f32 %v3497, %v3498
        %v3500 = vadd.f32 %v3490, %v3492
        %v3501 = vrot.slane %v3500, 4
        %v3502 = vadd.f32 %v3500, %v3501
        %v3503 = vrot.slane %v3502, 2
        %v3504 = vadd.f32 %v3502, %v3503
        %v3505 = vrot.slane %v3504, 1
        %v3506 = vadd.f32 %v3504, %v3505
        %v3509 = vrot.slane %v3506, 7
        %v3510 = vsel %vm572, %v3499, %v3509
        %s3512 = scalar_lea.vmem [#allocation2], 115
        %3513 = vst.msk [vmem:[%s3512] ss:$8 sm:$0x3] %vm578, %v3510
        %3514 = vst.msk [vmem:[%s3512] ss:$8 sm:$0x0] %vm578, %v3510
        %v3515 = vld [vmem:[#allocation7] sm:$0xf]
        %v3516 = vld [vmem:[#allocation2] sm:$0xff]
        %v3517 = vld [vmem:[#allocation2 + $0x8] sm:$0xff]
        %v3518 = vld [vmem:[#allocation2 + $0x10] sm:$0xff]
        %v3519 = vld [vmem:[#allocation2 + $0x18] sm:$0xff]
        %v3520 = vld [vmem:[#allocation2 + $0x20] sm:$0xff]
        %v3521 = vld [vmem:[#allocation2 + $0x28] sm:$0xff]
        %v3522 = vld [vmem:[#allocation2 + $0x30] sm:$0xff]
        %v3523 = vld [vmem:[#allocation2 + $0x38] sm:$0xff]
        %v3524 = vld [vmem:[#allocation2 + $0x40] sm:$0xff]
        %v3525 = vld [vmem:[#allocation2 + $0x48] sm:$0xff]
        %v3526 = vld [vmem:[#allocation2 + $0x50] sm:$0xff]
        %v3527 = vld [vmem:[#allocation2 + $0x58] sm:$0xff]
        %v3528 = vld [vmem:[#allocation2 + $0x60] sm:$0xff]
        %v3529 = vld [vmem:[#allocation2 + $0x68] sm:$0xff]
        %v3530 = vld [vmem:[#allocation2 + $0x70] sm:$0xff]
        %v3531 = vld [vmem:[#allocation2 + $0x78] sm:$0xff]
        %v3532 = vpack.c.bf16 %v3518, %v3516
        %v3533 = vpack.c.bf16 %v3519, %v3517
        %v3534 = vpack.c.bf16 %v3522, %v3520
        %v3535 = vpack.c.bf16 %v3523, %v3521
        %v3536 = vpack.c.bf16 %v3526, %v3524
        %v3537 = vpack.c.bf16 %v3527, %v3525
        %v3538 = vpack.c.bf16 %v3530, %v3528
        %v3539 = vpack.c.bf16 %v3531, %v3529
        %vm3540 = vcmask 523264
        %v3542 = vsel %vm3540, %v3515, 0
        %3544 = vmatpush.bf16.msra.mxu0 0
        %3545 = vmatpush.bf16.msra.mxu0 0
        %3546 = vmatpush.bf16.msra.mxu0 0
        %3547 = vmatpush.bf16.msra.mxu0 0
        %3548 = vmatpush.bf16.msra.mxu0 %v3538
        %3549 = vmatpush.bf16.msra.mxu0 %v3536
        %3550 = vmatpush.bf16.msra.mxu0 %v3534
        %3551 = vmatpush.bf16.msra.mxu0 %v3532
        %3552 = vmatmul.bf16.gmra.mxu0 %v3542
        %v3553 = vpop.f32.mrf.mxu0
        %v3554 = vadd.f32 0.0, %v3553
        %v3555 = vpop.f32.mrf.mxu0
        %3556 = vdwg.mxu0
        %3557 = vmatpush.bf16.msra.mxu0 0
        %3558 = vmatpush.bf16.msra.mxu0 0
        %3559 = vmatpush.bf16.msra.mxu0 0
        %3560 = vmatpush.bf16.msra.mxu0 0
        %3561 = vmatpush.bf16.msra.mxu0 %v3539
        %3562 = vmatpush.bf16.msra.mxu0 %v3537
        %3563 = vmatpush.bf16.msra.mxu0 %v3535
        %3564 = vmatpush.bf16.msra.mxu0 %v3533
        %3565 = vmatmul.bf16.gmra.mxu0 %v3542
        %v3566 = vpop.f32.mrf.mxu0
        %v3567 = vadd.f32 0.0, %v3566
        %v3568 = vpop.f32.mrf.mxu0
        %3569 = vdwg.mxu0
        %3570 = vst [vmem:[%s353] sm:$0xff] %v3554
        %3571 = vst [vmem:[%s353 + $0x8] sm:$0xff] %v3567
        %s3572 = sand.u32 %s155, 1
        %s3573 = scalar_lea.sflag [#allocation5], %s3572
        %s3574 = sand.u32 %s155, 1
        %s3575 = smul.addr %s3574, 16
        %s3576 = scalar_lea.vmem [#allocation13], %s3575
        // Predicated region
        $region61: #{tpu_custom_call.1} parent=39 // pred_check
          %p3577 = pneg %p165
        $region62: #{tpu_custom_call.1} parent=39 // pred_check_branch
          %3579 = sbr.rel (%p3577) target = $region64
        $region63: #{tpu_custom_call.1} parent=39 // pred_region
          %s3580 = smul.u32 2, %s27
          %3582 = vsyncadd %s3573, 0
          %s3583 = smul.addr %s3580, 8
          %s3584 = scalar_lea.hbm %s5, %s3583
          %s3586 = sshll.u32 %s3576, 4
          %s3587 = int_to_ptr.vmem [resolvable:$true] %s3586
          %s3588 = sshll.u32 %s3584, 4
          %s3589 = int_to_ptr.hbm [resolvable:$true] %s3588
          %3591 = dma.vmem_to_hbm [thread:$0]  %s3587, 256, %s3589, %s3573
        $region64: #{tpu_custom_call.1} parent=39 // pred_fallthru
          _
      $region40: #{tpu_custom_call.1} parent=5 // pred_fallthru
        _
      %p3592 = scmp.le.s32.totalorder 2, %s22
      // Predicated region
      $region65: #{tpu_custom_call.1} parent=5 // pred_check
        %p3593 = pneg %p3592
      $region66: #{tpu_custom_call.1} parent=5 // pred_check_branch
        %3595 = sbr.rel (%p3593) target = $region68
      $region67: #{tpu_custom_call.1} parent=5 // pred_region
        %s3596 = ssub.s32 %s22, 2
        // Predicated region
        $region69: #{tpu_custom_call.1} parent=67 // pred_check
          %p3597 = pneg %p171
        $region70: #{tpu_custom_call.1} parent=67 // pred_check_branch
          %3599 = sbr.rel (%p3597) target = $region72
        $region71: #{tpu_custom_call.1} parent=67 // pred_region
          %s3600 = sand.u32 %s156, 1
          %s3601 = scalar_lea.sflag [#allocation5], %s3600
          %s3602 = sand.u32 %s156, 1
          %s3603 = smul.addr %s3602, 16
          %s3604 = scalar_lea.vmem [#allocation13], %s3603
          %3606 = dma.done %s3601, 256
        $region72: #{tpu_custom_call.1} parent=67 // pred_fallthru
          _
      $region68: #{tpu_custom_call.1} parent=5 // pred_fallthru
        _
    $region6: #{tpu_custom_call.1} parent=1 // loop_footer
      %s26 = sadd.s32 1, %s22
    $region7: #{tpu_custom_call.1} parent=1 // loop_footer_branch
      %21 = sbr.rel target = $region3
    $region8: #{tpu_custom_call.1} parent=1 // loop_exit
      _
    %3607 = vsyncpa [#allocation4], 1
    %s3608 = scalar_lea.sflag [#allocation4], 1
    %3609 = vsyncpa %s3608, 1
    %3610 = vsyncpa [#allocation9], 1
    %s3611 = scalar_lea.sflag [#allocation9], 1
    %3612 = vsyncpa %s3611, 1
    %3613 = vsyncpa [#allocation12], 1
    %s3614 = scalar_lea.sflag [#allocation12], 1
    %3615 = vsyncpa %s3614, 1
    %3616 = vsyncpa [#allocation5], 1
    %s3617 = scalar_lea.sflag [#allocation5], 1
    %3618 = vsyncpa %s3617, 1
    %3619 = vsyncpa [#allocation6], 1
    %s3620 = scalar_lea.sflag [#allocation6], 1
    %3621 = vsyncpa %s3620, 1

</llo_original>
